<compile_context>
chip_gen: v7x
topology: tpu7x:2x2x1
jax: 0.10.0
libtpu: 0.0.40
codegen_flags: <defaults>
</compile_context>

<pallas_src>
import functools

import jax
import jax.numpy as jnp
from jax.experimental import pallas as pl
from jax.experimental.pallas import tpu as pltpu


# ---------------- kernel-side activation helpers (EUP-friendly) ----------------
def _sigmoid(x):
    # approx reciprocal lands on the EUP slot (same unit as the exp) instead of a
    # VALU divide -> does not compete with the depthwise FMAs/selects.
    return pl.reciprocal(1.0 + jnp.exp(-x), approx=True)


def _silu(x):
    return x * _sigmoid(x)


# Packed per-expanded-channel slab column layout:
#   0:s1  1:b1  2:s2  3:b2  4:bse2  5..13: w_dw taps
#   14..14+Cred-1: w_se1   14+Cred..14+2*Cred-1: w_se2^T   14+2*Cred: bse1 (padded)
_IDX_DW = 5
_IDX_SE1 = 14


def mbconv_kernel(x_ref, w_exp_ref, cexp_ref, w_proj_ref, cout_ref, out_ref,
                  *, H: int, W: int, Bblk: int, Cred: int, use_res_connect: bool):
    HW = H * W
    BHW = Bblk * HW

    slab = cexp_ref[...]                                   # (Cexp, 15 + 2*Cred) f32
    s1, b1 = slab[:, 0:1], slab[:, 1:2]
    s2, b2 = slab[:, 2:3], slab[:, 3:4]
    bse2 = slab[:, 4:5]
    dw_cols = [slab[:, _IDX_DW + t:_IDX_DW + t + 1] for t in range(9)]   # hoisted
    w_se1 = slab[:, _IDX_SE1:_IDX_SE1 + Cred]              # (Cexp, Cred)
    w_se2t = slab[:, _IDX_SE1 + Cred:_IDX_SE1 + 2 * Cred]  # (Cexp, Cred)
    ib = _IDX_SE1 + 2 * Cred                               # bse1 column index
    s3, b3 = cout_ref[:, 0:1], cout_ref[:, 1:2]

    # ---- gather Bblk images into one channels-major 2D slab (Cin, Bblk*HW) ----
    # Lane-aligned (multiples of HW>=128) VMEM copies only; no HBM transpose.
    x2d = jnp.concatenate([x_ref[b] for b in range(Bblk)], axis=1)

    # ---- 1x1 expand conv (bf16 MXU operands, f32 accumulate) + BN + SiLU ----
    h = jnp.dot(w_exp_ref[...], x2d.astype(jnp.bfloat16),
                preferred_element_type=jnp.float32)        # (Cexp, BHW)
    h = _silu(h * s1 + b1)

    # ---- 3x3 depthwise conv (stride 1, pad 1) via lane rolls + factored masks ----
    lane = jax.lax.broadcasted_iota(jnp.int32, (1, BHW), 1)
    col = (lane & (W - 1)) if (W & (W - 1)) == 0 else jax.lax.rem(lane, W)
    pos = (lane & (HW - 1)) if (HW & (HW - 1)) == 0 else jax.lax.rem(lane, HW)
    left_ok = col >= 1                 # has a left neighbour  (dx = -1)
    right_ok = col <= W - 2            # has a right neighbour (dx = +1)
    up_ok = pos >= W                   # has a row above       (dy = -1)
    down_ok = pos < (H - 1) * W        # has a row below       (dy = +1)

    # Column-masked variants (2 rolls + 2 selects); column index is invariant under
    # row shifts (multiples of W), so the row mask can be applied once per dy.
    h_l = jnp.where(left_ok, pltpu.roll(h, shift=1, axis=1), 0.0)         # h[l-1]
    h_r = jnp.where(right_ok, pltpu.roll(h, shift=BHW - 1, axis=1), 0.0)  # h[l+1]

    acc = None
    for dy, row_ok in ((-1, up_ok), (0, None), (1, down_ok)):
        t0 = (dy + 1) * 3
        part = h_l * dw_cols[t0] + h * dw_cols[t0 + 1] + h_r * dw_cols[t0 + 2]
        if dy != 0:
            part = pltpu.roll(part, shift=(-dy * W) % BHW, axis=1)
            part = jnp.where(row_ok, part, 0.0)
        acc = part if acc is None else acc + part
    h = _silu(acc * s2 + b2)

    # ---- Squeeze-and-Excitation (per image; VPU/XLU only, no M=1 MXU matmuls) ----
    parts = []
    for b in range(Bblk):
        hb = h[:, b * HW:(b + 1) * HW]                     # (Cexp, HW), aligned slice
        pooled = jnp.mean(hb, axis=1, keepdims=True)       # (Cexp, 1)
        gate = bse2                                        # (Cexp, 1)
        for r in range(Cred):
            sr = jnp.sum(w_se1[:, r:r + 1] * pooled, axis=0, keepdims=True)  # (1, 1)
            sr = _silu(sr + slab[r:r + 1, ib:ib + 1])
            gate = gate + w_se2t[:, r:r + 1] * sr
        parts.append(hb * _sigmoid(gate))
    h = jnp.concatenate(parts, axis=1)                     # (Cexp, BHW)

    # ---- 1x1 project conv (bf16 MXU operands) + BN (no activation) ----
    out2d = jnp.dot(w_proj_ref[...], h.astype(jnp.bfloat16),
                    preferred_element_type=jnp.float32)    # (Cout, BHW)
    out2d = out2d * s3 + b3

    # ---- residual (Dropout / StochasticDepth are identity in eval mode) ----
    # TODO(synk): training-mode StochasticDepth / Dropout RNG not implemented.
    for b in range(Bblk):
        ob = out2d[:, b * HW:(b + 1) * HW]
        if use_res_connect:
            ob = ob + x_ref[b]
        out_ref[b] = ob.astype(out_ref.dtype)


def _largest_divisor_leq(n, k):
    k = max(1, min(k, n))
    while n % k:
        k -= 1
    return k


def mbconv_pallas(x_nchw, params, *, use_res_connect=True, block_batch=4):
    """x_nchw: (B, Cin, H, W) float32 (PyTorch layout). Returns (B, Cout, H, W)."""
    B, Cin, H, W = x_nchw.shape
    HW = H * W
    Cexp = params["w_exp"].shape[1]
    Cred = params["w_se1"].shape[1]
    Cout = params["w_proj"].shape[1]
    if use_res_connect and Cin != Cout:
        raise ValueError("use_res_connect requires stride==1 and Cin==Cout")

    # Batch-block: several images per grid step amortize the per-step overhead and
    # fatten the MXU contractions to N = Bblk*HW lanes.  Keep the grid even so both
    # v7x TensorCores stay busy under dimension_semantics=("parallel",).
    Bblk = _largest_divisor_leq(B, block_batch)

    # NCHW -> (B, C, H*W): FREE reshape; already channels-major for the kernel.
    x = x_nchw.reshape(B, Cin, HW).astype(jnp.float32)

    def colv(v):
        return jnp.asarray(v, jnp.float32).reshape(-1, 1)

    # Pack all per-expanded-channel vectors/weights into one slab (1 DMA, not ~10).
    bse1_pad = jnp.zeros((Cexp, 1), jnp.float32).at[:Cred, 0].set(
        jnp.asarray(params["bse1"], jnp.float32).reshape(-1))
    cexp_slab = jnp.concatenate([
        colv(params["s1"]), colv(params["b1"]),
        colv(params["s2"]), colv(params["b2"]),
        colv(params["bse2"]),
        jnp.asarray(params["w_dw"], jnp.float32).T,        # (Cexp, 9)
        jnp.asarray(params["w_se1"], jnp.float32),         # (Cexp, Cred)
        jnp.asarray(params["w_se2"], jnp.float32).T,       # (Cexp, Cred)
        bse1_pad,                                          # (Cexp, 1)
    ], axis=1)
    cout_slab = jnp.concatenate([colv(params["s3"]), colv(params["b3"])], axis=1)

    # bf16 weights for the two MXU matmuls (f32 accumulation inside the kernel).
    w_exp_b = jnp.asarray(params["w_exp"], jnp.float32).T.astype(jnp.bfloat16)    # (Cexp, Cin)
    w_proj_b = jnp.asarray(params["w_proj"], jnp.float32).T.astype(jnp.bfloat16)  # (Cout, Cexp)

    def full_spec(arr):
        nd = arr.ndim
        return pl.BlockSpec(arr.shape, lambda g, _nd=nd: (0,) * _nd)

    kernel = functools.partial(mbconv_kernel, H=H, W=W, Bblk=Bblk, Cred=Cred,
                               use_res_connect=use_res_connect)

    # TODO(synk): for real EfficientNetV2 shapes (HW up to 112^2, Cexp few hundred)
    # add an HW row-strip grid axis with a 1-row halo and set vmem_limit_bytes.
    out = pl.pallas_call(
        kernel,
        out_shape=jax.ShapeDtypeStruct((B, Cout, HW), jnp.float32),
        grid_spec=pltpu.PrefetchScalarGridSpec(
            num_scalar_prefetch=0,
            grid=(B // Bblk,),
            in_specs=[
                pl.BlockSpec((Bblk, Cin, HW), lambda g: (g, 0, 0)),
                full_spec(w_exp_b),
                full_spec(cexp_slab),
                full_spec(w_proj_b),
                full_spec(cout_slab),
            ],
            out_specs=pl.BlockSpec((Bblk, Cout, HW), lambda g: (g, 0, 0)),
        ),
        compiler_params=pltpu.CompilerParams(
            dimension_semantics=("parallel",)),
    )(x, w_exp_b, cexp_slab, w_proj_b, cout_slab)

    return out.reshape(B, Cout, H, W)   # FREE reshape back to NCHW


def mbconv_reference(x_nchw, params, *, use_res_connect=True):
    """Plain-JAX f32 reference with identical math (for correctness check)."""
    x = jnp.transpose(x_nchw, (0, 2, 3, 1))
    B, H, W, Cin = x.shape
    hi = jax.lax.Precision.HIGHEST
    h = jnp.einsum("bhwc,cd->bhwd", x, params["w_exp"], precision=hi)
    h = jax.nn.silu(h * params["s1"].reshape(1, 1, 1, -1) + params["b1"].reshape(1, 1, 1, -1))
    padded = jnp.pad(h, ((0, 0), (1, 1), (1, 1), (0, 0)))
    acc = jnp.zeros_like(h)
    for dy in range(3):
        for dx in range(3):
            acc = acc + padded[:, dy:dy + H, dx:dx + W, :] * params["w_dw"][dy * 3 + dx]
    h = jax.nn.silu(acc * params["s2"].reshape(1, 1, 1, -1) + params["b2"].reshape(1, 1, 1, -1))
    pooled = jnp.mean(h, axis=(1, 2))                                    # (B, Cexp)
    se = jax.nn.silu(jnp.dot(pooled, params["w_se1"], precision=hi) + params["bse1"])
    se = jax.nn.sigmoid(jnp.dot(se, params["w_se2"], precision=hi) + params["bse2"])
    h = h * se.reshape(B, 1, 1, -1)
    out = jnp.einsum("bhwc,cd->bhwd", h, params["w_proj"], precision=hi)
    out = out * params["s3"].reshape(1, 1, 1, -1) + params["b3"].reshape(1, 1, 1, -1)
    if use_res_connect:
        out = out + x
    return jnp.transpose(out, (0, 3, 1, 2))


def make_params(key, Cin, Cexp, Cred, Cout, eps=1e-5):
    ks = jax.random.split(key, 16)

    def bn_fold(kg, kb, km, kv, c):
        gamma = 1.0 + 0.1 * jax.random.normal(kg, (c,), jnp.float32)
        beta = 0.1 * jax.random.normal(kb, (c,), jnp.float32)
        mean = 0.1 * jax.random.normal(km, (c,), jnp.float32)
        var = jnp.abs(jax.random.normal(kv, (c,), jnp.float32)) + 1.0
        scale = gamma / jnp.sqrt(var + eps)
        bias = beta - mean * scale
        return scale.reshape(1, c), bias.reshape(1, c)

    s1, b1 = bn_fold(ks[0], ks[1], ks[2], ks[3], Cexp)
    s2, b2 = bn_fold(ks[4], ks[5], ks[6], ks[7], Cexp)
    s3, b3 = bn_fold(ks[8], ks[9], ks[10], ks[11], Cout)

    params = {
        # 1x1 expand conv weight, stored canonically as (Cin, Cexp)
        "w_exp": 0.1 * jax.random.normal(ks[12], (Cin, Cexp), jnp.float32),
        "s1": s1, "b1": b1,
        # depthwise 3x3 weight, stored canonically as (9, Cexp)
        "w_dw": 0.1 * jax.random.normal(ks[13], (9, Cexp), jnp.float32),
        "s2": s2, "b2": b2,
        # SE fc weights (1x1 convs with bias)
        "w_se1": 0.1 * jax.random.normal(ks[14], (Cexp, Cred), jnp.float32),
        "bse1": jnp.zeros((1, Cred), jnp.float32),
        "w_se2": 0.1 * jax.random.normal(ks[15], (Cred, Cexp), jnp.float32),
        "bse2": jnp.zeros((1, Cexp), jnp.float32),
        # 1x1 project conv weight, stored canonically as (Cexp, Cout)
        "w_proj": 0.1 * jax.random.normal(jax.random.fold_in(key, 99),
                                          (Cexp, Cout), jnp.float32),
        "s3": s3, "b3": b3,
    }
    return params


if __name__ == "__main__":
    # MBConvConfig(expand_ratio=4, kernel=3, stride=1, input_channels=8,
    #              out_channels=8, se_ratio=0.25)  ->  expanded=32, reduced=2
    B, Cin, H, W = 8, 8, 16, 16          # B=8 -> Bblk=4, grid=(2,) (even, v7x-friendly)
    Cexp, Cred, Cout = 32, 2, 8
    use_res_connect = True               # stride == 1 and Cin == Cout

    key = jax.random.PRNGKey(0)
    kx, kp = jax.random.split(key)
    x = jax.random.normal(kx, (B, Cin, H, W), jnp.float32)
    params = make_params(kp, Cin, Cexp, Cred, Cout)

    out = mbconv_pallas(x, params, use_res_connect=use_res_connect, block_batch=4)
    out = jax.block_until_ready(out)

    ref = mbconv_reference(x, params, use_res_connect=use_res_connect)
    assert out.shape == (B, Cout, H, W)
    err = float(jnp.max(jnp.abs(out - ref)))
    # bf16 MXU operands + EUP approx reciprocal => looser tolerance than pure-f32 v1.
    assert err < 1e-2, f"max abs err {err}"

    print("KERNEL_OK")
</pallas_src>

<mosaic_0001>
module attributes {stable_mosaic.version = 11 : i64} {
  func.func @mbconv_kernel(%arg0: i32, %arg1: memref<4x8x256xf32, #tpu.memory_space<vmem>>, %arg2: memref<32x8xbf16, #tpu.memory_space<vmem>>, %arg3: memref<32x19xf32, #tpu.memory_space<vmem>>, %arg4: memref<8x32xbf16, #tpu.memory_space<vmem>>, %arg5: memref<8x2xf32, #tpu.memory_space<vmem>>, %arg6: memref<4x8x256xf32, #tpu.memory_space<vmem>>) attributes {dimension_semantics = [#tpu.dimension_semantics<parallel>], iteration_bounds = array<i64: 2>, scalar_prefetch = 0 : i64, scratch_operands = 0 : i64, tpu.core_type = #tpu.core_type<tc>, window_params = [{transform_indices = @transform_0, window_bounds = array<i64: 4, 8, 256>}, {pipeline_mode = #tpu.pipeline_mode<synchronous>, transform_indices = @transform_1, window_bounds = array<i64: 32, 8>}, {pipeline_mode = #tpu.pipeline_mode<synchronous>, transform_indices = @transform_2, window_bounds = array<i64: 32, 19>}, {pipeline_mode = #tpu.pipeline_mode<synchronous>, transform_indices = @transform_3, window_bounds = array<i64: 8, 32>}, {pipeline_mode = #tpu.pipeline_mode<synchronous>, transform_indices = @transform_4, window_bounds = array<i64: 8, 2>}, {transform_indices = @transform_5, window_bounds = array<i64: 4, 8, 256>}]} {
    %c0 = arith.constant 0 : index
    %c0_0 = arith.constant 0 : index
    %0 = vector.load %arg3[%c0, %c0_0] : memref<32x19xf32, #tpu.memory_space<vmem>>, vector<32x19xf32>
    %1 = vector.extract_strided_slice %0 {offsets = [0, 0], sizes = [32, 1], strides = [1, 1]} : vector<32x19xf32> to vector<32x1xf32>
    %2 = vector.extract_strided_slice %0 {offsets = [0, 1], sizes = [32, 1], strides = [1, 1]} : vector<32x19xf32> to vector<32x1xf32>
    %3 = vector.extract_strided_slice %0 {offsets = [0, 2], sizes = [32, 1], strides = [1, 1]} : vector<32x19xf32> to vector<32x1xf32>
    %4 = vector.extract_strided_slice %0 {offsets = [0, 3], sizes = [32, 1], strides = [1, 1]} : vector<32x19xf32> to vector<32x1xf32>
    %5 = vector.extract_strided_slice %0 {offsets = [0, 4], sizes = [32, 1], strides = [1, 1]} : vector<32x19xf32> to vector<32x1xf32>
    %6 = vector.extract_strided_slice %0 {offsets = [0, 5], sizes = [32, 1], strides = [1, 1]} : vector<32x19xf32> to vector<32x1xf32>
    %7 = vector.extract_strided_slice %0 {offsets = [0, 6], sizes = [32, 1], strides = [1, 1]} : vector<32x19xf32> to vector<32x1xf32>
    %8 = vector.extract_strided_slice %0 {offsets = [0, 7], sizes = [32, 1], strides = [1, 1]} : vector<32x19xf32> to vector<32x1xf32>
    %9 = vector.extract_strided_slice %0 {offsets = [0, 8], sizes = [32, 1], strides = [1, 1]} : vector<32x19xf32> to vector<32x1xf32>
    %10 = vector.extract_strided_slice %0 {offsets = [0, 9], sizes = [32, 1], strides = [1, 1]} : vector<32x19xf32> to vector<32x1xf32>
    %11 = vector.extract_strided_slice %0 {offsets = [0, 10], sizes = [32, 1], strides = [1, 1]} : vector<32x19xf32> to vector<32x1xf32>
    %12 = vector.extract_strided_slice %0 {offsets = [0, 11], sizes = [32, 1], strides = [1, 1]} : vector<32x19xf32> to vector<32x1xf32>
    %13 = vector.extract_strided_slice %0 {offsets = [0, 12], sizes = [32, 1], strides = [1, 1]} : vector<32x19xf32> to vector<32x1xf32>
    %14 = vector.extract_strided_slice %0 {offsets = [0, 13], sizes = [32, 1], strides = [1, 1]} : vector<32x19xf32> to vector<32x1xf32>
    %15 = vector.extract_strided_slice %0 {offsets = [0, 14], sizes = [32, 2], strides = [1, 1]} : vector<32x19xf32> to vector<32x2xf32>
    %16 = vector.extract_strided_slice %0 {offsets = [0, 16], sizes = [32, 2], strides = [1, 1]} : vector<32x19xf32> to vector<32x2xf32>
    %c0_1 = arith.constant 0 : index
    %c0_2 = arith.constant 0 : index
    %17 = vector.load %arg5[%c0_1, %c0_2] : memref<8x2xf32, #tpu.memory_space<vmem>>, vector<8x1xf32>
    %c0_3 = arith.constant 0 : index
    %c1 = arith.constant 1 : index
    %18 = vector.load %arg5[%c0_3, %c1] : memref<8x2xf32, #tpu.memory_space<vmem>>, vector<8x1xf32>
    %c0_4 = arith.constant 0 : index
    %c0_5 = arith.constant 0 : index
    %c0_6 = arith.constant 0 : index
    %19 = vector.load %arg1[%c0_4, %c0_5, %c0_6] : memref<4x8x256xf32, #tpu.memory_space<vmem>>, vector<1x8x256xf32>
    %20 = vector.shape_cast %19 : vector<1x8x256xf32> to vector<8x256xf32>
    %c1_7 = arith.constant 1 : index
    %c0_8 = arith.constant 0 : index
    %c0_9 = arith.constant 0 : index
    %21 = vector.load %arg1[%c1_7, %c0_8, %c0_9] : memref<4x8x256xf32, #tpu.memory_space<vmem>>, vector<1x8x256xf32>
    %22 = vector.shape_cast %21 : vector<1x8x256xf32> to vector<8x256xf32>
    %c2 = arith.constant 2 : index
    %c0_10 = arith.constant 0 : index
    %c0_11 = arith.constant 0 : index
    %23 = vector.load %arg1[%c2, %c0_10, %c0_11] : memref<4x8x256xf32, #tpu.memory_space<vmem>>, vector<1x8x256xf32>
    %24 = vector.shape_cast %23 : vector<1x8x256xf32> to vector<8x256xf32>
    %c3 = arith.constant 3 : index
    %c0_12 = arith.constant 0 : index
    %c0_13 = arith.constant 0 : index
    %25 = vector.load %arg1[%c3, %c0_12, %c0_13] : memref<4x8x256xf32, #tpu.memory_space<vmem>>, vector<1x8x256xf32>
    %26 = vector.shape_cast %25 : vector<1x8x256xf32> to vector<8x256xf32>
    %27 = tpu.concatenate %20, %22, %24, %26 in 1 : vector<8x256xf32>, vector<8x256xf32>, vector<8x256xf32>, vector<8x256xf32> -> vector<8x1024xf32>
    %c0_14 = arith.constant 0 : index
    %c0_15 = arith.constant 0 : index
    %28 = vector.load %arg2[%c0_14, %c0_15] : memref<32x8xbf16, #tpu.memory_space<vmem>>, vector<32x8xbf16>
    %29 = arith.truncf %27 : vector<8x1024xf32> to vector<8x1024xbf16>
    %cst = arith.constant dense<0.000000e+00> : vector<32x1024xf32>
    %30 = tpu.matmul %28, %29, %cst {dimension_numbers = #tpu.dot_dimension_numbers<[1], [0], [0], [1], [0, 0, 1, 1], [], []>} : vector<32x8xbf16>, vector<8x1024xbf16>, vector<32x1024xf32> -> vector<32x1024xf32>
    %31 = vector.broadcast %1 : vector<32x1xf32> to vector<32x1024xf32>
    %32 = arith.mulf %30, %31 : vector<32x1024xf32>
    %33 = vector.broadcast %2 : vector<32x1xf32> to vector<32x1024xf32>
    %34 = arith.addf %32, %33 : vector<32x1024xf32>
    %cst_16 = arith.constant 0.000000e+00 : f32
    %35 = vector.broadcast %cst_16 : f32 to vector<32x1024xf32>
    %36 = arith.subf %35, %34 : vector<32x1024xf32>
    %37 = math.exp %36 : vector<32x1024xf32>
    %cst_17 = arith.constant 1.000000e+00 : f32
    %38 = vector.broadcast %cst_17 : f32 to vector<32x1024xf32>
    %39 = arith.addf %38, %37 : vector<32x1024xf32>
    %40 = tpu.reciprocal %39 {approx = true} : vector<32x1024xf32> -> vector<32x1024xf32>
    %41 = arith.mulf %34, %40 : vector<32x1024xf32>
    %42 = tpu.iota {dimensions = array<i32: 1>} : vector<1x1024xi32>
    %c15_i32 = arith.constant 15 : i32
    %43 = vector.broadcast %c15_i32 : i32 to vector<1x1024xi32>
    %44 = arith.andi %42, %43 : vector<1x1024xi32>
    %c255_i32 = arith.constant 255 : i32
    %45 = vector.broadcast %c255_i32 : i32 to vector<1x1024xi32>
    %46 = arith.andi %42, %45 : vector<1x1024xi32>
    %c1_i32 = arith.constant 1 : i32
    %47 = vector.broadcast %c1_i32 : i32 to vector<1x1024xi32>
    %48 = arith.cmpi sge, %44, %47 : vector<1x1024xi32>
    %c14_i32 = arith.constant 14 : i32
    %49 = vector.broadcast %c14_i32 : i32 to vector<1x1024xi32>
    %50 = arith.cmpi sle, %44, %49 : vector<1x1024xi32>
    %c16_i32 = arith.constant 16 : i32
    %51 = vector.broadcast %c16_i32 : i32 to vector<1x1024xi32>
    %52 = arith.cmpi sge, %46, %51 : vector<1x1024xi32>
    %c240_i32 = arith.constant 240 : i32
    %53 = vector.broadcast %c240_i32 : i32 to vector<1x1024xi32>
    %54 = arith.cmpi slt, %46, %53 : vector<1x1024xi32>
    %c1_i32_18 = arith.constant 1 : i32
    %55 = tpu.dynamic_rotate %41 by %c1_i32_18 dim 1 : vector<32x1024xf32>, i32 -> vector<32x1024xf32>
    %cst_19 = arith.constant 0.000000e+00 : f32
    %56 = vector.shape_cast %48 : vector<1x1024xi1> to vector<1x1024xi1>
    %57 = vector.broadcast %56 : vector<1x1024xi1> to vector<32x1024xi1>
    %58 = vector.broadcast %cst_19 : f32 to vector<32x1024xf32>
    %59 = arith.select %57, %55, %58 : vector<32x1024xi1>, vector<32x1024xf32>
    %c1023_i32 = arith.constant 1023 : i32
    %60 = tpu.dynamic_rotate %41 by %c1023_i32 dim 1 : vector<32x1024xf32>, i32 -> vector<32x1024xf32>
    %cst_20 = arith.constant 0.000000e+00 : f32
    %61 = vector.shape_cast %50 : vector<1x1024xi1> to vector<1x1024xi1>
    %62 = vector.broadcast %61 : vector<1x1024xi1> to vector<32x1024xi1>
    %63 = vector.broadcast %cst_20 : f32 to vector<32x1024xf32>
    %64 = arith.select %62, %60, %63 : vector<32x1024xi1>, vector<32x1024xf32>
    %65 = vector.broadcast %6 : vector<32x1xf32> to vector<32x1024xf32>
    %66 = arith.mulf %59, %65 : vector<32x1024xf32>
    %67 = vector.broadcast %7 : vector<32x1xf32> to vector<32x1024xf32>
    %68 = arith.mulf %41, %67 : vector<32x1024xf32>
    %69 = arith.addf %66, %68 : vector<32x1024xf32>
    %70 = vector.broadcast %8 : vector<32x1xf32> to vector<32x1024xf32>
    %71 = arith.mulf %64, %70 : vector<32x1024xf32>
    %72 = arith.addf %69, %71 : vector<32x1024xf32>
    %c16_i32_21 = arith.constant 16 : i32
    %73 = tpu.dynamic_rotate %72 by %c16_i32_21 dim 1 : vector<32x1024xf32>, i32 -> vector<32x1024xf32>
    %cst_22 = arith.constant 0.000000e+00 : f32
    %74 = vector.shape_cast %52 : vector<1x1024xi1> to vector<1x1024xi1>
    %75 = vector.broadcast %74 : vector<1x1024xi1> to vector<32x1024xi1>
    %76 = vector.broadcast %cst_22 : f32 to vector<32x1024xf32>
    %77 = arith.select %75, %73, %76 : vector<32x1024xi1>, vector<32x1024xf32>
    %78 = vector.broadcast %9 : vector<32x1xf32> to vector<32x1024xf32>
    %79 = arith.mulf %59, %78 : vector<32x1024xf32>
    %80 = vector.broadcast %10 : vector<32x1xf32> to vector<32x1024xf32>
    %81 = arith.mulf %41, %80 : vector<32x1024xf32>
    %82 = arith.addf %79, %81 : vector<32x1024xf32>
    %83 = vector.broadcast %11 : vector<32x1xf32> to vector<32x1024xf32>
    %84 = arith.mulf %64, %83 : vector<32x1024xf32>
    %85 = arith.addf %82, %84 : vector<32x1024xf32>
    %86 = arith.addf %77, %85 : vector<32x1024xf32>
    %87 = vector.broadcast %12 : vector<32x1xf32> to vector<32x1024xf32>
    %88 = arith.mulf %59, %87 : vector<32x1024xf32>
    %89 = vector.broadcast %13 : vector<32x1xf32> to vector<32x1024xf32>
    %90 = arith.mulf %41, %89 : vector<32x1024xf32>
    %91 = arith.addf %88, %90 : vector<32x1024xf32>
    %92 = vector.broadcast %14 : vector<32x1xf32> to vector<32x1024xf32>
    %93 = arith.mulf %64, %92 : vector<32x1024xf32>
    %94 = arith.addf %91, %93 : vector<32x1024xf32>
    %c1008_i32 = arith.constant 1008 : i32
    %95 = tpu.dynamic_rotate %94 by %c1008_i32 dim 1 : vector<32x1024xf32>, i32 -> vector<32x1024xf32>
    %cst_23 = arith.constant 0.000000e+00 : f32
    %96 = vector.shape_cast %54 : vector<1x1024xi1> to vector<1x1024xi1>
    %97 = vector.broadcast %96 : vector<1x1024xi1> to vector<32x1024xi1>
    %98 = vector.broadcast %cst_23 : f32 to vector<32x1024xf32>
    %99 = arith.select %97, %95, %98 : vector<32x1024xi1>, vector<32x1024xf32>
    %100 = arith.addf %86, %99 : vector<32x1024xf32>
    %101 = vector.broadcast %3 : vector<32x1xf32> to vector<32x1024xf32>
    %102 = arith.mulf %100, %101 : vector<32x1024xf32>
    %103 = vector.broadcast %4 : vector<32x1xf32> to vector<32x1024xf32>
    %104 = arith.addf %102, %103 : vector<32x1024xf32>
    %cst_24 = arith.constant 0.000000e+00 : f32
    %105 = vector.broadcast %cst_24 : f32 to vector<32x1024xf32>
    %106 = arith.subf %105, %104 : vector<32x1024xf32>
    %107 = math.exp %106 : vector<32x1024xf32>
    %cst_25 = arith.constant 1.000000e+00 : f32
    %108 = vector.broadcast %cst_25 : f32 to vector<32x1024xf32>
    %109 = arith.addf %108, %107 : vector<32x1024xf32>
    %110 = tpu.reciprocal %109 {approx = true} : vector<32x1024xf32> -> vector<32x1024xf32>
    %111 = arith.mulf %104, %110 : vector<32x1024xf32>
    %112 = vector.extract_strided_slice %111 {offsets = [0, 0], sizes = [32, 256], strides = [1, 1]} : vector<32x1024xf32> to vector<32x256xf32>
    %cst_26 = arith.constant dense<0.000000e+00> : vector<32xf32>
    %113 = vector.multi_reduction <add>, %112, %cst_26 [1] : vector<32x256xf32> to vector<32xf32>
    %114 = vector.shape_cast %113 : vector<32xf32> to vector<32x1xf32>
    %cst_27 = arith.constant 2.560000e+02 : f32
    %115 = vector.broadcast %cst_27 : f32 to vector<32x1xf32>
    %116 = arith.divf %114, %115 : vector<32x1xf32>
    %117 = vector.extract_strided_slice %15 {offsets = [0, 0], sizes = [32, 1], strides = [1, 1]} : vector<32x2xf32> to vector<32x1xf32>
    %118 = arith.mulf %117, %116 : vector<32x1xf32>
    %cst_28 = arith.constant dense<0.000000e+00> : vector<1xf32>
    %119 = vector.multi_reduction <add>, %118, %cst_28 [0] : vector<32x1xf32> to vector<1xf32>
    %120 = vector.shape_cast %119 : vector<1xf32> to vector<1x1xf32>
    %121 = vector.extract_strided_slice %0 {offsets = [0, 18], sizes = [1, 1], strides = [1, 1]} : vector<32x19xf32> to vector<1x1xf32>
    %122 = arith.addf %120, %121 : vector<1x1xf32>
    %cst_29 = arith.constant 0.000000e+00 : f32
    %123 = vector.broadcast %cst_29 : f32 to vector<1x1xf32>
    %124 = arith.subf %123, %122 : vector<1x1xf32>
    %125 = math.exp %124 : vector<1x1xf32>
    %cst_30 = arith.constant 1.000000e+00 : f32
    %126 = vector.broadcast %cst_30 : f32 to vector<1x1xf32>
    %127 = arith.addf %126, %125 : vector<1x1xf32>
    %128 = tpu.reciprocal %127 {approx = true} : vector<1x1xf32> -> vector<1x1xf32>
    %129 = arith.mulf %122, %128 : vector<1x1xf32>
    %130 = vector.extract_strided_slice %16 {offsets = [0, 0], sizes = [32, 1], strides = [1, 1]} : vector<32x2xf32> to vector<32x1xf32>
    %131 = vector.broadcast %129 : vector<1x1xf32> to vector<32x1xf32>
    %132 = arith.mulf %130, %131 : vector<32x1xf32>
    %133 = arith.addf %5, %132 : vector<32x1xf32>
    %134 = vector.extract_strided_slice %15 {offsets = [0, 1], sizes = [32, 1], strides = [1, 1]} : vector<32x2xf32> to vector<32x1xf32>
    %135 = arith.mulf %134, %116 : vector<32x1xf32>
    %cst_31 = arith.constant dense<0.000000e+00> : vector<1xf32>
    %136 = vector.multi_reduction <add>, %135, %cst_31 [0] : vector<32x1xf32> to vector<1xf32>
    %137 = vector.shape_cast %136 : vector<1xf32> to vector<1x1xf32>
    %138 = vector.extract_strided_slice %0 {offsets = [1, 18], sizes = [1, 1], strides = [1, 1]} : vector<32x19xf32> to vector<1x1xf32>
    %139 = arith.addf %137, %138 : vector<1x1xf32>
    %cst_32 = arith.constant 0.000000e+00 : f32
    %140 = vector.broadcast %cst_32 : f32 to vector<1x1xf32>
    %141 = arith.subf %140, %139 : vector<1x1xf32>
    %142 = math.exp %141 : vector<1x1xf32>
    %cst_33 = arith.constant 1.000000e+00 : f32
    %143 = vector.broadcast %cst_33 : f32 to vector<1x1xf32>
    %144 = arith.addf %143, %142 : vector<1x1xf32>
    %145 = tpu.reciprocal %144 {approx = true} : vector<1x1xf32> -> vector<1x1xf32>
    %146 = arith.mulf %139, %145 : vector<1x1xf32>
    %147 = vector.extract_strided_slice %16 {offsets = [0, 1], sizes = [32, 1], strides = [1, 1]} : vector<32x2xf32> to vector<32x1xf32>
    %148 = vector.broadcast %146 : vector<1x1xf32> to vector<32x1xf32>
    %149 = arith.mulf %147, %148 : vector<32x1xf32>
    %150 = arith.addf %133, %149 : vector<32x1xf32>
    %cst_34 = arith.constant 0.000000e+00 : f32
    %151 = vector.broadcast %cst_34 : f32 to vector<32x1xf32>
    %152 = arith.subf %151, %150 : vector<32x1xf32>
    %153 = math.exp %152 : vector<32x1xf32>
    %cst_35 = arith.constant 1.000000e+00 : f32
    %154 = vector.broadcast %cst_35 : f32 to vector<32x1xf32>
    %155 = arith.addf %154, %153 : vector<32x1xf32>
    %156 = tpu.reciprocal %155 {approx = true} : vector<32x1xf32> -> vector<32x1xf32>
    %157 = vector.broadcast %156 : vector<32x1xf32> to vector<32x256xf32>
    %158 = arith.mulf %112, %157 : vector<32x256xf32>
    %159 = vector.extract_strided_slice %111 {offsets = [0, 256], sizes = [32, 256], strides = [1, 1]} : vector<32x1024xf32> to vector<32x256xf32>
    %cst_36 = arith.constant dense<0.000000e+00> : vector<32xf32>
    %160 = vector.multi_reduction <add>, %159, %cst_36 [1] : vector<32x256xf32> to vector<32xf32>
    %161 = vector.shape_cast %160 : vector<32xf32> to vector<32x1xf32>
    %cst_37 = arith.constant 2.560000e+02 : f32
    %162 = vector.broadcast %cst_37 : f32 to vector<32x1xf32>
    %163 = arith.divf %161, %162 : vector<32x1xf32>
    %164 = vector.extract_strided_slice %15 {offsets = [0, 0], sizes = [32, 1], strides = [1, 1]} : vector<32x2xf32> to vector<32x1xf32>
    %165 = arith.mulf %164, %163 : vector<32x1xf32>
    %cst_38 = arith.constant dense<0.000000e+00> : vector<1xf32>
    %166 = vector.multi_reduction <add>, %165, %cst_38 [0] : vector<32x1xf32> to vector<1xf32>
    %167 = vector.shape_cast %166 : vector<1xf32> to vector<1x1xf32>
    %168 = vector.extract_strided_slice %0 {offsets = [0, 18], sizes = [1, 1], strides = [1, 1]} : vector<32x19xf32> to vector<1x1xf32>
    %169 = arith.addf %167, %168 : vector<1x1xf32>
    %cst_39 = arith.constant 0.000000e+00 : f32
    %170 = vector.broadcast %cst_39 : f32 to vector<1x1xf32>
    %171 = arith.subf %170, %169 : vector<1x1xf32>
    %172 = math.exp %171 : vector<1x1xf32>
    %cst_40 = arith.constant 1.000000e+00 : f32
    %173 = vector.broadcast %cst_40 : f32 to vector<1x1xf32>
    %174 = arith.addf %173, %172 : vector<1x1xf32>
    %175 = tpu.reciprocal %174 {approx = true} : vector<1x1xf32> -> vector<1x1xf32>
    %176 = arith.mulf %169, %175 : vector<1x1xf32>
    %177 = vector.extract_strided_slice %16 {offsets = [0, 0], sizes = [32, 1], strides = [1, 1]} : vector<32x2xf32> to vector<32x1xf32>
    %178 = vector.broadcast %176 : vector<1x1xf32> to vector<32x1xf32>
    %179 = arith.mulf %177, %178 : vector<32x1xf32>
    %180 = arith.addf %5, %179 : vector<32x1xf32>
    %181 = vector.extract_strided_slice %15 {offsets = [0, 1], sizes = [32, 1], strides = [1, 1]} : vector<32x2xf32> to vector<32x1xf32>
    %182 = arith.mulf %181, %163 : vector<32x1xf32>
    %cst_41 = arith.constant dense<0.000000e+00> : vector<1xf32>
    %183 = vector.multi_reduction <add>, %182, %cst_41 [0] : vector<32x1xf32> to vector<1xf32>
    %184 = vector.shape_cast %183 : vector<1xf32> to vector<1x1xf32>
    %185 = vector.extract_strided_slice %0 {offsets = [1, 18], sizes = [1, 1], strides = [1, 1]} : vector<32x19xf32> to vector<1x1xf32>
    %186 = arith.addf %184, %185 : vector<1x1xf32>
    %cst_42 = arith.constant 0.000000e+00 : f32
    %187 = vector.broadcast %cst_42 : f32 to vector<1x1xf32>
    %188 = arith.subf %187, %186 : vector<1x1xf32>
    %189 = math.exp %188 : vector<1x1xf32>
    %cst_43 = arith.constant 1.000000e+00 : f32
    %190 = vector.broadcast %cst_43 : f32 to vector<1x1xf32>
    %191 = arith.addf %190, %189 : vector<1x1xf32>
    %192 = tpu.reciprocal %191 {approx = true} : vector<1x1xf32> -> vector<1x1xf32>
    %193 = arith.mulf %186, %192 : vector<1x1xf32>
    %194 = vector.extract_strided_slice %16 {offsets = [0, 1], sizes = [32, 1], strides = [1, 1]} : vector<32x2xf32> to vector<32x1xf32>
    %195 = vector.broadcast %193 : vector<1x1xf32> to vector<32x1xf32>
    %196 = arith.mulf %194, %195 : vector<32x1xf32>
    %197 = arith.addf %180, %196 : vector<32x1xf32>
    %cst_44 = arith.constant 0.000000e+00 : f32
    %198 = vector.broadcast %cst_44 : f32 to vector<32x1xf32>
    %199 = arith.subf %198, %197 : vector<32x1xf32>
    %200 = math.exp %199 : vector<32x1xf32>
    %cst_45 = arith.constant 1.000000e+00 : f32
    %201 = vector.broadcast %cst_45 : f32 to vector<32x1xf32>
    %202 = arith.addf %201, %200 : vector<32x1xf32>
    %203 = tpu.reciprocal %202 {approx = true} : vector<32x1xf32> -> vector<32x1xf32>
    %204 = vector.broadcast %203 : vector<32x1xf32> to vector<32x256xf32>
    %205 = arith.mulf %159, %204 : vector<32x256xf32>
    %206 = vector.extract_strided_slice %111 {offsets = [0, 512], sizes = [32, 256], strides = [1, 1]} : vector<32x1024xf32> to vector<32x256xf32>
    %cst_46 = arith.constant dense<0.000000e+00> : vector<32xf32>
    %207 = vector.multi_reduction <add>, %206, %cst_46 [1] : vector<32x256xf32> to vector<32xf32>
    %208 = vector.shape_cast %207 : vector<32xf32> to vector<32x1xf32>
    %cst_47 = arith.constant 2.560000e+02 : f32
    %209 = vector.broadcast %cst_47 : f32 to vector<32x1xf32>
    %210 = arith.divf %208, %209 : vector<32x1xf32>
    %211 = vector.extract_strided_slice %15 {offsets = [0, 0], sizes = [32, 1], strides = [1, 1]} : vector<32x2xf32> to vector<32x1xf32>
    %212 = arith.mulf %211, %210 : vector<32x1xf32>
    %cst_48 = arith.constant dense<0.000000e+00> : vector<1xf32>
    %213 = vector.multi_reduction <add>, %212, %cst_48 [0] : vector<32x1xf32> to vector<1xf32>
    %214 = vector.shape_cast %213 : vector<1xf32> to vector<1x1xf32>
    %215 = vector.extract_strided_slice %0 {offsets = [0, 18], sizes = [1, 1], strides = [1, 1]} : vector<32x19xf32> to vector<1x1xf32>
    %216 = arith.addf %214, %215 : vector<1x1xf32>
    %cst_49 = arith.constant 0.000000e+00 : f32
    %217 = vector.broadcast %cst_49 : f32 to vector<1x1xf32>
    %218 = arith.subf %217, %216 : vector<1x1xf32>
    %219 = math.exp %218 : vector<1x1xf32>
    %cst_50 = arith.constant 1.000000e+00 : f32
    %220 = vector.broadcast %cst_50 : f32 to vector<1x1xf32>
    %221 = arith.addf %220, %219 : vector<1x1xf32>
    %222 = tpu.reciprocal %221 {approx = true} : vector<1x1xf32> -> vector<1x1xf32>
    %223 = arith.mulf %216, %222 : vector<1x1xf32>
    %224 = vector.extract_strided_slice %16 {offsets = [0, 0], sizes = [32, 1], strides = [1, 1]} : vector<32x2xf32> to vector<32x1xf32>
    %225 = vector.broadcast %223 : vector<1x1xf32> to vector<32x1xf32>
    %226 = arith.mulf %224, %225 : vector<32x1xf32>
    %227 = arith.addf %5, %226 : vector<32x1xf32>
    %228 = vector.extract_strided_slice %15 {offsets = [0, 1], sizes = [32, 1], strides = [1, 1]} : vector<32x2xf32> to vector<32x1xf32>
    %229 = arith.mulf %228, %210 : vector<32x1xf32>
    %cst_51 = arith.constant dense<0.000000e+00> : vector<1xf32>
    %230 = vector.multi_reduction <add>, %229, %cst_51 [0] : vector<32x1xf32> to vector<1xf32>
    %231 = vector.shape_cast %230 : vector<1xf32> to vector<1x1xf32>
    %232 = vector.extract_strided_slice %0 {offsets = [1, 18], sizes = [1, 1], strides = [1, 1]} : vector<32x19xf32> to vector<1x1xf32>
    %233 = arith.addf %231, %232 : vector<1x1xf32>
    %cst_52 = arith.constant 0.000000e+00 : f32
    %234 = vector.broadcast %cst_52 : f32 to vector<1x1xf32>
    %235 = arith.subf %234, %233 : vector<1x1xf32>
    %236 = math.exp %235 : vector<1x1xf32>
    %cst_53 = arith.constant 1.000000e+00 : f32
    %237 = vector.broadcast %cst_53 : f32 to vector<1x1xf32>
    %238 = arith.addf %237, %236 : vector<1x1xf32>
    %239 = tpu.reciprocal %238 {approx = true} : vector<1x1xf32> -> vector<1x1xf32>
    %240 = arith.mulf %233, %239 : vector<1x1xf32>
    %241 = vector.extract_strided_slice %16 {offsets = [0, 1], sizes = [32, 1], strides = [1, 1]} : vector<32x2xf32> to vector<32x1xf32>
    %242 = vector.broadcast %240 : vector<1x1xf32> to vector<32x1xf32>
    %243 = arith.mulf %241, %242 : vector<32x1xf32>
    %244 = arith.addf %227, %243 : vector<32x1xf32>
    %cst_54 = arith.constant 0.000000e+00 : f32
    %245 = vector.broadcast %cst_54 : f32 to vector<32x1xf32>
    %246 = arith.subf %245, %244 : vector<32x1xf32>
    %247 = math.exp %246 : vector<32x1xf32>
    %cst_55 = arith.constant 1.000000e+00 : f32
    %248 = vector.broadcast %cst_55 : f32 to vector<32x1xf32>
    %249 = arith.addf %248, %247 : vector<32x1xf32>
    %250 = tpu.reciprocal %249 {approx = true} : vector<32x1xf32> -> vector<32x1xf32>
    %251 = vector.broadcast %250 : vector<32x1xf32> to vector<32x256xf32>
    %252 = arith.mulf %206, %251 : vector<32x256xf32>
    %253 = vector.extract_strided_slice %111 {offsets = [0, 768], sizes = [32, 256], strides = [1, 1]} : vector<32x1024xf32> to vector<32x256xf32>
    %cst_56 = arith.constant dense<0.000000e+00> : vector<32xf32>
    %254 = vector.multi_reduction <add>, %253, %cst_56 [1] : vector<32x256xf32> to vector<32xf32>
    %255 = vector.shape_cast %254 : vector<32xf32> to vector<32x1xf32>
    %cst_57 = arith.constant 2.560000e+02 : f32
    %256 = vector.broadcast %cst_57 : f32 to vector<32x1xf32>
    %257 = arith.divf %255, %256 : vector<32x1xf32>
    %258 = vector.extract_strided_slice %15 {offsets = [0, 0], sizes = [32, 1], strides = [1, 1]} : vector<32x2xf32> to vector<32x1xf32>
    %259 = arith.mulf %258, %257 : vector<32x1xf32>
    %cst_58 = arith.constant dense<0.000000e+00> : vector<1xf32>
    %260 = vector.multi_reduction <add>, %259, %cst_58 [0] : vector<32x1xf32> to vector<1xf32>
    %261 = vector.shape_cast %260 : vector<1xf32> to vector<1x1xf32>
    %262 = vector.extract_strided_slice %0 {offsets = [0, 18], sizes = [1, 1], strides = [1, 1]} : vector<32x19xf32> to vector<1x1xf32>
    %263 = arith.addf %261, %262 : vector<1x1xf32>
    %cst_59 = arith.constant 0.000000e+00 : f32
    %264 = vector.broadcast %cst_59 : f32 to vector<1x1xf32>
    %265 = arith.subf %264, %263 : vector<1x1xf32>
    %266 = math.exp %265 : vector<1x1xf32>
    %cst_60 = arith.constant 1.000000e+00 : f32
    %267 = vector.broadcast %cst_60 : f32 to vector<1x1xf32>
    %268 = arith.addf %267, %266 : vector<1x1xf32>
    %269 = tpu.reciprocal %268 {approx = true} : vector<1x1xf32> -> vector<1x1xf32>
    %270 = arith.mulf %263, %269 : vector<1x1xf32>
    %271 = vector.extract_strided_slice %16 {offsets = [0, 0], sizes = [32, 1], strides = [1, 1]} : vector<32x2xf32> to vector<32x1xf32>
    %272 = vector.broadcast %270 : vector<1x1xf32> to vector<32x1xf32>
    %273 = arith.mulf %271, %272 : vector<32x1xf32>
    %274 = arith.addf %5, %273 : vector<32x1xf32>
    %275 = vector.extract_strided_slice %15 {offsets = [0, 1], sizes = [32, 1], strides = [1, 1]} : vector<32x2xf32> to vector<32x1xf32>
    %276 = arith.mulf %275, %257 : vector<32x1xf32>
    %cst_61 = arith.constant dense<0.000000e+00> : vector<1xf32>
    %277 = vector.multi_reduction <add>, %276, %cst_61 [0] : vector<32x1xf32> to vector<1xf32>
    %278 = vector.shape_cast %277 : vector<1xf32> to vector<1x1xf32>
    %279 = vector.extract_strided_slice %0 {offsets = [1, 18], sizes = [1, 1], strides = [1, 1]} : vector<32x19xf32> to vector<1x1xf32>
    %280 = arith.addf %278, %279 : vector<1x1xf32>
    %cst_62 = arith.constant 0.000000e+00 : f32
    %281 = vector.broadcast %cst_62 : f32 to vector<1x1xf32>
    %282 = arith.subf %281, %280 : vector<1x1xf32>
    %283 = math.exp %282 : vector<1x1xf32>
    %cst_63 = arith.constant 1.000000e+00 : f32
    %284 = vector.broadcast %cst_63 : f32 to vector<1x1xf32>
    %285 = arith.addf %284, %283 : vector<1x1xf32>
    %286 = tpu.reciprocal %285 {approx = true} : vector<1x1xf32> -> vector<1x1xf32>
    %287 = arith.mulf %280, %286 : vector<1x1xf32>
    %288 = vector.extract_strided_slice %16 {offsets = [0, 1], sizes = [32, 1], strides = [1, 1]} : vector<32x2xf32> to vector<32x1xf32>
    %289 = vector.broadcast %287 : vector<1x1xf32> to vector<32x1xf32>
    %290 = arith.mulf %288, %289 : vector<32x1xf32>
    %291 = arith.addf %274, %290 : vector<32x1xf32>
    %cst_64 = arith.constant 0.000000e+00 : f32
    %292 = vector.broadcast %cst_64 : f32 to vector<32x1xf32>
    %293 = arith.subf %292, %291 : vector<32x1xf32>
    %294 = math.exp %293 : vector<32x1xf32>
    %cst_65 = arith.constant 1.000000e+00 : f32
    %295 = vector.broadcast %cst_65 : f32 to vector<32x1xf32>
    %296 = arith.addf %295, %294 : vector<32x1xf32>
    %297 = tpu.reciprocal %296 {approx = true} : vector<32x1xf32> -> vector<32x1xf32>
    %298 = vector.broadcast %297 : vector<32x1xf32> to vector<32x256xf32>
    %299 = arith.mulf %253, %298 : vector<32x256xf32>
    %300 = tpu.concatenate %158, %205, %252, %299 in 1 : vector<32x256xf32>, vector<32x256xf32>, vector<32x256xf32>, vector<32x256xf32> -> vector<32x1024xf32>
    %c0_66 = arith.constant 0 : index
    %c0_67 = arith.constant 0 : index
    %301 = vector.load %arg4[%c0_66, %c0_67] : memref<8x32xbf16, #tpu.memory_space<vmem>>, vector<8x32xbf16>
    %302 = arith.truncf %300 : vector<32x1024xf32> to vector<32x1024xbf16>
    %cst_68 = arith.constant dense<0.000000e+00> : vector<8x1024xf32>
    %303 = tpu.matmul %301, %302, %cst_68 {dimension_numbers = #tpu.dot_dimension_numbers<[1], [0], [0], [1], [0, 0, 1, 1], [], []>} : vector<8x32xbf16>, vector<32x1024xbf16>, vector<8x1024xf32> -> vector<8x1024xf32>
    %304 = vector.broadcast %17 : vector<8x1xf32> to vector<8x1024xf32>
    %305 = arith.mulf %303, %304 : vector<8x1024xf32>
    %306 = vector.broadcast %18 : vector<8x1xf32> to vector<8x1024xf32>
    %307 = arith.addf %305, %306 : vector<8x1024xf32>
    %308 = vector.extract_strided_slice %307 {offsets = [0, 0], sizes = [8, 256], strides = [1, 1]} : vector<8x1024xf32> to vector<8x256xf32>
    %c0_69 = arith.constant 0 : index
    %c0_70 = arith.constant 0 : index
    %c0_71 = arith.constant 0 : index
    %309 = vector.load %arg1[%c0_69, %c0_70, %c0_71] : memref<4x8x256xf32, #tpu.memory_space<vmem>>, vector<1x8x256xf32>
    %310 = vector.shape_cast %309 : vector<1x8x256xf32> to vector<8x256xf32>
    %311 = arith.addf %308, %310 : vector<8x256xf32>
    %c0_72 = arith.constant 0 : index
    %c0_73 = arith.constant 0 : index
    %c0_74 = arith.constant 0 : index
    %312 = vector.load %arg6[%c0_72, %c0_73, %c0_74] : memref<4x8x256xf32, #tpu.memory_space<vmem>>, vector<1x8x256xf32>
    %313 = vector.shape_cast %312 : vector<1x8x256xf32> to vector<8x256xf32>
    %314 = vector.shape_cast %311 : vector<8x256xf32> to vector<1x8x256xf32>
    tpu.vector_store %arg6[%c0_72, %c0_73, %c0_74], %314 {strides = array<i32>} : memref<4x8x256xf32, #tpu.memory_space<vmem>>, vector<1x8x256xf32>,
    %315 = vector.extract_strided_slice %307 {offsets = [0, 256], sizes = [8, 256], strides = [1, 1]} : vector<8x1024xf32> to vector<8x256xf32>
    %c1_75 = arith.constant 1 : index
    %c0_76 = arith.constant 0 : index
    %c0_77 = arith.constant 0 : index
    %316 = vector.load %arg1[%c1_75, %c0_76, %c0_77] : memref<4x8x256xf32, #tpu.memory_space<vmem>>, vector<1x8x256xf32>
    %317 = vector.shape_cast %316 : vector<1x8x256xf32> to vector<8x256xf32>
    %318 = arith.addf %315, %317 : vector<8x256xf32>
    %c1_78 = arith.constant 1 : index
    %c0_79 = arith.constant 0 : index
    %c0_80 = arith.constant 0 : index
    %319 = vector.load %arg6[%c1_78, %c0_79, %c0_80] : memref<4x8x256xf32, #tpu.memory_space<vmem>>, vector<1x8x256xf32>
    %320 = vector.shape_cast %319 : vector<1x8x256xf32> to vector<8x256xf32>
    %321 = vector.shape_cast %318 : vector<8x256xf32> to vector<1x8x256xf32>
    tpu.vector_store %arg6[%c1_78, %c0_79, %c0_80], %321 {strides = array<i32>} : memref<4x8x256xf32, #tpu.memory_space<vmem>>, vector<1x8x256xf32>,
    %322 = vector.extract_strided_slice %307 {offsets = [0, 512], sizes = [8, 256], strides = [1, 1]} : vector<8x1024xf32> to vector<8x256xf32>
    %c2_81 = arith.constant 2 : index
    %c0_82 = arith.constant 0 : index
    %c0_83 = arith.constant 0 : index
    %323 = vector.load %arg1[%c2_81, %c0_82, %c0_83] : memref<4x8x256xf32, #tpu.memory_space<vmem>>, vector<1x8x256xf32>
    %324 = vector.shape_cast %323 : vector<1x8x256xf32> to vector<8x256xf32>
    %325 = arith.addf %322, %324 : vector<8x256xf32>
    %c2_84 = arith.constant 2 : index
    %c0_85 = arith.constant 0 : index
    %c0_86 = arith.constant 0 : index
    %326 = vector.load %arg6[%c2_84, %c0_85, %c0_86] : memref<4x8x256xf32, #tpu.memory_space<vmem>>, vector<1x8x256xf32>
    %327 = vector.shape_cast %326 : vector<1x8x256xf32> to vector<8x256xf32>
    %328 = vector.shape_cast %325 : vector<8x256xf32> to vector<1x8x256xf32>
    tpu.vector_store %arg6[%c2_84, %c0_85, %c0_86], %328 {strides = array<i32>} : memref<4x8x256xf32, #tpu.memory_space<vmem>>, vector<1x8x256xf32>,
    %329 = vector.extract_strided_slice %307 {offsets = [0, 768], sizes = [8, 256], strides = [1, 1]} : vector<8x1024xf32> to vector<8x256xf32>
    %c3_87 = arith.constant 3 : index
    %c0_88 = arith.constant 0 : index
    %c0_89 = arith.constant 0 : index
    %330 = vector.load %arg1[%c3_87, %c0_88, %c0_89] : memref<4x8x256xf32, #tpu.memory_space<vmem>>, vector<1x8x256xf32>
    %331 = vector.shape_cast %330 : vector<1x8x256xf32> to vector<8x256xf32>
    %332 = arith.addf %329, %331 : vector<8x256xf32>
    %c3_90 = arith.constant 3 : index
    %c0_91 = arith.constant 0 : index
    %c0_92 = arith.constant 0 : index
    %333 = vector.load %arg6[%c3_90, %c0_91, %c0_92] : memref<4x8x256xf32, #tpu.memory_space<vmem>>, vector<1x8x256xf32>
    %334 = vector.shape_cast %333 : vector<1x8x256xf32> to vector<8x256xf32>
    %335 = vector.shape_cast %332 : vector<8x256xf32> to vector<1x8x256xf32>
    tpu.vector_store %arg6[%c3_90, %c0_91, %c0_92], %335 {strides = array<i32>} : memref<4x8x256xf32, #tpu.memory_space<vmem>>, vector<1x8x256xf32>,
    return
  }
  func.func @transform_0(%arg0: i32) -> (i32, i32, i32) {
    %c0_i32 = arith.constant 0 : i32
    %c0_i32_0 = arith.constant 0 : i32
    %c0_i32_1 = arith.constant 0 : i32
    return %arg0, %c0_i32, %c0_i32_0 : i32, i32, i32
  }
  func.func @transform_1(%arg0: i32) -> (i32, i32) {
    %c0_i32 = arith.constant 0 : i32
    %c0_i32_0 = arith.constant 0 : i32
    %c0_i32_1 = arith.constant 0 : i32
    return %c0_i32, %c0_i32_0 : i32, i32
  }
  func.func @transform_2(%arg0: i32) -> (i32, i32) {
    %c0_i32 = arith.constant 0 : i32
    %c0_i32_0 = arith.constant 0 : i32
    %c0_i32_1 = arith.constant 0 : i32
    return %c0_i32, %c0_i32_0 : i32, i32
  }
  func.func @transform_3(%arg0: i32) -> (i32, i32) {
    %c0_i32 = arith.constant 0 : i32
    %c0_i32_0 = arith.constant 0 : i32
    %c0_i32_1 = arith.constant 0 : i32
    return %c0_i32, %c0_i32_0 : i32, i32
  }
  func.func @transform_4(%arg0: i32) -> (i32, i32) {
    %c0_i32 = arith.constant 0 : i32
    %c0_i32_0 = arith.constant 0 : i32
    %c0_i32_1 = arith.constant 0 : i32
    return %c0_i32, %c0_i32_0 : i32, i32
  }
  func.func @transform_5(%arg0: i32) -> (i32, i32, i32) {
    %c0_i32 = arith.constant 0 : i32
    %c0_i32_0 = arith.constant 0 : i32
    %c0_i32_1 = arith.constant 0 : i32
    return %arg0, %c0_i32, %c0_i32_0 : i32, i32, i32
  }
}

</mosaic_0001>

<llo_original>
// kernel: tpu_custom_call.1
$region0: #{tpu_custom_call.1}
  #allocation0 [shape = 'u32[]', space=smem, size = 0x4, offset = 0x4, fixed_abs, tag = 'smem constant byte address 0x4 - core index']
  #allocation1 [shape = 'u32[144,128]{1,0:T(1,128)}', space=vmem, size = 0x12000, scoped, tag = 'internal scratch']
  %s0 = inlined_call_operand.hbm [shape: f32[8,8,256], index: 0, kind: input, shape index: {}]
  %s1 = inlined_call_operand.vmem [shape: bf16[32,8], index: 1, kind: input, shape index: {}]
  %s2 = inlined_call_operand.vmem [shape: f32[32,19], index: 2, kind: input, shape index: {}]
  %s3 = inlined_call_operand.vmem [shape: bf16[8,32], index: 3, kind: input, shape index: {}]
  %s4 = inlined_call_operand.vmem [shape: f32[8,2], index: 4, kind: input, shape index: {}]
  %s5 = inlined_call_operand.hbm [shape: f32[8,8,256], index: 5, kind: output, shape index: {}]
  %s6 = sld [smem:[#allocation0]]
  $region57: #{tpu_custom_call.1} parent=0
    _
  %s8 = ssub.s32 1, %s6
  %s9 = scalar_select 0, %s8, %s6
  $region1: #{tpu_custom_call.1} parent=0
    #allocation2 [shape = 'u8[65536]{0}', space=vmem, size = 0x10000, scoped, tag = 'input window, operand 0']
    #allocation3 [shape = 's32[2]{0}', space=sflag, size = 0x8, scoped, tag = 'scoped memory for tpu_custom_call.1']
    #allocation4 [shape = 's32[2]{0}', space=sflag, size = 0x8, scoped, tag = 'scoped memory for tpu_custom_call.1']
    #allocation5 [shape = 'u8[65536]{0}', space=vmem, size = 0x10000, scoped, tag = 'output window, operand 0']
    %10 = vsyncpa [#allocation3], 0
    %s11 = scalar_lea.sflag [#allocation3], 1
    %12 = vsyncpa %s11, 0
    %13 = vsyncpa [#allocation4], 0
    %s14 = scalar_lea.sflag [#allocation4], 1
    %15 = vsyncpa %s14, 0
    loop: start=0, step=1, limit=4
    $region2: #{tpu_custom_call.1} parent=1 // loop_pre_header
      _
    $region3: #{tpu_custom_call.1} parent=1 // loop_header
      %s17 = sphi 0, %s21
      %p18 = scmp.ge.s32.totalorder %s17, 4
      %s27 = sphi 0, %s29
      %s30 = sphi 0, %s27
      %s31 = sphi 0, %s30
      %s47 = sphi 0, %s31
      %s51 = sphi 0, %s51
      %s53 = sphi 0, %s51
      %s54 = sphi 0, %s53
      %s68 = sphi 0, %s54
      %s72 = sphi 0, %s72
      %s74 = sphi 0, %s72
      %s75 = sphi 0, %s74
      %s89 = sphi 0, %s75
      %s93 = sphi 0, %s93
      %s95 = sphi 0, %s93
      %s96 = sphi 0, %s95
      %s110 = sphi 0, %s96
      %s114 = sphi 0, %s114
      %s116 = sphi 0, %s114
      %s117 = sphi 0, %s116
      %s131 = sphi 0, %s117
      %s137 = sphi 0, %s139
      %s140 = sphi 0, %s137
      %s141 = sphi 0, %s140
      %s157 = sphi 0, %s141
    $region4: #{tpu_custom_call.1} parent=1 // loop_header_branch
      %20 = sbr.rel (%p18) target = $region8
    $region5: #{tpu_custom_call.1} parent=1 // loop_body
      %s22 = ssub.s32 %s17, 1
      %s23 = ssub.s32 %s17, 2
      %s24 = sadd.s32 %s17, 1
      %s25 = ssub.s32 %s17, %s24
      %p26 = scmp.eq.s32.totalorder %s25, 0
      %s28 = sadd.s32 %s27, 1
      %s29 = scalar_select %p26, %s27, %s28
      %p32 = pneg %p26
      %p33 = scmp.eq.s32.totalorder %s17, 1
      %p34 = por %p32, %p33
      %p35 = scmp.ne.s32.totalorder %s27, %s30
      %p36 = scmp.eq.s32.totalorder %s17, 0
      %p37 = por %p35, %p36
      %p38 = scmp.ne.s32.totalorder %s27, %s30
      %p39 = scmp.eq.s32.totalorder %s22, 1
      %p40 = por %p38, %p39
      %p41 = scmp.ne.s32.totalorder %s30, %s31
      %p42 = scmp.eq.s32.totalorder %s22, 0
      %p43 = por %p41, %p42
      %p44 = scmp.ne.s32.totalorder %s30, %s31
      %p45 = scmp.eq.s32.totalorder %s23, 1
      %p46 = por %p44, %p45
      %p48 = scmp.ne.s32.totalorder %s31, %s47
      %p49 = scmp.eq.s32.totalorder %s23, 0
      %p50 = por %p48, %p49
      %s52 = sadd.s32 %s51, 1
      %p55 = scmp.eq.s32.totalorder %s17, 1
      %p56 = scmp.ne.s32.totalorder %s51, %s53
      %p57 = scmp.eq.s32.totalorder %s17, 0
      %p58 = por %p56, %p57
      %p59 = scmp.ne.s32.totalorder %s51, %s53
      %p60 = scmp.eq.s32.totalorder %s22, 1
      %p61 = por %p59, %p60
      %p62 = scmp.ne.s32.totalorder %s53, %s54
      %p63 = scmp.eq.s32.totalorder %s22, 0
      %p64 = por %p62, %p63
      %p65 = scmp.ne.s32.totalorder %s53, %s54
      %p66 = scmp.eq.s32.totalorder %s23, 1
      %p67 = por %p65, %p66
      %p69 = scmp.ne.s32.totalorder %s54, %s68
      %p70 = scmp.eq.s32.totalorder %s23, 0
      %p71 = por %p69, %p70
      %s73 = sadd.s32 %s72, 1
      %p76 = scmp.eq.s32.totalorder %s17, 1
      %p77 = scmp.ne.s32.totalorder %s72, %s74
      %p78 = scmp.eq.s32.totalorder %s17, 0
      %p79 = por %p77, %p78
      %p80 = scmp.ne.s32.totalorder %s72, %s74
      %p81 = scmp.eq.s32.totalorder %s22, 1
      %p82 = por %p80, %p81
      %p83 = scmp.ne.s32.totalorder %s74, %s75
      %p84 = scmp.eq.s32.totalorder %s22, 0
      %p85 = por %p83, %p84
      %p86 = scmp.ne.s32.totalorder %s74, %s75
      %p87 = scmp.eq.s32.totalorder %s23, 1
      %p88 = por %p86, %p87
      %p90 = scmp.ne.s32.totalorder %s75, %s89
      %p91 = scmp.eq.s32.totalorder %s23, 0
      %p92 = por %p90, %p91
      %s94 = sadd.s32 %s93, 1
      %p97 = scmp.eq.s32.totalorder %s17, 1
      %p98 = scmp.ne.s32.totalorder %s93, %s95
      %p99 = scmp.eq.s32.totalorder %s17, 0
      %p100 = por %p98, %p99
      %p101 = scmp.ne.s32.totalorder %s93, %s95
      %p102 = scmp.eq.s32.totalorder %s22, 1
      %p103 = por %p101, %p102
      %p104 = scmp.ne.s32.totalorder %s95, %s96
      %p105 = scmp.eq.s32.totalorder %s22, 0
      %p106 = por %p104, %p105
      %p107 = scmp.ne.s32.totalorder %s95, %s96
      %p108 = scmp.eq.s32.totalorder %s23, 1
      %p109 = por %p107, %p108
      %p111 = scmp.ne.s32.totalorder %s96, %s110
      %p112 = scmp.eq.s32.totalorder %s23, 0
      %p113 = por %p111, %p112
      %s115 = sadd.s32 %s114, 1
      %p118 = scmp.eq.s32.totalorder %s17, 1
      %p119 = scmp.ne.s32.totalorder %s114, %s116
      %p120 = scmp.eq.s32.totalorder %s17, 0
      %p121 = por %p119, %p120
      %p122 = scmp.ne.s32.totalorder %s114, %s116
      %p123 = scmp.eq.s32.totalorder %s22, 1
      %p124 = por %p122, %p123
      %p125 = scmp.ne.s32.totalorder %s116, %s117
      %p126 = scmp.eq.s32.totalorder %s22, 0
      %p127 = por %p125, %p126
      %p128 = scmp.ne.s32.totalorder %s116, %s117
      %p129 = scmp.eq.s32.totalorder %s23, 1
      %p130 = por %p128, %p129
      %p132 = scmp.ne.s32.totalorder %s117, %s131
      %p133 = scmp.eq.s32.totalorder %s23, 0
      %p134 = por %p132, %p133
      %s135 = ssub.s32 %s17, %s24
      %p136 = scmp.eq.s32.totalorder %s135, 0
      %s138 = sadd.s32 %s137, 1
      %s139 = scalar_select %p136, %s137, %s138
      %p142 = pneg %p136
      %p143 = scmp.eq.s32.totalorder %s17, 1
      %p144 = por %p142, %p143
      %p145 = scmp.ne.s32.totalorder %s137, %s140
      %p146 = scmp.eq.s32.totalorder %s17, 0
      %p147 = por %p145, %p146
      %p148 = scmp.ne.s32.totalorder %s137, %s140
      %p149 = scmp.eq.s32.totalorder %s22, 1
      %p150 = por %p148, %p149
      %p151 = scmp.ne.s32.totalorder %s140, %s141
      %p152 = scmp.eq.s32.totalorder %s22, 0
      %p153 = por %p151, %p152
      %p154 = scmp.ne.s32.totalorder %s140, %s141
      %p155 = scmp.eq.s32.totalorder %s23, 1
      %p156 = por %p154, %p155
      %p158 = scmp.ne.s32.totalorder %s141, %s157
      %p159 = scmp.eq.s32.totalorder %s23, 0
      %p160 = por %p158, %p159
      %p161 = scmp.le.s32.totalorder 1, %s17
      %p162 = scmp.lt.s32.totalorder %s17, 3
      %p163 = pnand %p161, %p162
      %p164 = pneg %p163
      // Predicated region
      $region9: #{tpu_custom_call.1} parent=5 // pred_check
        _
      $region10: #{tpu_custom_call.1} parent=5 // pred_check_branch
        %166 = sbr.rel (%p163) target = $region12
      $region11: #{tpu_custom_call.1} parent=5 // pred_region
        %s167 = ssub.s32 %s17, 1
        // Predicated region
        $region13: #{tpu_custom_call.1} parent=11 // pred_check
          %p168 = pneg %p64
        $region14: #{tpu_custom_call.1} parent=11 // pred_check_branch
          %170 = sbr.rel (%p168) target = $region16
        $region15: #{tpu_custom_call.1} parent=11 // pred_region
          _
        $region16: #{tpu_custom_call.1} parent=11 // pred_fallthru
          _
        // Predicated region
        $region17: #{tpu_custom_call.1} parent=11 // pred_check
          %p171 = pneg %p85
        $region18: #{tpu_custom_call.1} parent=11 // pred_check_branch
          %173 = sbr.rel (%p171) target = $region20
        $region19: #{tpu_custom_call.1} parent=11 // pred_region
          _
        $region20: #{tpu_custom_call.1} parent=11 // pred_fallthru
          _
        // Predicated region
        $region21: #{tpu_custom_call.1} parent=11 // pred_check
          %p174 = pneg %p106
        $region22: #{tpu_custom_call.1} parent=11 // pred_check_branch
          %176 = sbr.rel (%p174) target = $region24
        $region23: #{tpu_custom_call.1} parent=11 // pred_region
          _
        $region24: #{tpu_custom_call.1} parent=11 // pred_fallthru
          _
        // Predicated region
        $region25: #{tpu_custom_call.1} parent=11 // pred_check
          %p177 = pneg %p127
        $region26: #{tpu_custom_call.1} parent=11 // pred_check_branch
          %179 = sbr.rel (%p177) target = $region28
        $region27: #{tpu_custom_call.1} parent=11 // pred_region
          _
        $region28: #{tpu_custom_call.1} parent=11 // pred_fallthru
          _
      $region12: #{tpu_custom_call.1} parent=5 // pred_fallthru
        _
      %p180 = scmp.lt.s32.totalorder %s17, 2
      // Predicated region
      $region29: #{tpu_custom_call.1} parent=5 // pred_check
        %p181 = pneg %p180
      $region30: #{tpu_custom_call.1} parent=5 // pred_check_branch
        %183 = sbr.rel (%p181) target = $region32
      $region31: #{tpu_custom_call.1} parent=5 // pred_region
        // Predicated region
        $region33: #{tpu_custom_call.1} parent=31 // pred_check
          %p184 = pneg %p37
        $region34: #{tpu_custom_call.1} parent=31 // pred_check_branch
          %186 = sbr.rel (%p184) target = $region36
        $region35: #{tpu_custom_call.1} parent=31 // pred_region
          %s187 = sand.u32 %s27, 1
          %s188 = scalar_lea.sflag [#allocation3], %s187
          %s189 = sand.u32 %s27, 1
          %s190 = smul.addr %s189, 64
          %s191 = scalar_lea.vmem [#allocation2], %s190
          %s192 = smul.u32 4, %s17
          %s194 = ssub.s32 1024, 1024
          %195 = vsyncadd %s188, %s194
          %s196 = smul.addr %s192, 2
          %s197 = smul.addr %s196, 128
          %s198 = scalar_lea.hbm %s0, %s197
          %s199 = sshll.u32 %s191, 4
          %s200 = int_to_ptr.vmem [resolvable:$true] %s199
          %205 = dma.hbm_to_vmem [thread:$0]  %s198, 1024, %s200, %s188, 256, 256, 16
        $region36: #{tpu_custom_call.1} parent=31 // pred_fallthru
          _
      $region32: #{tpu_custom_call.1} parent=5 // pred_fallthru
        _
      %p206 = scmp.le.s32.totalorder 1, %s17
      %p207 = scmp.lt.s32.totalorder %s17, 3
      %p208 = pnand %p206, %p207
      %p209 = pneg %p208
      // Predicated region
      $region37: #{tpu_custom_call.1} parent=5 // pred_check
        _
      $region38: #{tpu_custom_call.1} parent=5 // pred_check_branch
        %211 = sbr.rel (%p208) target = $region40
      $region39: #{tpu_custom_call.1} parent=5 // pred_region
        %s212 = ssub.s32 %s17, 1
        %s213 = sand.u32 %s30, 1
        %s214 = scalar_lea.sflag [#allocation3], %s213
        %s215 = sand.u32 %s30, 1
        %s216 = smul.addr %s215, 64
        %s217 = scalar_lea.vmem [#allocation2], %s216
        // Predicated region
        $region41: #{tpu_custom_call.1} parent=39 // pred_check
          %p218 = pneg %p43
        $region42: #{tpu_custom_call.1} parent=39 // pred_check_branch
          %220 = sbr.rel (%p218) target = $region44
        $region43: #{tpu_custom_call.1} parent=39 // pred_region
          %221 = dma.done %s214, 1024
        $region44: #{tpu_custom_call.1} parent=39 // pred_fallthru
          _
        %s222 = sand.u32 %s30, 1
        %s223 = scalar_lea.sflag [#allocation3], %s222
        %s224 = sand.u32 %s30, 1
        %s225 = smul.addr %s224, 64
        %s226 = scalar_lea.vmem [#allocation2], %s225
        %p227 = pneg %p43
        %p228 = pneg %p40
        %p229 = pneg %p64
        %p230 = pneg %p61
        %p231 = pneg %p85
        %p232 = pneg %p82
        %p233 = pneg %p106
        %p234 = pneg %p103
        %p235 = pneg %p127
        %p236 = pneg %p124
        %p237 = pneg %p153
        %p238 = pneg %p150
        %s239 = sand.u32 %s140, 1
        %s240 = scalar_lea.sflag [#allocation4], %s239
        %s241 = sand.u32 %s140, 1
        %s242 = smul.addr %s241, 64
        %s243 = scalar_lea.vmem [#allocation5], %s242
        %s244 = smul.u32 4, %s22
        %s245 = smul.u32 4, %s22
        %v247 = vld [vmem:[%s2] sm:$0xff]
        %v248 = vld [vmem:[%s2 + $0x8] sm:$0xff]
        %v249 = vld [vmem:[%s2 + $0x10] sm:$0xff]
        %v250 = vld [vmem:[%s2 + $0x18] sm:$0xff]
        %v251 = vld [vmem:[%s4] sm:$0xff]
        %v252 = vld [vmem:[%s217] sm:$0xff]
        %v253 = vld [vmem:[%s217 + $0x8] sm:$0xff]
        %s254 = scalar_lea.vmem %s217, 16 [#allocation2]
        %v255 = vld [vmem:[%s254] sm:$0xff]
        %v256 = vld [vmem:[%s254 + $0x8] sm:$0xff]
        %s257 = scalar_lea.vmem %s217, 32 [#allocation2]
        %v258 = vld [vmem:[%s257] sm:$0xff]
        %v259 = vld [vmem:[%s257 + $0x8] sm:$0xff]
        %s260 = scalar_lea.vmem %s217, 48 [#allocation2]
        %v261 = vld [vmem:[%s260] sm:$0xff]
        %v262 = vld [vmem:[%s260 + $0x8] sm:$0xff]
        %v263 = vld [vmem:[%s1] sm:$0xf]
        %v264 = vld [vmem:[%s1 + $0x4] sm:$0xf]
        %v265 = vld [vmem:[%s1 + $0x8] sm:$0xf]
        %v266 = vld [vmem:[%s1 + $0xc] sm:$0xf]
        %v267 = vpack.c.bf16 %v252, %v252
        %v268 = vpack.c.bf16 %v253, %v253
        %v269 = vpack.c.bf16 %v255, %v255
        %v270 = vpack.c.bf16 %v256, %v256
        %v271 = vpack.c.bf16 %v258, %v258
        %v272 = vpack.c.bf16 %v259, %v259
        %v273 = vpack.c.bf16 %v261, %v261
        %v274 = vpack.c.bf16 %v262, %v262
        %v279 = vunpack.c.l.b16 %v263
        %v280 = vunpack.c.l.b16 %v264
        %v281 = vunpack.c.l.b16 %v265
        %v282 = vunpack.c.l.b16 %v266
        %v283 = vpack.c.b16 %v280, %v279
        %v284 = vpack.c.b16 %v282, %v281
        %vm285 = vcmask 64512
        %v287 = vsel %vm285, %v283, 0
        %v290 = vsel %vm285, %v284, 0
        %vm292 = vcmask 1043456
        %v294 = vsel %vm292, %v267, 0
        %v297 = vsel %vm292, %v268, 0
        %v300 = vsel %vm292, %v269, 0
        %v303 = vsel %vm292, %v270, 0
        %v306 = vsel %vm292, %v271, 0
        %v309 = vsel %vm292, %v272, 0
        %v312 = vsel %vm292, %v273, 0
        %v315 = vsel %vm292, %v274, 0
        %317 = vmatprep.subr.bf16.mxu0 %v297
        %318 = vmatpush1.bf16.msra.mxu0 %v294
        %319 = vmatprep.subr.bf16.mxu0 0
        %320 = vmatpush1.bf16.msra.mxu0 0
        %321 = vmatprep.subr.bf16.mxu0 0
        %322 = vmatpush1.bf16.msra.mxu0 0
        %323 = vmatprep.subr.bf16.mxu0 0
        %324 = vmatpush1.bf16.msra.mxu0 0
        %325 = vmatprep.subr.bf16.mxu0 0
        %326 = vmatpush1.bf16.msra.mxu0 0
        %327 = vmatprep.subr.bf16.mxu0 0
        %328 = vmatpush1.bf16.msra.mxu0 0
        %329 = vmatprep.subr.bf16.mxu0 0
        %330 = vmatpush1.bf16.msra.mxu0 0
        %331 = vmatprep.subr.bf16.mxu0 0
        %332 = vmatpush1.bf16.msra.mxu0 0
        %333 = vmatprep.subr.bf16.mxu0 0
        %334 = vmatpush1.bf16.msra.mxu0 0
        %335 = vmatprep.subr.bf16.mxu0 0
        %336 = vmatpush1.bf16.msra.mxu0 0
        %337 = vmatprep.subr.bf16.mxu0 0
        %338 = vmatpush1.bf16.msra.mxu0 0
        %339 = vmatprep.subr.bf16.mxu0 0
        %340 = vmatpush1.bf16.msra.mxu0 0
        %341 = vmatprep.subr.bf16.mxu0 0
        %342 = vmatpush1.bf16.msra.mxu0 0
        %343 = vmatprep.subr.bf16.mxu0 0
        %344 = vmatpush1.bf16.msra.mxu0 0
        %345 = vmatprep.subr.bf16.mxu0 0
        %346 = vmatpush1.bf16.msra.mxu0 0
        %347 = vmatprep.subr.bf16.mxu0 0
        %348 = vmatpush1.bf16.msra.mxu0 0
        %349 = vmatprep.mubr.bf16.mxu0 0
        %350 = vmatmul.mubr.bf16.gmra.mrb[0].mxu0 %v287
        %v351 = vpop.f32.mrb[0].mxu0
        %v352 = vadd.f32 0.0, %v351
        %v353 = vpop.f32.mrb[0].mxu0
        %v354 = vadd.f32 0.0, %v353
        %v355 = vpop.f32.mrb[0].mxu0
        %v356 = vadd.f32 0.0, %v355
        %v357 = vpop.f32.mrb[0].mxu0
        %v358 = vadd.f32 0.0, %v357
        %359 = vmatprep.mubr.bf16.mxu0 0
        %360 = vmatmul.mubr.bf16.gmra.mrb[0].mxu0 %v290
        %v361 = vpop.f32.mrb[0].mxu0
        %v362 = vadd.f32 0.0, %v361
        %v363 = vpop.f32.mrb[0].mxu0
        %v364 = vadd.f32 0.0, %v363
        %v365 = vpop.f32.mrb[0].mxu0
        %v366 = vadd.f32 0.0, %v365
        %v367 = vpop.f32.mrb[0].mxu0
        %v368 = vadd.f32 0.0, %v367
        %369 = vdwg.mxu0
        %370 = vmatprep.subr.bf16.mxu0 %v303
        %371 = vmatpush1.bf16.msra.mxu0 %v300
        %372 = vmatprep.subr.bf16.mxu0 0
        %373 = vmatpush1.bf16.msra.mxu0 0
        %374 = vmatprep.subr.bf16.mxu0 0
        %375 = vmatpush1.bf16.msra.mxu0 0
        %376 = vmatprep.subr.bf16.mxu0 0
        %377 = vmatpush1.bf16.msra.mxu0 0
        %378 = vmatprep.subr.bf16.mxu0 0
        %379 = vmatpush1.bf16.msra.mxu0 0
        %380 = vmatprep.subr.bf16.mxu0 0
        %381 = vmatpush1.bf16.msra.mxu0 0
        %382 = vmatprep.subr.bf16.mxu0 0
        %383 = vmatpush1.bf16.msra.mxu0 0
        %384 = vmatprep.subr.bf16.mxu0 0
        %385 = vmatpush1.bf16.msra.mxu0 0
        %386 = vmatprep.subr.bf16.mxu0 0
        %387 = vmatpush1.bf16.msra.mxu0 0
        %388 = vmatprep.subr.bf16.mxu0 0
        %389 = vmatpush1.bf16.msra.mxu0 0
        %390 = vmatprep.subr.bf16.mxu0 0
        %391 = vmatpush1.bf16.msra.mxu0 0
        %392 = vmatprep.subr.bf16.mxu0 0
        %393 = vmatpush1.bf16.msra.mxu0 0
        %394 = vmatprep.subr.bf16.mxu0 0
        %395 = vmatpush1.bf16.msra.mxu0 0
        %396 = vmatprep.subr.bf16.mxu0 0
        %397 = vmatpush1.bf16.msra.mxu0 0
        %398 = vmatprep.subr.bf16.mxu0 0
        %399 = vmatpush1.bf16.msra.mxu0 0
        %400 = vmatprep.subr.bf16.mxu0 0
        %401 = vmatpush1.bf16.msra.mxu0 0
        %402 = vmatprep.mubr.bf16.mxu0 0
        %403 = vmatmul.mubr.bf16.gmra.mrb[0].mxu0 %v287
        %v404 = vpop.f32.mrb[0].mxu0
        %v405 = vadd.f32 0.0, %v404
        %v406 = vpop.f32.mrb[0].mxu0
        %v407 = vadd.f32 0.0, %v406
        %v408 = vpop.f32.mrb[0].mxu0
        %v409 = vadd.f32 0.0, %v408
        %v410 = vpop.f32.mrb[0].mxu0
        %v411 = vadd.f32 0.0, %v410
        %412 = vmatprep.mubr.bf16.mxu0 0
        %413 = vmatmul.mubr.bf16.gmra.mrb[0].mxu0 %v290
        %v414 = vpop.f32.mrb[0].mxu0
        %v415 = vadd.f32 0.0, %v414
        %v416 = vpop.f32.mrb[0].mxu0
        %v417 = vadd.f32 0.0, %v416
        %v418 = vpop.f32.mrb[0].mxu0
        %v419 = vadd.f32 0.0, %v418
        %v420 = vpop.f32.mrb[0].mxu0
        %v421 = vadd.f32 0.0, %v420
        %422 = vdwg.mxu0
        %423 = vmatprep.subr.bf16.mxu0 %v309
        %424 = vmatpush1.bf16.msra.mxu0 %v306
        %425 = vmatprep.subr.bf16.mxu0 0
        %426 = vmatpush1.bf16.msra.mxu0 0
        %427 = vmatprep.subr.bf16.mxu0 0
        %428 = vmatpush1.bf16.msra.mxu0 0
        %429 = vmatprep.subr.bf16.mxu0 0
        %430 = vmatpush1.bf16.msra.mxu0 0
        %431 = vmatprep.subr.bf16.mxu0 0
        %432 = vmatpush1.bf16.msra.mxu0 0
        %433 = vmatprep.subr.bf16.mxu0 0
        %434 = vmatpush1.bf16.msra.mxu0 0
        %435 = vmatprep.subr.bf16.mxu0 0
        %436 = vmatpush1.bf16.msra.mxu0 0
        %437 = vmatprep.subr.bf16.mxu0 0
        %438 = vmatpush1.bf16.msra.mxu0 0
        %439 = vmatprep.subr.bf16.mxu0 0
        %440 = vmatpush1.bf16.msra.mxu0 0
        %441 = vmatprep.subr.bf16.mxu0 0
        %442 = vmatpush1.bf16.msra.mxu0 0
        %443 = vmatprep.subr.bf16.mxu0 0
        %444 = vmatpush1.bf16.msra.mxu0 0
        %445 = vmatprep.subr.bf16.mxu0 0
        %446 = vmatpush1.bf16.msra.mxu0 0
        %447 = vmatprep.subr.bf16.mxu0 0
        %448 = vmatpush1.bf16.msra.mxu0 0
        %449 = vmatprep.subr.bf16.mxu0 0
        %450 = vmatpush1.bf16.msra.mxu0 0
        %451 = vmatprep.subr.bf16.mxu0 0
        %452 = vmatpush1.bf16.msra.mxu0 0
        %453 = vmatprep.subr.bf16.mxu0 0
        %454 = vmatpush1.bf16.msra.mxu0 0
        %455 = vmatprep.mubr.bf16.mxu0 0
        %456 = vmatmul.mubr.bf16.gmra.mrb[0].mxu0 %v287
        %v457 = vpop.f32.mrb[0].mxu0
        %v458 = vadd.f32 0.0, %v457
        %v459 = vpop.f32.mrb[0].mxu0
        %v460 = vadd.f32 0.0, %v459
        %v461 = vpop.f32.mrb[0].mxu0
        %v462 = vadd.f32 0.0, %v461
        %v463 = vpop.f32.mrb[0].mxu0
        %v464 = vadd.f32 0.0, %v463
        %465 = vmatprep.mubr.bf16.mxu0 0
        %466 = vmatmul.mubr.bf16.gmra.mrb[0].mxu0 %v290
        %v467 = vpop.f32.mrb[0].mxu0
        %v468 = vadd.f32 0.0, %v467
        %v469 = vpop.f32.mrb[0].mxu0
        %v470 = vadd.f32 0.0, %v469
        %v471 = vpop.f32.mrb[0].mxu0
        %v472 = vadd.f32 0.0, %v471
        %v473 = vpop.f32.mrb[0].mxu0
        %v474 = vadd.f32 0.0, %v473
        %475 = vdwg.mxu0
        %476 = vmatprep.subr.bf16.mxu0 %v315
        %477 = vmatpush1.bf16.msra.mxu0 %v312
        %478 = vmatprep.subr.bf16.mxu0 0
        %479 = vmatpush1.bf16.msra.mxu0 0
        %480 = vmatprep.subr.bf16.mxu0 0
        %481 = vmatpush1.bf16.msra.mxu0 0
        %482 = vmatprep.subr.bf16.mxu0 0
        %483 = vmatpush1.bf16.msra.mxu0 0
        %484 = vmatprep.subr.bf16.mxu0 0
        %485 = vmatpush1.bf16.msra.mxu0 0
        %486 = vmatprep.subr.bf16.mxu0 0
        %487 = vmatpush1.bf16.msra.mxu0 0
        %488 = vmatprep.subr.bf16.mxu0 0
        %489 = vmatpush1.bf16.msra.mxu0 0
        %490 = vmatprep.subr.bf16.mxu0 0
        %491 = vmatpush1.bf16.msra.mxu0 0
        %492 = vmatprep.subr.bf16.mxu0 0
        %493 = vmatpush1.bf16.msra.mxu0 0
        %494 = vmatprep.subr.bf16.mxu0 0
        %495 = vmatpush1.bf16.msra.mxu0 0
        %496 = vmatprep.subr.bf16.mxu0 0
        %497 = vmatpush1.bf16.msra.mxu0 0
        %498 = vmatprep.subr.bf16.mxu0 0
        %499 = vmatpush1.bf16.msra.mxu0 0
        %500 = vmatprep.subr.bf16.mxu0 0
        %501 = vmatpush1.bf16.msra.mxu0 0
        %502 = vmatprep.subr.bf16.mxu0 0
        %503 = vmatpush1.bf16.msra.mxu0 0
        %504 = vmatprep.subr.bf16.mxu0 0
        %505 = vmatpush1.bf16.msra.mxu0 0
        %506 = vmatprep.subr.bf16.mxu0 0
        %507 = vmatpush1.bf16.msra.mxu0 0
        %508 = vmatprep.mubr.bf16.mxu0 0
        %509 = vmatmul.mubr.bf16.gmra.mrb[0].mxu0 %v287
        %v510 = vpop.f32.mrb[0].mxu0
        %v511 = vadd.f32 0.0, %v510
        %v512 = vpop.f32.mrb[0].mxu0
        %v513 = vadd.f32 0.0, %v512
        %v514 = vpop.f32.mrb[0].mxu0
        %v515 = vadd.f32 0.0, %v514
        %v516 = vpop.f32.mrb[0].mxu0
        %v517 = vadd.f32 0.0, %v516
        %518 = vmatprep.mubr.bf16.mxu0 0
        %519 = vmatmul.mubr.bf16.gmra.mrb[0].mxu0 %v290
        %v520 = vpop.f32.mrb[0].mxu0
        %v521 = vadd.f32 0.0, %v520
        %v522 = vpop.f32.mrb[0].mxu0
        %v523 = vadd.f32 0.0, %v522
        %v524 = vpop.f32.mrb[0].mxu0
        %v525 = vadd.f32 0.0, %v524
        %v526 = vpop.f32.mrb[0].mxu0
        %v527 = vadd.f32 0.0, %v526
        %528 = vdwg.mxu0
        %530 = vset.pattern.permute.xlu0 0
        %531 = vperm.xlu0 %530, %v247
        %v532 = vpop.permute.xlu0 %531
        %535 = vset.pattern.permute.xlu0 0
        %536 = vperm.xlu0 %535, %v248
        %v537 = vpop.permute.xlu0 %536
        %540 = vset.pattern.permute.xlu0 0
        %541 = vperm.xlu0 %540, %v249
        %v542 = vpop.permute.xlu0 %541
        %545 = vset.pattern.permute.xlu0 0
        %546 = vperm.xlu0 %545, %v250
        %v547 = vpop.permute.xlu0 %546
        %v549 = vmul.f32 %v352, %v532
        %v550 = vmul.f32 %v354, %v532
        %v551 = vmul.f32 %v405, %v532
        %v552 = vmul.f32 %v407, %v532
        %v553 = vmul.f32 %v458, %v532
        %v554 = vmul.f32 %v460, %v532
        %v555 = vmul.f32 %v511, %v532
        %v556 = vmul.f32 %v513, %v532
        %v557 = vmul.f32 %v356, %v537
        %v558 = vmul.f32 %v358, %v537
        %v559 = vmul.f32 %v409, %v537
        %v560 = vmul.f32 %v411, %v537
        %v561 = vmul.f32 %v462, %v537
        %v562 = vmul.f32 %v464, %v537
        %v563 = vmul.f32 %v515, %v537
        %v564 = vmul.f32 %v517, %v537
        %v565 = vmul.f32 %v362, %v542
        %v566 = vmul.f32 %v364, %v542
        %v567 = vmul.f32 %v415, %v542
        %v568 = vmul.f32 %v417, %v542
        %v569 = vmul.f32 %v468, %v542
        %v570 = vmul.f32 %v470, %v542
        %v571 = vmul.f32 %v521, %v542
        %v572 = vmul.f32 %v523, %v542
        %v573 = vmul.f32 %v366, %v547
        %v574 = vmul.f32 %v368, %v547
        %v575 = vmul.f32 %v419, %v547
        %v576 = vmul.f32 %v421, %v547
        %v577 = vmul.f32 %v472, %v547
        %v578 = vmul.f32 %v474, %v547
        %v579 = vmul.f32 %v525, %v547
        %v580 = vmul.f32 %v527, %v547
        %581 = vset.pattern.permute.xlu0 1
        %582 = vperm.xlu0 %581, %v247
        %v583 = vpop.permute.xlu0 %582
        %585 = vset.pattern.permute.xlu0 1
        %586 = vperm.xlu0 %585, %v248
        %v587 = vpop.permute.xlu0 %586
        %589 = vset.pattern.permute.xlu0 1
        %590 = vperm.xlu0 %589, %v249
        %v591 = vpop.permute.xlu0 %590
        %593 = vset.pattern.permute.xlu0 1
        %594 = vperm.xlu0 %593, %v250
        %v595 = vpop.permute.xlu0 %594
        %v597 = vadd.f32 %v549, %v583
        %v598 = vadd.f32 %v550, %v583
        %v599 = vadd.f32 %v551, %v583
        %v600 = vadd.f32 %v552, %v583
        %v601 = vadd.f32 %v553, %v583
        %v602 = vadd.f32 %v554, %v583
        %v603 = vadd.f32 %v555, %v583
        %v604 = vadd.f32 %v556, %v583
        %v605 = vadd.f32 %v557, %v587
        %v606 = vadd.f32 %v558, %v587
        %v607 = vadd.f32 %v559, %v587
        %v608 = vadd.f32 %v560, %v587
        %v609 = vadd.f32 %v561, %v587
        %v610 = vadd.f32 %v562, %v587
        %v611 = vadd.f32 %v563, %v587
        %v612 = vadd.f32 %v564, %v587
        %v613 = vadd.f32 %v565, %v591
        %v614 = vadd.f32 %v566, %v591
        %v615 = vadd.f32 %v567, %v591
        %v616 = vadd.f32 %v568, %v591
        %v617 = vadd.f32 %v569, %v591
        %v618 = vadd.f32 %v570, %v591
        %v619 = vadd.f32 %v571, %v591
        %v620 = vadd.f32 %v572, %v591
        %v621 = vadd.f32 %v573, %v595
        %v622 = vadd.f32 %v574, %v595
        %v623 = vadd.f32 %v575, %v595
        %v624 = vadd.f32 %v576, %v595
        %v625 = vadd.f32 %v577, %v595
        %v626 = vadd.f32 %v578, %v595
        %v627 = vadd.f32 %v579, %v595
        %v628 = vadd.f32 %v580, %v595
        %v629 = vsub.f32 0.0, %v597
        %v630 = vsub.f32 0.0, %v598
        %v631 = vsub.f32 0.0, %v599
        %v632 = vsub.f32 0.0, %v600
        %v633 = vsub.f32 0.0, %v601
        %v634 = vsub.f32 0.0, %v602
        %v635 = vsub.f32 0.0, %v603
        %v636 = vsub.f32 0.0, %v604
        %v637 = vsub.f32 0.0, %v605
        %v638 = vsub.f32 0.0, %v606
        %v639 = vsub.f32 0.0, %v607
        %v640 = vsub.f32 0.0, %v608
        %v641 = vsub.f32 0.0, %v609
        %v642 = vsub.f32 0.0, %v610
        %v643 = vsub.f32 0.0, %v611
        %v644 = vsub.f32 0.0, %v612
        %v645 = vsub.f32 0.0, %v613
        %v646 = vsub.f32 0.0, %v614
        %v647 = vsub.f32 0.0, %v615
        %v648 = vsub.f32 0.0, %v616
        %v649 = vsub.f32 0.0, %v617
        %v650 = vsub.f32 0.0, %v618
        %v651 = vsub.f32 0.0, %v619
        %v652 = vsub.f32 0.0, %v620
        %v653 = vsub.f32 0.0, %v621
        %v654 = vsub.f32 0.0, %v622
        %v655 = vsub.f32 0.0, %v623
        %v656 = vsub.f32 0.0, %v624
        %v657 = vsub.f32 0.0, %v625
        %v658 = vsub.f32 0.0, %v626
        %v659 = vsub.f32 0.0, %v627
        %v660 = vsub.f32 0.0, %v628
        %v661 = vmul.f32 %v629, 1.442695
        %v662 = vpow.pop %v661
        %v663 = vmul.f32 %v630, 1.442695
        %v664 = vpow.pop %v663
        %v665 = vmul.f32 %v631, 1.442695
        %v666 = vpow.pop %v665
        %v667 = vmul.f32 %v632, 1.442695
        %v668 = vpow.pop %v667
        %v669 = vmul.f32 %v633, 1.442695
        %v670 = vpow.pop %v669
        %v671 = vmul.f32 %v634, 1.442695
        %v672 = vpow.pop %v671
        %v673 = vmul.f32 %v635, 1.442695
        %v674 = vpow.pop %v673
        %v675 = vmul.f32 %v636, 1.442695
        %v676 = vpow.pop %v675
        %v677 = vmul.f32 %v637, 1.442695
        %v678 = vpow.pop %v677
        %v679 = vmul.f32 %v638, 1.442695
        %v680 = vpow.pop %v679
        %v681 = vmul.f32 %v639, 1.442695
        %v682 = vpow.pop %v681
        %v683 = vmul.f32 %v640, 1.442695
        %v684 = vpow.pop %v683
        %v685 = vmul.f32 %v641, 1.442695
        %v686 = vpow.pop %v685
        %v687 = vmul.f32 %v642, 1.442695
        %v688 = vpow.pop %v687
        %v689 = vmul.f32 %v643, 1.442695
        %v690 = vpow.pop %v689
        %v691 = vmul.f32 %v644, 1.442695
        %v692 = vpow.pop %v691
        %v693 = vmul.f32 %v645, 1.442695
        %v694 = vpow.pop %v693
        %v695 = vmul.f32 %v646, 1.442695
        %v696 = vpow.pop %v695
        %v697 = vmul.f32 %v647, 1.442695
        %v698 = vpow.pop %v697
        %v699 = vmul.f32 %v648, 1.442695
        %v700 = vpow.pop %v699
        %v701 = vmul.f32 %v649, 1.442695
        %v702 = vpow.pop %v701
        %v703 = vmul.f32 %v650, 1.442695
        %v704 = vpow.pop %v703
        %v705 = vmul.f32 %v651, 1.442695
        %v706 = vpow.pop %v705
        %v707 = vmul.f32 %v652, 1.442695
        %v708 = vpow.pop %v707
        %v709 = vmul.f32 %v653, 1.442695
        %v710 = vpow.pop %v709
        %v711 = vmul.f32 %v654, 1.442695
        %v712 = vpow.pop %v711
        %v713 = vmul.f32 %v655, 1.442695
        %v714 = vpow.pop %v713
        %v715 = vmul.f32 %v656, 1.442695
        %v716 = vpow.pop %v715
        %v717 = vmul.f32 %v657, 1.442695
        %v718 = vpow.pop %v717
        %v719 = vmul.f32 %v658, 1.442695
        %v720 = vpow.pop %v719
        %v721 = vmul.f32 %v659, 1.442695
        %v722 = vpow.pop %v721
        %v723 = vmul.f32 %v660, 1.442695
        %v724 = vpow.pop %v723
        %v725 = vadd.f32 %v662, 1.0
        %v726 = vadd.f32 %v664, 1.0
        %v727 = vadd.f32 %v666, 1.0
        %v728 = vadd.f32 %v668, 1.0
        %v729 = vadd.f32 %v670, 1.0
        %v730 = vadd.f32 %v672, 1.0
        %v731 = vadd.f32 %v674, 1.0
        %v732 = vadd.f32 %v676, 1.0
        %v733 = vadd.f32 %v678, 1.0
        %v734 = vadd.f32 %v680, 1.0
        %v735 = vadd.f32 %v682, 1.0
        %v736 = vadd.f32 %v684, 1.0
        %v737 = vadd.f32 %v686, 1.0
        %v738 = vadd.f32 %v688, 1.0
        %v739 = vadd.f32 %v690, 1.0
        %v740 = vadd.f32 %v692, 1.0
        %v741 = vadd.f32 %v694, 1.0
        %v742 = vadd.f32 %v696, 1.0
        %v743 = vadd.f32 %v698, 1.0
        %v744 = vadd.f32 %v700, 1.0
        %v745 = vadd.f32 %v702, 1.0
        %v746 = vadd.f32 %v704, 1.0
        %v747 = vadd.f32 %v706, 1.0
        %v748 = vadd.f32 %v708, 1.0
        %v749 = vadd.f32 %v710, 1.0
        %v750 = vadd.f32 %v712, 1.0
        %v751 = vadd.f32 %v714, 1.0
        %v752 = vadd.f32 %v716, 1.0
        %v753 = vadd.f32 %v718, 1.0
        %v754 = vadd.f32 %v720, 1.0
        %v755 = vadd.f32 %v722, 1.0
        %v756 = vadd.f32 %v724, 1.0
        %v757 = vrcp.pop %v725
        %v758 = vrcp.pop %v726
        %v759 = vrcp.pop %v727
        %v760 = vrcp.pop %v728
        %v761 = vrcp.pop %v729
        %v762 = vrcp.pop %v730
        %v763 = vrcp.pop %v731
        %v764 = vrcp.pop %v732
        %v765 = vrcp.pop %v733
        %v766 = vrcp.pop %v734
        %v767 = vrcp.pop %v735
        %v768 = vrcp.pop %v736
        %v769 = vrcp.pop %v737
        %v770 = vrcp.pop %v738
        %v771 = vrcp.pop %v739
        %v772 = vrcp.pop %v740
        %v773 = vrcp.pop %v741
        %v774 = vrcp.pop %v742
        %v775 = vrcp.pop %v743
        %v776 = vrcp.pop %v744
        %v777 = vrcp.pop %v745
        %v778 = vrcp.pop %v746
        %v779 = vrcp.pop %v747
        %v780 = vrcp.pop %v748
        %v781 = vrcp.pop %v749
        %v782 = vrcp.pop %v750
        %v783 = vrcp.pop %v751
        %v784 = vrcp.pop %v752
        %v785 = vrcp.pop %v753
        %v786 = vrcp.pop %v754
        %v787 = vrcp.pop %v755
        %v788 = vrcp.pop %v756
        %v789 = vmul.f32 %v597, %v757
        %v790 = vmul.f32 %v598, %v758
        %v791 = vmul.f32 %v599, %v759
        %v792 = vmul.f32 %v600, %v760
        %v793 = vmul.f32 %v601, %v761
        %v794 = vmul.f32 %v602, %v762
        %v795 = vmul.f32 %v603, %v763
        %v796 = vmul.f32 %v604, %v764
        %v797 = vmul.f32 %v605, %v765
        %v798 = vmul.f32 %v606, %v766
        %v799 = vmul.f32 %v607, %v767
        %v800 = vmul.f32 %v608, %v768
        %v801 = vmul.f32 %v609, %v769
        %v802 = vmul.f32 %v610, %v770
        %v803 = vmul.f32 %v611, %v771
        %v804 = vmul.f32 %v612, %v772
        %v805 = vmul.f32 %v613, %v773
        %v806 = vmul.f32 %v614, %v774
        %v807 = vmul.f32 %v615, %v775
        %v808 = vmul.f32 %v616, %v776
        %v809 = vmul.f32 %v617, %v777
        %v810 = vmul.f32 %v618, %v778
        %v811 = vmul.f32 %v619, %v779
        %v812 = vmul.f32 %v620, %v780
        %v813 = vmul.f32 %v621, %v781
        %v814 = vmul.f32 %v622, %v782
        %v815 = vmul.f32 %v623, %v783
        %v816 = vmul.f32 %v624, %v784
        %v817 = vmul.f32 %v625, %v785
        %v818 = vmul.f32 %v626, %v786
        %v819 = vmul.f32 %v627, %v787
        %v820 = vmul.f32 %v628, %v788
        %v821 = vlaneseq
        %v822 = vand.u32 %v821, 127
        %v823 = vadd.s32 %v822, 128
        %v824 = vadd.s32 %v822, 256
        %v825 = vadd.s32 %v822, 384
        %v826 = vadd.s32 %v822, 512
        %v827 = vadd.s32 %v822, 640
        %v828 = vadd.s32 %v822, 768
        %v829 = vadd.s32 %v822, 896
        %v830 = vand.u32 %v822, 15
        %v831 = vand.u32 %v823, 15
        %v832 = vand.u32 %v824, 15
        %v833 = vand.u32 %v825, 15
        %v834 = vand.u32 %v826, 15
        %v835 = vand.u32 %v827, 15
        %v836 = vand.u32 %v828, 15
        %v837 = vand.u32 %v829, 15
        %v838 = vand.u32 %v822, 255
        %v839 = vand.u32 %v823, 255
        %v840 = vand.u32 %v824, 255
        %v841 = vand.u32 %v825, 255
        %v842 = vand.u32 %v826, 255
        %v843 = vand.u32 %v827, 255
        %v844 = vand.u32 %v828, 255
        %v845 = vand.u32 %v829, 255
        %vm846 = vcmp.ge.s32.totalorder %v830, 1
        %vm847 = vcmp.ge.s32.totalorder %v831, 1
        %vm848 = vcmp.ge.s32.totalorder %v832, 1
        %vm849 = vcmp.ge.s32.totalorder %v833, 1
        %vm850 = vcmp.ge.s32.totalorder %v834, 1
        %vm851 = vcmp.ge.s32.totalorder %v835, 1
        %vm852 = vcmp.ge.s32.totalorder %v836, 1
        %vm853 = vcmp.ge.s32.totalorder %v837, 1
        %vm854 = vcmp.le.s32.totalorder %v830, 14
        %vm855 = vcmp.le.s32.totalorder %v831, 14
        %vm856 = vcmp.le.s32.totalorder %v832, 14
        %vm857 = vcmp.le.s32.totalorder %v833, 14
        %vm858 = vcmp.le.s32.totalorder %v834, 14
        %vm859 = vcmp.le.s32.totalorder %v835, 14
        %vm860 = vcmp.le.s32.totalorder %v836, 14
        %vm861 = vcmp.le.s32.totalorder %v837, 14
        %vm862 = vcmp.ge.s32.totalorder %v838, 16
        %vm863 = vcmp.ge.s32.totalorder %v839, 16
        %vm864 = vcmp.ge.s32.totalorder %v840, 16
        %vm865 = vcmp.ge.s32.totalorder %v841, 16
        %vm866 = vcmp.ge.s32.totalorder %v842, 16
        %vm867 = vcmp.ge.s32.totalorder %v843, 16
        %vm868 = vcmp.ge.s32.totalorder %v844, 16
        %vm869 = vcmp.ge.s32.totalorder %v845, 16
        %vm870 = vcmp.lt.s32.totalorder %v838, 240
        %vm871 = vcmp.lt.s32.totalorder %v839, 240
        %vm872 = vcmp.lt.s32.totalorder %v840, 240
        %vm873 = vcmp.lt.s32.totalorder %v841, 240
        %vm874 = vcmp.lt.s32.totalorder %v842, 240
        %vm875 = vcmp.lt.s32.totalorder %v843, 240
        %vm876 = vcmp.lt.s32.totalorder %v844, 240
        %vm877 = vcmp.lt.s32.totalorder %v845, 240
        %878 = vrot.lane.b32.xlu0 %v789, 1
        %v879 = vpop.permute.xlu0 %878
        %880 = vrot.lane.b32.xlu0 %v797, 1
        %v881 = vpop.permute.xlu0 %880
        %882 = vrot.lane.b32.xlu0 %v805, 1
        %v883 = vpop.permute.xlu0 %882
        %884 = vrot.lane.b32.xlu0 %v813, 1
        %v885 = vpop.permute.xlu0 %884
        %886 = vrot.lane.b32.xlu0 %v790, 1
        %v887 = vpop.permute.xlu0 %886
        %888 = vrot.lane.b32.xlu0 %v798, 1
        %v889 = vpop.permute.xlu0 %888
        %890 = vrot.lane.b32.xlu0 %v806, 1
        %v891 = vpop.permute.xlu0 %890
        %892 = vrot.lane.b32.xlu0 %v814, 1
        %v893 = vpop.permute.xlu0 %892
        %894 = vrot.lane.b32.xlu0 %v791, 1
        %v895 = vpop.permute.xlu0 %894
        %896 = vrot.lane.b32.xlu0 %v799, 1
        %v897 = vpop.permute.xlu0 %896
        %898 = vrot.lane.b32.xlu0 %v807, 1
        %v899 = vpop.permute.xlu0 %898
        %900 = vrot.lane.b32.xlu0 %v815, 1
        %v901 = vpop.permute.xlu0 %900
        %902 = vrot.lane.b32.xlu0 %v792, 1
        %v903 = vpop.permute.xlu0 %902
        %904 = vrot.lane.b32.xlu0 %v800, 1
        %v905 = vpop.permute.xlu0 %904
        %906 = vrot.lane.b32.xlu0 %v808, 1
        %v907 = vpop.permute.xlu0 %906
        %908 = vrot.lane.b32.xlu0 %v816, 1
        %v909 = vpop.permute.xlu0 %908
        %910 = vrot.lane.b32.xlu0 %v793, 1
        %v911 = vpop.permute.xlu0 %910
        %912 = vrot.lane.b32.xlu0 %v801, 1
        %v913 = vpop.permute.xlu0 %912
        %914 = vrot.lane.b32.xlu0 %v809, 1
        %v915 = vpop.permute.xlu0 %914
        %916 = vrot.lane.b32.xlu0 %v817, 1
        %v917 = vpop.permute.xlu0 %916
        %918 = vrot.lane.b32.xlu0 %v794, 1
        %v919 = vpop.permute.xlu0 %918
        %920 = vrot.lane.b32.xlu0 %v802, 1
        %v921 = vpop.permute.xlu0 %920
        %922 = vrot.lane.b32.xlu0 %v810, 1
        %v923 = vpop.permute.xlu0 %922
        %924 = vrot.lane.b32.xlu0 %v818, 1
        %v925 = vpop.permute.xlu0 %924
        %926 = vrot.lane.b32.xlu0 %v795, 1
        %v927 = vpop.permute.xlu0 %926
        %928 = vrot.lane.b32.xlu0 %v803, 1
        %v929 = vpop.permute.xlu0 %928
        %930 = vrot.lane.b32.xlu0 %v811, 1
        %v931 = vpop.permute.xlu0 %930
        %932 = vrot.lane.b32.xlu0 %v819, 1
        %v933 = vpop.permute.xlu0 %932
        %934 = vrot.lane.b32.xlu0 %v796, 1
        %v935 = vpop.permute.xlu0 %934
        %936 = vrot.lane.b32.xlu0 %v804, 1
        %v937 = vpop.permute.xlu0 %936
        %938 = vrot.lane.b32.xlu0 %v812, 1
        %v939 = vpop.permute.xlu0 %938
        %940 = vrot.lane.b32.xlu0 %v820, 1
        %v941 = vpop.permute.xlu0 %940
        %vm942 = vcmp.lt.s32.totalorder %v822, 1
        %v943 = vsel %vm942, %v927, %v935
        %v944 = vsel %vm942, %v929, %v937
        %v945 = vsel %vm942, %v931, %v939
        %v946 = vsel %vm942, %v933, %v941
        %v947 = vsel %vm942, %v919, %v927
        %v948 = vsel %vm942, %v921, %v929
        %v949 = vsel %vm942, %v923, %v931
        %v950 = vsel %vm942, %v925, %v933
        %v951 = vsel %vm942, %v911, %v919
        %v952 = vsel %vm942, %v913, %v921
        %v953 = vsel %vm942, %v915, %v923
        %v954 = vsel %vm942, %v917, %v925
        %v955 = vsel %vm942, %v903, %v911
        %v956 = vsel %vm942, %v905, %v913
        %v957 = vsel %vm942, %v907, %v915
        %v958 = vsel %vm942, %v909, %v917
        %v959 = vsel %vm942, %v895, %v903
        %v960 = vsel %vm942, %v897, %v905
        %v961 = vsel %vm942, %v899, %v907
        %v962 = vsel %vm942, %v901, %v909
        %v963 = vsel %vm942, %v887, %v895
        %v964 = vsel %vm942, %v889, %v897
        %v965 = vsel %vm942, %v891, %v899
        %v966 = vsel %vm942, %v893, %v901
        %v967 = vsel %vm942, %v879, %v887
        %v968 = vsel %vm942, %v881, %v889
        %v969 = vsel %vm942, %v883, %v891
        %v970 = vsel %vm942, %v885, %v893
        %v971 = vsel %vm942, %v935, %v879
        %v972 = vsel %vm942, %v937, %v881
        %v973 = vsel %vm942, %v939, %v883
        %v974 = vsel %vm942, %v941, %v885
        %v975 = vsel %vm846, 1, 0
        %v976 = vsel %vm847, 1, 0
        %v977 = vsel %vm848, 1, 0
        %v978 = vsel %vm849, 1, 0
        %v979 = vsel %vm850, 1, 0
        %v980 = vsel %vm851, 1, 0
        %v981 = vsel %vm852, 1, 0
        %v982 = vsel %vm853, 1, 0
        %vm983 = vcmp.eq.s32.totalorder %v975, 1
        %vm984 = vcmp.eq.s32.totalorder %v976, 1
        %vm985 = vcmp.eq.s32.totalorder %v977, 1
        %vm986 = vcmp.eq.s32.totalorder %v978, 1
        %vm987 = vcmp.eq.s32.totalorder %v979, 1
        %vm988 = vcmp.eq.s32.totalorder %v980, 1
        %vm989 = vcmp.eq.s32.totalorder %v981, 1
        %vm990 = vcmp.eq.s32.totalorder %v982, 1
        %v991 = vsel %vm983, %v971, 0.0
        %v992 = vsel %vm984, %v967, 0.0
        %v993 = vsel %vm985, %v963, 0.0
        %v994 = vsel %vm986, %v959, 0.0
        %v995 = vsel %vm987, %v955, 0.0
        %v996 = vsel %vm988, %v951, 0.0
        %v997 = vsel %vm989, %v947, 0.0
        %v998 = vsel %vm990, %v943, 0.0
        %v999 = vsel %vm983, %v972, 0.0
        %v1000 = vsel %vm984, %v968, 0.0
        %v1001 = vsel %vm985, %v964, 0.0
        %v1002 = vsel %vm986, %v960, 0.0
        %v1003 = vsel %vm987, %v956, 0.0
        %v1004 = vsel %vm988, %v952, 0.0
        %v1005 = vsel %vm989, %v948, 0.0
        %v1006 = vsel %vm990, %v944, 0.0
        %v1007 = vsel %vm983, %v973, 0.0
        %v1008 = vsel %vm984, %v969, 0.0
        %v1009 = vsel %vm985, %v965, 0.0
        %v1010 = vsel %vm986, %v961, 0.0
        %v1011 = vsel %vm987, %v957, 0.0
        %v1012 = vsel %vm988, %v953, 0.0
        %v1013 = vsel %vm989, %v949, 0.0
        %v1014 = vsel %vm990, %v945, 0.0
        %v1015 = vsel %vm983, %v974, 0.0
        %v1016 = vsel %vm984, %v970, 0.0
        %v1017 = vsel %vm985, %v966, 0.0
        %v1018 = vsel %vm986, %v962, 0.0
        %v1019 = vsel %vm987, %v958, 0.0
        %v1020 = vsel %vm988, %v954, 0.0
        %v1021 = vsel %vm989, %v950, 0.0
        %v1022 = vsel %vm990, %v946, 0.0
        %1023 = vrot.lane.b32.xlu0 %v789, 127
        %v1024 = vpop.permute.xlu0 %1023
        %1025 = vrot.lane.b32.xlu0 %v797, 127
        %v1026 = vpop.permute.xlu0 %1025
        %1027 = vrot.lane.b32.xlu0 %v805, 127
        %v1028 = vpop.permute.xlu0 %1027
        %1029 = vrot.lane.b32.xlu0 %v813, 127
        %v1030 = vpop.permute.xlu0 %1029
        %1031 = vrot.lane.b32.xlu0 %v790, 127
        %v1032 = vpop.permute.xlu0 %1031
        %1033 = vrot.lane.b32.xlu0 %v798, 127
        %v1034 = vpop.permute.xlu0 %1033
        %1035 = vrot.lane.b32.xlu0 %v806, 127
        %v1036 = vpop.permute.xlu0 %1035
        %1037 = vrot.lane.b32.xlu0 %v814, 127
        %v1038 = vpop.permute.xlu0 %1037
        %1039 = vrot.lane.b32.xlu0 %v791, 127
        %v1040 = vpop.permute.xlu0 %1039
        %1041 = vrot.lane.b32.xlu0 %v799, 127
        %v1042 = vpop.permute.xlu0 %1041
        %1043 = vrot.lane.b32.xlu0 %v807, 127
        %v1044 = vpop.permute.xlu0 %1043
        %1045 = vrot.lane.b32.xlu0 %v815, 127
        %v1046 = vpop.permute.xlu0 %1045
        %1047 = vrot.lane.b32.xlu0 %v792, 127
        %v1048 = vpop.permute.xlu0 %1047
        %1049 = vrot.lane.b32.xlu0 %v800, 127
        %v1050 = vpop.permute.xlu0 %1049
        %1051 = vrot.lane.b32.xlu0 %v808, 127
        %v1052 = vpop.permute.xlu0 %1051
        %1053 = vrot.lane.b32.xlu0 %v816, 127
        %v1054 = vpop.permute.xlu0 %1053
        %1055 = vrot.lane.b32.xlu0 %v793, 127
        %v1056 = vpop.permute.xlu0 %1055
        %1057 = vrot.lane.b32.xlu0 %v801, 127
        %v1058 = vpop.permute.xlu0 %1057
        %1059 = vrot.lane.b32.xlu0 %v809, 127
        %v1060 = vpop.permute.xlu0 %1059
        %1061 = vrot.lane.b32.xlu0 %v817, 127
        %v1062 = vpop.permute.xlu0 %1061
        %1063 = vrot.lane.b32.xlu0 %v794, 127
        %v1064 = vpop.permute.xlu0 %1063
        %1065 = vrot.lane.b32.xlu0 %v802, 127
        %v1066 = vpop.permute.xlu0 %1065
        %1067 = vrot.lane.b32.xlu0 %v810, 127
        %v1068 = vpop.permute.xlu0 %1067
        %1069 = vrot.lane.b32.xlu0 %v818, 127
        %v1070 = vpop.permute.xlu0 %1069
        %1071 = vrot.lane.b32.xlu0 %v795, 127
        %v1072 = vpop.permute.xlu0 %1071
        %1073 = vrot.lane.b32.xlu0 %v803, 127
        %v1074 = vpop.permute.xlu0 %1073
        %1075 = vrot.lane.b32.xlu0 %v811, 127
        %v1076 = vpop.permute.xlu0 %1075
        %1077 = vrot.lane.b32.xlu0 %v819, 127
        %v1078 = vpop.permute.xlu0 %1077
        %1079 = vrot.lane.b32.xlu0 %v796, 127
        %v1080 = vpop.permute.xlu0 %1079
        %1081 = vrot.lane.b32.xlu0 %v804, 127
        %v1082 = vpop.permute.xlu0 %1081
        %1083 = vrot.lane.b32.xlu0 %v812, 127
        %v1084 = vpop.permute.xlu0 %1083
        %1085 = vrot.lane.b32.xlu0 %v820, 127
        %v1086 = vpop.permute.xlu0 %1085
        %vm1087 = vcmp.lt.s32.totalorder %v822, 127
        %v1088 = vsel %vm1087, %v1072, %v1080
        %v1089 = vsel %vm1087, %v1074, %v1082
        %v1090 = vsel %vm1087, %v1076, %v1084
        %v1091 = vsel %vm1087, %v1078, %v1086
        %v1092 = vsel %vm1087, %v1064, %v1072
        %v1093 = vsel %vm1087, %v1066, %v1074
        %v1094 = vsel %vm1087, %v1068, %v1076
        %v1095 = vsel %vm1087, %v1070, %v1078
        %v1096 = vsel %vm1087, %v1056, %v1064
        %v1097 = vsel %vm1087, %v1058, %v1066
        %v1098 = vsel %vm1087, %v1060, %v1068
        %v1099 = vsel %vm1087, %v1062, %v1070
        %v1100 = vsel %vm1087, %v1048, %v1056
        %v1101 = vsel %vm1087, %v1050, %v1058
        %v1102 = vsel %vm1087, %v1052, %v1060
        %v1103 = vsel %vm1087, %v1054, %v1062
        %v1104 = vsel %vm1087, %v1040, %v1048
        %v1105 = vsel %vm1087, %v1042, %v1050
        %v1106 = vsel %vm1087, %v1044, %v1052
        %v1107 = vsel %vm1087, %v1046, %v1054
        %v1108 = vsel %vm1087, %v1032, %v1040
        %v1109 = vsel %vm1087, %v1034, %v1042
        %v1110 = vsel %vm1087, %v1036, %v1044
        %v1111 = vsel %vm1087, %v1038, %v1046
        %v1112 = vsel %vm1087, %v1024, %v1032
        %v1113 = vsel %vm1087, %v1026, %v1034
        %v1114 = vsel %vm1087, %v1028, %v1036
        %v1115 = vsel %vm1087, %v1030, %v1038
        %v1116 = vsel %vm1087, %v1080, %v1024
        %v1117 = vsel %vm1087, %v1082, %v1026
        %v1118 = vsel %vm1087, %v1084, %v1028
        %v1119 = vsel %vm1087, %v1086, %v1030
        %v1120 = vsel %vm854, 1, 0
        %v1121 = vsel %vm855, 1, 0
        %v1122 = vsel %vm856, 1, 0
        %v1123 = vsel %vm857, 1, 0
        %v1124 = vsel %vm858, 1, 0
        %v1125 = vsel %vm859, 1, 0
        %v1126 = vsel %vm860, 1, 0
        %v1127 = vsel %vm861, 1, 0
        %vm1128 = vcmp.eq.s32.totalorder %v1120, 1
        %vm1129 = vcmp.eq.s32.totalorder %v1121, 1
        %vm1130 = vcmp.eq.s32.totalorder %v1122, 1
        %vm1131 = vcmp.eq.s32.totalorder %v1123, 1
        %vm1132 = vcmp.eq.s32.totalorder %v1124, 1
        %vm1133 = vcmp.eq.s32.totalorder %v1125, 1
        %vm1134 = vcmp.eq.s32.totalorder %v1126, 1
        %vm1135 = vcmp.eq.s32.totalorder %v1127, 1
        %v1136 = vsel %vm1128, %v1112, 0.0
        %v1137 = vsel %vm1129, %v1108, 0.0
        %v1138 = vsel %vm1130, %v1104, 0.0
        %v1139 = vsel %vm1131, %v1100, 0.0
        %v1140 = vsel %vm1132, %v1096, 0.0
        %v1141 = vsel %vm1133, %v1092, 0.0
        %v1142 = vsel %vm1134, %v1088, 0.0
        %v1143 = vsel %vm1135, %v1116, 0.0
        %v1144 = vsel %vm1128, %v1113, 0.0
        %v1145 = vsel %vm1129, %v1109, 0.0
        %v1146 = vsel %vm1130, %v1105, 0.0
        %v1147 = vsel %vm1131, %v1101, 0.0
        %v1148 = vsel %vm1132, %v1097, 0.0
        %v1149 = vsel %vm1133, %v1093, 0.0
        %v1150 = vsel %vm1134, %v1089, 0.0
        %v1151 = vsel %vm1135, %v1117, 0.0
        %v1152 = vsel %vm1128, %v1114, 0.0
        %v1153 = vsel %vm1129, %v1110, 0.0
        %v1154 = vsel %vm1130, %v1106, 0.0
        %v1155 = vsel %vm1131, %v1102, 0.0
        %v1156 = vsel %vm1132, %v1098, 0.0
        %v1157 = vsel %vm1133, %v1094, 0.0
        %v1158 = vsel %vm1134, %v1090, 0.0
        %v1159 = vsel %vm1135, %v1118, 0.0
        %v1160 = vsel %vm1128, %v1115, 0.0
        %v1161 = vsel %vm1129, %v1111, 0.0
        %v1162 = vsel %vm1130, %v1107, 0.0
        %v1163 = vsel %vm1131, %v1103, 0.0
        %v1164 = vsel %vm1132, %v1099, 0.0
        %v1165 = vsel %vm1133, %v1095, 0.0
        %v1166 = vsel %vm1134, %v1091, 0.0
        %v1167 = vsel %vm1135, %v1119, 0.0
        %1168 = vset.pattern.permute.xlu0 5
        %1169 = vperm.xlu0 %1168, %v247
        %v1170 = vpop.permute.xlu0 %1169
        %1172 = vset.pattern.permute.xlu0 5
        %1173 = vperm.xlu0 %1172, %v248
        %v1174 = vpop.permute.xlu0 %1173
        %1176 = vset.pattern.permute.xlu0 5
        %1177 = vperm.xlu0 %1176, %v249
        %v1178 = vpop.permute.xlu0 %1177
        %1180 = vset.pattern.permute.xlu0 5
        %1181 = vperm.xlu0 %1180, %v250
        %v1182 = vpop.permute.xlu0 %1181
        %v1184 = vmul.f32 %v991, %v1170
        %v1185 = vmul.f32 %v992, %v1170
        %v1186 = vmul.f32 %v993, %v1170
        %v1187 = vmul.f32 %v994, %v1170
        %v1188 = vmul.f32 %v995, %v1170
        %v1189 = vmul.f32 %v996, %v1170
        %v1190 = vmul.f32 %v997, %v1170
        %v1191 = vmul.f32 %v998, %v1170
        %v1192 = vmul.f32 %v999, %v1174
        %v1193 = vmul.f32 %v1000, %v1174
        %v1194 = vmul.f32 %v1001, %v1174
        %v1195 = vmul.f32 %v1002, %v1174
        %v1196 = vmul.f32 %v1003, %v1174
        %v1197 = vmul.f32 %v1004, %v1174
        %v1198 = vmul.f32 %v1005, %v1174
        %v1199 = vmul.f32 %v1006, %v1174
        %v1200 = vmul.f32 %v1007, %v1178
        %v1201 = vmul.f32 %v1008, %v1178
        %v1202 = vmul.f32 %v1009, %v1178
        %v1203 = vmul.f32 %v1010, %v1178
        %v1204 = vmul.f32 %v1011, %v1178
        %v1205 = vmul.f32 %v1012, %v1178
        %v1206 = vmul.f32 %v1013, %v1178
        %v1207 = vmul.f32 %v1014, %v1178
        %v1208 = vmul.f32 %v1015, %v1182
        %v1209 = vmul.f32 %v1016, %v1182
        %v1210 = vmul.f32 %v1017, %v1182
        %v1211 = vmul.f32 %v1018, %v1182
        %v1212 = vmul.f32 %v1019, %v1182
        %v1213 = vmul.f32 %v1020, %v1182
        %v1214 = vmul.f32 %v1021, %v1182
        %v1215 = vmul.f32 %v1022, %v1182
        %1216 = vset.pattern.permute.xlu0 6
        %1217 = vperm.xlu0 %1216, %v247
        %v1218 = vpop.permute.xlu0 %1217
        %1220 = vset.pattern.permute.xlu0 6
        %1221 = vperm.xlu0 %1220, %v248
        %v1222 = vpop.permute.xlu0 %1221
        %1224 = vset.pattern.permute.xlu0 6
        %1225 = vperm.xlu0 %1224, %v249
        %v1226 = vpop.permute.xlu0 %1225
        %1228 = vset.pattern.permute.xlu0 6
        %1229 = vperm.xlu0 %1228, %v250
        %v1230 = vpop.permute.xlu0 %1229
        %v1232 = vmul.f32 %v789, %v1218
        %v1233 = vmul.f32 %v790, %v1218
        %v1234 = vmul.f32 %v791, %v1218
        %v1235 = vmul.f32 %v792, %v1218
        %v1236 = vmul.f32 %v793, %v1218
        %v1237 = vmul.f32 %v794, %v1218
        %v1238 = vmul.f32 %v795, %v1218
        %v1239 = vmul.f32 %v796, %v1218
        %v1240 = vmul.f32 %v797, %v1222
        %v1241 = vmul.f32 %v798, %v1222
        %v1242 = vmul.f32 %v799, %v1222
        %v1243 = vmul.f32 %v800, %v1222
        %v1244 = vmul.f32 %v801, %v1222
        %v1245 = vmul.f32 %v802, %v1222
        %v1246 = vmul.f32 %v803, %v1222
        %v1247 = vmul.f32 %v804, %v1222
        %v1248 = vmul.f32 %v805, %v1226
        %v1249 = vmul.f32 %v806, %v1226
        %v1250 = vmul.f32 %v807, %v1226
        %v1251 = vmul.f32 %v808, %v1226
        %v1252 = vmul.f32 %v809, %v1226
        %v1253 = vmul.f32 %v810, %v1226
        %v1254 = vmul.f32 %v811, %v1226
        %v1255 = vmul.f32 %v812, %v1226
        %v1256 = vmul.f32 %v813, %v1230
        %v1257 = vmul.f32 %v814, %v1230
        %v1258 = vmul.f32 %v815, %v1230
        %v1259 = vmul.f32 %v816, %v1230
        %v1260 = vmul.f32 %v817, %v1230
        %v1261 = vmul.f32 %v818, %v1230
        %v1262 = vmul.f32 %v819, %v1230
        %v1263 = vmul.f32 %v820, %v1230
        %v1264 = vadd.f32 %v1184, %v1232
        %v1265 = vadd.f32 %v1185, %v1233
        %v1266 = vadd.f32 %v1186, %v1234
        %v1267 = vadd.f32 %v1187, %v1235
        %v1268 = vadd.f32 %v1188, %v1236
        %v1269 = vadd.f32 %v1189, %v1237
        %v1270 = vadd.f32 %v1190, %v1238
        %v1271 = vadd.f32 %v1191, %v1239
        %v1272 = vadd.f32 %v1192, %v1240
        %v1273 = vadd.f32 %v1193, %v1241
        %v1274 = vadd.f32 %v1194, %v1242
        %v1275 = vadd.f32 %v1195, %v1243
        %v1276 = vadd.f32 %v1196, %v1244
        %v1277 = vadd.f32 %v1197, %v1245
        %v1278 = vadd.f32 %v1198, %v1246
        %v1279 = vadd.f32 %v1199, %v1247
        %v1280 = vadd.f32 %v1200, %v1248
        %v1281 = vadd.f32 %v1201, %v1249
        %v1282 = vadd.f32 %v1202, %v1250
        %v1283 = vadd.f32 %v1203, %v1251
        %v1284 = vadd.f32 %v1204, %v1252
        %v1285 = vadd.f32 %v1205, %v1253
        %v1286 = vadd.f32 %v1206, %v1254
        %v1287 = vadd.f32 %v1207, %v1255
        %v1288 = vadd.f32 %v1208, %v1256
        %v1289 = vadd.f32 %v1209, %v1257
        %v1290 = vadd.f32 %v1210, %v1258
        %v1291 = vadd.f32 %v1211, %v1259
        %v1292 = vadd.f32 %v1212, %v1260
        %v1293 = vadd.f32 %v1213, %v1261
        %v1294 = vadd.f32 %v1214, %v1262
        %v1295 = vadd.f32 %v1215, %v1263
        %1296 = vset.pattern.permute.xlu0 7
        %1297 = vperm.xlu0 %1296, %v247
        %v1298 = vpop.permute.xlu0 %1297
        %1300 = vset.pattern.permute.xlu0 7
        %1301 = vperm.xlu0 %1300, %v248
        %v1302 = vpop.permute.xlu0 %1301
        %1304 = vset.pattern.permute.xlu0 7
        %1305 = vperm.xlu0 %1304, %v249
        %v1306 = vpop.permute.xlu0 %1305
        %1308 = vset.pattern.permute.xlu0 7
        %1309 = vperm.xlu0 %1308, %v250
        %v1310 = vpop.permute.xlu0 %1309
        %v1312 = vmul.f32 %v1136, %v1298
        %v1313 = vmul.f32 %v1137, %v1298
        %v1314 = vmul.f32 %v1138, %v1298
        %v1315 = vmul.f32 %v1139, %v1298
        %v1316 = vmul.f32 %v1140, %v1298
        %v1317 = vmul.f32 %v1141, %v1298
        %v1318 = vmul.f32 %v1142, %v1298
        %v1319 = vmul.f32 %v1143, %v1298
        %v1320 = vmul.f32 %v1144, %v1302
        %v1321 = vmul.f32 %v1145, %v1302
        %v1322 = vmul.f32 %v1146, %v1302
        %v1323 = vmul.f32 %v1147, %v1302
        %v1324 = vmul.f32 %v1148, %v1302
        %v1325 = vmul.f32 %v1149, %v1302
        %v1326 = vmul.f32 %v1150, %v1302
        %v1327 = vmul.f32 %v1151, %v1302
        %v1328 = vmul.f32 %v1152, %v1306
        %v1329 = vmul.f32 %v1153, %v1306
        %v1330 = vmul.f32 %v1154, %v1306
        %v1331 = vmul.f32 %v1155, %v1306
        %v1332 = vmul.f32 %v1156, %v1306
        %v1333 = vmul.f32 %v1157, %v1306
        %v1334 = vmul.f32 %v1158, %v1306
        %v1335 = vmul.f32 %v1159, %v1306
        %v1336 = vmul.f32 %v1160, %v1310
        %v1337 = vmul.f32 %v1161, %v1310
        %v1338 = vmul.f32 %v1162, %v1310
        %v1339 = vmul.f32 %v1163, %v1310
        %v1340 = vmul.f32 %v1164, %v1310
        %v1341 = vmul.f32 %v1165, %v1310
        %v1342 = vmul.f32 %v1166, %v1310
        %v1343 = vmul.f32 %v1167, %v1310
        %v1344 = vadd.f32 %v1264, %v1312
        %v1345 = vadd.f32 %v1265, %v1313
        %v1346 = vadd.f32 %v1266, %v1314
        %v1347 = vadd.f32 %v1267, %v1315
        %v1348 = vadd.f32 %v1268, %v1316
        %v1349 = vadd.f32 %v1269, %v1317
        %v1350 = vadd.f32 %v1270, %v1318
        %v1351 = vadd.f32 %v1271, %v1319
        %v1352 = vadd.f32 %v1272, %v1320
        %v1353 = vadd.f32 %v1273, %v1321
        %v1354 = vadd.f32 %v1274, %v1322
        %v1355 = vadd.f32 %v1275, %v1323
        %v1356 = vadd.f32 %v1276, %v1324
        %v1357 = vadd.f32 %v1277, %v1325
        %v1358 = vadd.f32 %v1278, %v1326
        %v1359 = vadd.f32 %v1279, %v1327
        %v1360 = vadd.f32 %v1280, %v1328
        %v1361 = vadd.f32 %v1281, %v1329
        %v1362 = vadd.f32 %v1282, %v1330
        %v1363 = vadd.f32 %v1283, %v1331
        %v1364 = vadd.f32 %v1284, %v1332
        %v1365 = vadd.f32 %v1285, %v1333
        %v1366 = vadd.f32 %v1286, %v1334
        %v1367 = vadd.f32 %v1287, %v1335
        %v1368 = vadd.f32 %v1288, %v1336
        %v1369 = vadd.f32 %v1289, %v1337
        %v1370 = vadd.f32 %v1290, %v1338
        %v1371 = vadd.f32 %v1291, %v1339
        %v1372 = vadd.f32 %v1292, %v1340
        %v1373 = vadd.f32 %v1293, %v1341
        %v1374 = vadd.f32 %v1294, %v1342
        %v1375 = vadd.f32 %v1295, %v1343
        %1376 = vrot.lane.b32.xlu0 %v1344, 16
        %v1377 = vpop.permute.xlu0 %1376
        %1378 = vrot.lane.b32.xlu0 %v1352, 16
        %v1379 = vpop.permute.xlu0 %1378
        %1380 = vrot.lane.b32.xlu0 %v1360, 16
        %v1381 = vpop.permute.xlu0 %1380
        %1382 = vrot.lane.b32.xlu0 %v1368, 16
        %v1383 = vpop.permute.xlu0 %1382
        %1384 = vrot.lane.b32.xlu0 %v1345, 16
        %v1385 = vpop.permute.xlu0 %1384
        %1386 = vrot.lane.b32.xlu0 %v1353, 16
        %v1387 = vpop.permute.xlu0 %1386
        %1388 = vrot.lane.b32.xlu0 %v1361, 16
        %v1389 = vpop.permute.xlu0 %1388
        %1390 = vrot.lane.b32.xlu0 %v1369, 16
        %v1391 = vpop.permute.xlu0 %1390
        %1392 = vrot.lane.b32.xlu0 %v1346, 16
        %v1393 = vpop.permute.xlu0 %1392
        %1394 = vrot.lane.b32.xlu0 %v1354, 16
        %v1395 = vpop.permute.xlu0 %1394
        %1396 = vrot.lane.b32.xlu0 %v1362, 16
        %v1397 = vpop.permute.xlu0 %1396
        %1398 = vrot.lane.b32.xlu0 %v1370, 16
        %v1399 = vpop.permute.xlu0 %1398
        %1400 = vrot.lane.b32.xlu0 %v1347, 16
        %v1401 = vpop.permute.xlu0 %1400
        %1402 = vrot.lane.b32.xlu0 %v1355, 16
        %v1403 = vpop.permute.xlu0 %1402
        %1404 = vrot.lane.b32.xlu0 %v1363, 16
        %v1405 = vpop.permute.xlu0 %1404
        %1406 = vrot.lane.b32.xlu0 %v1371, 16
        %v1407 = vpop.permute.xlu0 %1406
        %1408 = vrot.lane.b32.xlu0 %v1348, 16
        %v1409 = vpop.permute.xlu0 %1408
        %1410 = vrot.lane.b32.xlu0 %v1356, 16
        %v1411 = vpop.permute.xlu0 %1410
        %1412 = vrot.lane.b32.xlu0 %v1364, 16
        %v1413 = vpop.permute.xlu0 %1412
        %1414 = vrot.lane.b32.xlu0 %v1372, 16
        %v1415 = vpop.permute.xlu0 %1414
        %1416 = vrot.lane.b32.xlu0 %v1349, 16
        %v1417 = vpop.permute.xlu0 %1416
        %1418 = vrot.lane.b32.xlu0 %v1357, 16
        %v1419 = vpop.permute.xlu0 %1418
        %1420 = vrot.lane.b32.xlu0 %v1365, 16
        %v1421 = vpop.permute.xlu0 %1420
        %1422 = vrot.lane.b32.xlu0 %v1373, 16
        %v1423 = vpop.permute.xlu0 %1422
        %1424 = vrot.lane.b32.xlu0 %v1350, 16
        %v1425 = vpop.permute.xlu0 %1424
        %1426 = vrot.lane.b32.xlu0 %v1358, 16
        %v1427 = vpop.permute.xlu0 %1426
        %1428 = vrot.lane.b32.xlu0 %v1366, 16
        %v1429 = vpop.permute.xlu0 %1428
        %1430 = vrot.lane.b32.xlu0 %v1374, 16
        %v1431 = vpop.permute.xlu0 %1430
        %1432 = vrot.lane.b32.xlu0 %v1351, 16
        %v1433 = vpop.permute.xlu0 %1432
        %1434 = vrot.lane.b32.xlu0 %v1359, 16
        %v1435 = vpop.permute.xlu0 %1434
        %1436 = vrot.lane.b32.xlu0 %v1367, 16
        %v1437 = vpop.permute.xlu0 %1436
        %1438 = vrot.lane.b32.xlu0 %v1375, 16
        %v1439 = vpop.permute.xlu0 %1438
        %vm1440 = vcmp.lt.s32.totalorder %v822, 16
        %v1441 = vsel %vm1440, %v1425, %v1433
        %v1442 = vsel %vm1440, %v1427, %v1435
        %v1443 = vsel %vm1440, %v1429, %v1437
        %v1444 = vsel %vm1440, %v1431, %v1439
        %v1445 = vsel %vm1440, %v1417, %v1425
        %v1446 = vsel %vm1440, %v1419, %v1427
        %v1447 = vsel %vm1440, %v1421, %v1429
        %v1448 = vsel %vm1440, %v1423, %v1431
        %v1449 = vsel %vm1440, %v1409, %v1417
        %v1450 = vsel %vm1440, %v1411, %v1419
        %v1451 = vsel %vm1440, %v1413, %v1421
        %v1452 = vsel %vm1440, %v1415, %v1423
        %v1453 = vsel %vm1440, %v1401, %v1409
        %v1454 = vsel %vm1440, %v1403, %v1411
        %v1455 = vsel %vm1440, %v1405, %v1413
        %v1456 = vsel %vm1440, %v1407, %v1415
        %v1457 = vsel %vm1440, %v1393, %v1401
        %v1458 = vsel %vm1440, %v1395, %v1403
        %v1459 = vsel %vm1440, %v1397, %v1405
        %v1460 = vsel %vm1440, %v1399, %v1407
        %v1461 = vsel %vm1440, %v1385, %v1393
        %v1462 = vsel %vm1440, %v1387, %v1395
        %v1463 = vsel %vm1440, %v1389, %v1397
        %v1464 = vsel %vm1440, %v1391, %v1399
        %v1465 = vsel %vm1440, %v1377, %v1385
        %v1466 = vsel %vm1440, %v1379, %v1387
        %v1467 = vsel %vm1440, %v1381, %v1389
        %v1468 = vsel %vm1440, %v1383, %v1391
        %v1469 = vsel %vm1440, %v1433, %v1377
        %v1470 = vsel %vm1440, %v1435, %v1379
        %v1471 = vsel %vm1440, %v1437, %v1381
        %v1472 = vsel %vm1440, %v1439, %v1383
        %v1473 = vsel %vm862, 1, 0
        %v1474 = vsel %vm863, 1, 0
        %v1475 = vsel %vm864, 1, 0
        %v1476 = vsel %vm865, 1, 0
        %v1477 = vsel %vm866, 1, 0
        %v1478 = vsel %vm867, 1, 0
        %v1479 = vsel %vm868, 1, 0
        %v1480 = vsel %vm869, 1, 0
        %vm1481 = vcmp.eq.s32.totalorder %v1473, 1
        %vm1482 = vcmp.eq.s32.totalorder %v1474, 1
        %vm1483 = vcmp.eq.s32.totalorder %v1475, 1
        %vm1484 = vcmp.eq.s32.totalorder %v1476, 1
        %vm1485 = vcmp.eq.s32.totalorder %v1477, 1
        %vm1486 = vcmp.eq.s32.totalorder %v1478, 1
        %vm1487 = vcmp.eq.s32.totalorder %v1479, 1
        %vm1488 = vcmp.eq.s32.totalorder %v1480, 1
        %v1489 = vsel %vm1481, %v1469, 0.0
        %v1490 = vsel %vm1482, %v1465, 0.0
        %v1491 = vsel %vm1483, %v1461, 0.0
        %v1492 = vsel %vm1484, %v1457, 0.0
        %v1493 = vsel %vm1485, %v1453, 0.0
        %v1494 = vsel %vm1486, %v1449, 0.0
        %v1495 = vsel %vm1487, %v1445, 0.0
        %v1496 = vsel %vm1488, %v1441, 0.0
        %v1497 = vsel %vm1481, %v1470, 0.0
        %v1498 = vsel %vm1482, %v1466, 0.0
        %v1499 = vsel %vm1483, %v1462, 0.0
        %v1500 = vsel %vm1484, %v1458, 0.0
        %v1501 = vsel %vm1485, %v1454, 0.0
        %v1502 = vsel %vm1486, %v1450, 0.0
        %v1503 = vsel %vm1487, %v1446, 0.0
        %v1504 = vsel %vm1488, %v1442, 0.0
        %v1505 = vsel %vm1481, %v1471, 0.0
        %v1506 = vsel %vm1482, %v1467, 0.0
        %v1507 = vsel %vm1483, %v1463, 0.0
        %v1508 = vsel %vm1484, %v1459, 0.0
        %v1509 = vsel %vm1485, %v1455, 0.0
        %v1510 = vsel %vm1486, %v1451, 0.0
        %v1511 = vsel %vm1487, %v1447, 0.0
        %v1512 = vsel %vm1488, %v1443, 0.0
        %v1513 = vsel %vm1481, %v1472, 0.0
        %v1514 = vsel %vm1482, %v1468, 0.0
        %v1515 = vsel %vm1483, %v1464, 0.0
        %v1516 = vsel %vm1484, %v1460, 0.0
        %v1517 = vsel %vm1485, %v1456, 0.0
        %v1518 = vsel %vm1486, %v1452, 0.0
        %v1519 = vsel %vm1487, %v1448, 0.0
        %v1520 = vsel %vm1488, %v1444, 0.0
        %1521 = vset.pattern.permute.xlu0 8
        %1522 = vperm.xlu0 %1521, %v247
        %v1523 = vpop.permute.xlu0 %1522
        %1525 = vset.pattern.permute.xlu0 8
        %1526 = vperm.xlu0 %1525, %v248
        %v1527 = vpop.permute.xlu0 %1526
        %1529 = vset.pattern.permute.xlu0 8
        %1530 = vperm.xlu0 %1529, %v249
        %v1531 = vpop.permute.xlu0 %1530
        %1533 = vset.pattern.permute.xlu0 8
        %1534 = vperm.xlu0 %1533, %v250
        %v1535 = vpop.permute.xlu0 %1534
        %v1537 = vmul.f32 %v991, %v1523
        %v1538 = vmul.f32 %v992, %v1523
        %v1539 = vmul.f32 %v993, %v1523
        %v1540 = vmul.f32 %v994, %v1523
        %v1541 = vmul.f32 %v995, %v1523
        %v1542 = vmul.f32 %v996, %v1523
        %v1543 = vmul.f32 %v997, %v1523
        %v1544 = vmul.f32 %v998, %v1523
        %v1545 = vmul.f32 %v999, %v1527
        %v1546 = vmul.f32 %v1000, %v1527
        %v1547 = vmul.f32 %v1001, %v1527
        %v1548 = vmul.f32 %v1002, %v1527
        %v1549 = vmul.f32 %v1003, %v1527
        %v1550 = vmul.f32 %v1004, %v1527
        %v1551 = vmul.f32 %v1005, %v1527
        %v1552 = vmul.f32 %v1006, %v1527
        %v1553 = vmul.f32 %v1007, %v1531
        %v1554 = vmul.f32 %v1008, %v1531
        %v1555 = vmul.f32 %v1009, %v1531
        %v1556 = vmul.f32 %v1010, %v1531
        %v1557 = vmul.f32 %v1011, %v1531
        %v1558 = vmul.f32 %v1012, %v1531
        %v1559 = vmul.f32 %v1013, %v1531
        %v1560 = vmul.f32 %v1014, %v1531
        %v1561 = vmul.f32 %v1015, %v1535
        %v1562 = vmul.f32 %v1016, %v1535
        %v1563 = vmul.f32 %v1017, %v1535
        %v1564 = vmul.f32 %v1018, %v1535
        %v1565 = vmul.f32 %v1019, %v1535
        %v1566 = vmul.f32 %v1020, %v1535
        %v1567 = vmul.f32 %v1021, %v1535
        %v1568 = vmul.f32 %v1022, %v1535
        %1569 = vset.pattern.permute.xlu0 9
        %1570 = vperm.xlu0 %1569, %v247
        %v1571 = vpop.permute.xlu0 %1570
        %1573 = vset.pattern.permute.xlu0 9
        %1574 = vperm.xlu0 %1573, %v248
        %v1575 = vpop.permute.xlu0 %1574
        %1577 = vset.pattern.permute.xlu0 9
        %1578 = vperm.xlu0 %1577, %v249
        %v1579 = vpop.permute.xlu0 %1578
        %1581 = vset.pattern.permute.xlu0 9
        %1582 = vperm.xlu0 %1581, %v250
        %v1583 = vpop.permute.xlu0 %1582
        %v1585 = vmul.f32 %v789, %v1571
        %v1586 = vmul.f32 %v790, %v1571
        %v1587 = vmul.f32 %v791, %v1571
        %v1588 = vmul.f32 %v792, %v1571
        %v1589 = vmul.f32 %v793, %v1571
        %v1590 = vmul.f32 %v794, %v1571
        %v1591 = vmul.f32 %v795, %v1571
        %v1592 = vmul.f32 %v796, %v1571
        %v1593 = vmul.f32 %v797, %v1575
        %v1594 = vmul.f32 %v798, %v1575
        %v1595 = vmul.f32 %v799, %v1575
        %v1596 = vmul.f32 %v800, %v1575
        %v1597 = vmul.f32 %v801, %v1575
        %v1598 = vmul.f32 %v802, %v1575
        %v1599 = vmul.f32 %v803, %v1575
        %v1600 = vmul.f32 %v804, %v1575
        %v1601 = vmul.f32 %v805, %v1579
        %v1602 = vmul.f32 %v806, %v1579
        %v1603 = vmul.f32 %v807, %v1579
        %v1604 = vmul.f32 %v808, %v1579
        %v1605 = vmul.f32 %v809, %v1579
        %v1606 = vmul.f32 %v810, %v1579
        %v1607 = vmul.f32 %v811, %v1579
        %v1608 = vmul.f32 %v812, %v1579
        %v1609 = vmul.f32 %v813, %v1583
        %v1610 = vmul.f32 %v814, %v1583
        %v1611 = vmul.f32 %v815, %v1583
        %v1612 = vmul.f32 %v816, %v1583
        %v1613 = vmul.f32 %v817, %v1583
        %v1614 = vmul.f32 %v818, %v1583
        %v1615 = vmul.f32 %v819, %v1583
        %v1616 = vmul.f32 %v820, %v1583
        %v1617 = vadd.f32 %v1537, %v1585
        %v1618 = vadd.f32 %v1538, %v1586
        %v1619 = vadd.f32 %v1539, %v1587
        %v1620 = vadd.f32 %v1540, %v1588
        %v1621 = vadd.f32 %v1541, %v1589
        %v1622 = vadd.f32 %v1542, %v1590
        %v1623 = vadd.f32 %v1543, %v1591
        %v1624 = vadd.f32 %v1544, %v1592
        %v1625 = vadd.f32 %v1545, %v1593
        %v1626 = vadd.f32 %v1546, %v1594
        %v1627 = vadd.f32 %v1547, %v1595
        %v1628 = vadd.f32 %v1548, %v1596
        %v1629 = vadd.f32 %v1549, %v1597
        %v1630 = vadd.f32 %v1550, %v1598
        %v1631 = vadd.f32 %v1551, %v1599
        %v1632 = vadd.f32 %v1552, %v1600
        %v1633 = vadd.f32 %v1553, %v1601
        %v1634 = vadd.f32 %v1554, %v1602
        %v1635 = vadd.f32 %v1555, %v1603
        %v1636 = vadd.f32 %v1556, %v1604
        %v1637 = vadd.f32 %v1557, %v1605
        %v1638 = vadd.f32 %v1558, %v1606
        %v1639 = vadd.f32 %v1559, %v1607
        %v1640 = vadd.f32 %v1560, %v1608
        %v1641 = vadd.f32 %v1561, %v1609
        %v1642 = vadd.f32 %v1562, %v1610
        %v1643 = vadd.f32 %v1563, %v1611
        %v1644 = vadd.f32 %v1564, %v1612
        %v1645 = vadd.f32 %v1565, %v1613
        %v1646 = vadd.f32 %v1566, %v1614
        %v1647 = vadd.f32 %v1567, %v1615
        %v1648 = vadd.f32 %v1568, %v1616
        %1649 = vset.pattern.permute.xlu0 10
        %1650 = vperm.xlu0 %1649, %v247
        %v1651 = vpop.permute.xlu0 %1650
        %1653 = vset.pattern.permute.xlu0 10
        %1654 = vperm.xlu0 %1653, %v248
        %v1655 = vpop.permute.xlu0 %1654
        %1657 = vset.pattern.permute.xlu0 10
        %1658 = vperm.xlu0 %1657, %v249
        %v1659 = vpop.permute.xlu0 %1658
        %1661 = vset.pattern.permute.xlu0 10
        %1662 = vperm.xlu0 %1661, %v250
        %v1663 = vpop.permute.xlu0 %1662
        %v1665 = vmul.f32 %v1136, %v1651
        %v1666 = vmul.f32 %v1137, %v1651
        %v1667 = vmul.f32 %v1138, %v1651
        %v1668 = vmul.f32 %v1139, %v1651
        %v1669 = vmul.f32 %v1140, %v1651
        %v1670 = vmul.f32 %v1141, %v1651
        %v1671 = vmul.f32 %v1142, %v1651
        %v1672 = vmul.f32 %v1143, %v1651
        %v1673 = vmul.f32 %v1144, %v1655
        %v1674 = vmul.f32 %v1145, %v1655
        %v1675 = vmul.f32 %v1146, %v1655
        %v1676 = vmul.f32 %v1147, %v1655
        %v1677 = vmul.f32 %v1148, %v1655
        %v1678 = vmul.f32 %v1149, %v1655
        %v1679 = vmul.f32 %v1150, %v1655
        %v1680 = vmul.f32 %v1151, %v1655
        %v1681 = vmul.f32 %v1152, %v1659
        %v1682 = vmul.f32 %v1153, %v1659
        %v1683 = vmul.f32 %v1154, %v1659
        %v1684 = vmul.f32 %v1155, %v1659
        %v1685 = vmul.f32 %v1156, %v1659
        %v1686 = vmul.f32 %v1157, %v1659
        %v1687 = vmul.f32 %v1158, %v1659
        %v1688 = vmul.f32 %v1159, %v1659
        %v1689 = vmul.f32 %v1160, %v1663
        %v1690 = vmul.f32 %v1161, %v1663
        %v1691 = vmul.f32 %v1162, %v1663
        %v1692 = vmul.f32 %v1163, %v1663
        %v1693 = vmul.f32 %v1164, %v1663
        %v1694 = vmul.f32 %v1165, %v1663
        %v1695 = vmul.f32 %v1166, %v1663
        %v1696 = vmul.f32 %v1167, %v1663
        %v1697 = vadd.f32 %v1617, %v1665
        %v1698 = vadd.f32 %v1618, %v1666
        %v1699 = vadd.f32 %v1619, %v1667
        %v1700 = vadd.f32 %v1620, %v1668
        %v1701 = vadd.f32 %v1621, %v1669
        %v1702 = vadd.f32 %v1622, %v1670
        %v1703 = vadd.f32 %v1623, %v1671
        %v1704 = vadd.f32 %v1624, %v1672
        %v1705 = vadd.f32 %v1625, %v1673
        %v1706 = vadd.f32 %v1626, %v1674
        %v1707 = vadd.f32 %v1627, %v1675
        %v1708 = vadd.f32 %v1628, %v1676
        %v1709 = vadd.f32 %v1629, %v1677
        %v1710 = vadd.f32 %v1630, %v1678
        %v1711 = vadd.f32 %v1631, %v1679
        %v1712 = vadd.f32 %v1632, %v1680
        %v1713 = vadd.f32 %v1633, %v1681
        %v1714 = vadd.f32 %v1634, %v1682
        %v1715 = vadd.f32 %v1635, %v1683
        %v1716 = vadd.f32 %v1636, %v1684
        %v1717 = vadd.f32 %v1637, %v1685
        %v1718 = vadd.f32 %v1638, %v1686
        %v1719 = vadd.f32 %v1639, %v1687
        %v1720 = vadd.f32 %v1640, %v1688
        %v1721 = vadd.f32 %v1641, %v1689
        %v1722 = vadd.f32 %v1642, %v1690
        %v1723 = vadd.f32 %v1643, %v1691
        %v1724 = vadd.f32 %v1644, %v1692
        %v1725 = vadd.f32 %v1645, %v1693
        %v1726 = vadd.f32 %v1646, %v1694
        %v1727 = vadd.f32 %v1647, %v1695
        %v1728 = vadd.f32 %v1648, %v1696
        %v1729 = vadd.f32 %v1489, %v1697
        %v1730 = vadd.f32 %v1490, %v1698
        %v1731 = vadd.f32 %v1491, %v1699
        %v1732 = vadd.f32 %v1492, %v1700
        %v1733 = vadd.f32 %v1493, %v1701
        %v1734 = vadd.f32 %v1494, %v1702
        %v1735 = vadd.f32 %v1495, %v1703
        %v1736 = vadd.f32 %v1496, %v1704
        %v1737 = vadd.f32 %v1497, %v1705
        %v1738 = vadd.f32 %v1498, %v1706
        %v1739 = vadd.f32 %v1499, %v1707
        %v1740 = vadd.f32 %v1500, %v1708
        %v1741 = vadd.f32 %v1501, %v1709
        %v1742 = vadd.f32 %v1502, %v1710
        %v1743 = vadd.f32 %v1503, %v1711
        %v1744 = vadd.f32 %v1504, %v1712
        %v1745 = vadd.f32 %v1505, %v1713
        %v1746 = vadd.f32 %v1506, %v1714
        %v1747 = vadd.f32 %v1507, %v1715
        %v1748 = vadd.f32 %v1508, %v1716
        %v1749 = vadd.f32 %v1509, %v1717
        %v1750 = vadd.f32 %v1510, %v1718
        %v1751 = vadd.f32 %v1511, %v1719
        %v1752 = vadd.f32 %v1512, %v1720
        %v1753 = vadd.f32 %v1513, %v1721
        %v1754 = vadd.f32 %v1514, %v1722
        %v1755 = vadd.f32 %v1515, %v1723
        %v1756 = vadd.f32 %v1516, %v1724
        %v1757 = vadd.f32 %v1517, %v1725
        %v1758 = vadd.f32 %v1518, %v1726
        %v1759 = vadd.f32 %v1519, %v1727
        %v1760 = vadd.f32 %v1520, %v1728
        %1761 = vset.pattern.permute.xlu0 11
        %1762 = vperm.xlu0 %1761, %v247
        %v1763 = vpop.permute.xlu0 %1762
        %1765 = vset.pattern.permute.xlu0 11
        %1766 = vperm.xlu0 %1765, %v248
        %v1767 = vpop.permute.xlu0 %1766
        %1769 = vset.pattern.permute.xlu0 11
        %1770 = vperm.xlu0 %1769, %v249
        %v1771 = vpop.permute.xlu0 %1770
        %1773 = vset.pattern.permute.xlu0 11
        %1774 = vperm.xlu0 %1773, %v250
        %v1775 = vpop.permute.xlu0 %1774
        %v1777 = vmul.f32 %v991, %v1763
        %v1778 = vmul.f32 %v992, %v1763
        %v1779 = vmul.f32 %v993, %v1763
        %v1780 = vmul.f32 %v994, %v1763
        %v1781 = vmul.f32 %v995, %v1763
        %v1782 = vmul.f32 %v996, %v1763
        %v1783 = vmul.f32 %v997, %v1763
        %v1784 = vmul.f32 %v998, %v1763
        %v1785 = vmul.f32 %v999, %v1767
        %v1786 = vmul.f32 %v1000, %v1767
        %v1787 = vmul.f32 %v1001, %v1767
        %v1788 = vmul.f32 %v1002, %v1767
        %v1789 = vmul.f32 %v1003, %v1767
        %v1790 = vmul.f32 %v1004, %v1767
        %v1791 = vmul.f32 %v1005, %v1767
        %v1792 = vmul.f32 %v1006, %v1767
        %v1793 = vmul.f32 %v1007, %v1771
        %v1794 = vmul.f32 %v1008, %v1771
        %v1795 = vmul.f32 %v1009, %v1771
        %v1796 = vmul.f32 %v1010, %v1771
        %v1797 = vmul.f32 %v1011, %v1771
        %v1798 = vmul.f32 %v1012, %v1771
        %v1799 = vmul.f32 %v1013, %v1771
        %v1800 = vmul.f32 %v1014, %v1771
        %v1801 = vmul.f32 %v1015, %v1775
        %v1802 = vmul.f32 %v1016, %v1775
        %v1803 = vmul.f32 %v1017, %v1775
        %v1804 = vmul.f32 %v1018, %v1775
        %v1805 = vmul.f32 %v1019, %v1775
        %v1806 = vmul.f32 %v1020, %v1775
        %v1807 = vmul.f32 %v1021, %v1775
        %v1808 = vmul.f32 %v1022, %v1775
        %1809 = vset.pattern.permute.xlu0 12
        %1810 = vperm.xlu0 %1809, %v247
        %v1811 = vpop.permute.xlu0 %1810
        %1813 = vset.pattern.permute.xlu0 12
        %1814 = vperm.xlu0 %1813, %v248
        %v1815 = vpop.permute.xlu0 %1814
        %1817 = vset.pattern.permute.xlu0 12
        %1818 = vperm.xlu0 %1817, %v249
        %v1819 = vpop.permute.xlu0 %1818
        %1821 = vset.pattern.permute.xlu0 12
        %1822 = vperm.xlu0 %1821, %v250
        %v1823 = vpop.permute.xlu0 %1822
        %v1825 = vmul.f32 %v789, %v1811
        %v1826 = vmul.f32 %v790, %v1811
        %v1827 = vmul.f32 %v791, %v1811
        %v1828 = vmul.f32 %v792, %v1811
        %v1829 = vmul.f32 %v793, %v1811
        %v1830 = vmul.f32 %v794, %v1811
        %v1831 = vmul.f32 %v795, %v1811
        %v1832 = vmul.f32 %v796, %v1811
        %v1833 = vmul.f32 %v797, %v1815
        %v1834 = vmul.f32 %v798, %v1815
        %v1835 = vmul.f32 %v799, %v1815
        %v1836 = vmul.f32 %v800, %v1815
        %v1837 = vmul.f32 %v801, %v1815
        %v1838 = vmul.f32 %v802, %v1815
        %v1839 = vmul.f32 %v803, %v1815
        %v1840 = vmul.f32 %v804, %v1815
        %v1841 = vmul.f32 %v805, %v1819
        %v1842 = vmul.f32 %v806, %v1819
        %v1843 = vmul.f32 %v807, %v1819
        %v1844 = vmul.f32 %v808, %v1819
        %v1845 = vmul.f32 %v809, %v1819
        %v1846 = vmul.f32 %v810, %v1819
        %v1847 = vmul.f32 %v811, %v1819
        %v1848 = vmul.f32 %v812, %v1819
        %v1849 = vmul.f32 %v813, %v1823
        %v1850 = vmul.f32 %v814, %v1823
        %v1851 = vmul.f32 %v815, %v1823
        %v1852 = vmul.f32 %v816, %v1823
        %v1853 = vmul.f32 %v817, %v1823
        %v1854 = vmul.f32 %v818, %v1823
        %v1855 = vmul.f32 %v819, %v1823
        %v1856 = vmul.f32 %v820, %v1823
        %v1857 = vadd.f32 %v1777, %v1825
        %v1858 = vadd.f32 %v1778, %v1826
        %v1859 = vadd.f32 %v1779, %v1827
        %v1860 = vadd.f32 %v1780, %v1828
        %v1861 = vadd.f32 %v1781, %v1829
        %v1862 = vadd.f32 %v1782, %v1830
        %v1863 = vadd.f32 %v1783, %v1831
        %v1864 = vadd.f32 %v1784, %v1832
        %v1865 = vadd.f32 %v1785, %v1833
        %v1866 = vadd.f32 %v1786, %v1834
        %v1867 = vadd.f32 %v1787, %v1835
        %v1868 = vadd.f32 %v1788, %v1836
        %v1869 = vadd.f32 %v1789, %v1837
        %v1870 = vadd.f32 %v1790, %v1838
        %v1871 = vadd.f32 %v1791, %v1839
        %v1872 = vadd.f32 %v1792, %v1840
        %v1873 = vadd.f32 %v1793, %v1841
        %v1874 = vadd.f32 %v1794, %v1842
        %v1875 = vadd.f32 %v1795, %v1843
        %v1876 = vadd.f32 %v1796, %v1844
        %v1877 = vadd.f32 %v1797, %v1845
        %v1878 = vadd.f32 %v1798, %v1846
        %v1879 = vadd.f32 %v1799, %v1847
        %v1880 = vadd.f32 %v1800, %v1848
        %v1881 = vadd.f32 %v1801, %v1849
        %v1882 = vadd.f32 %v1802, %v1850
        %v1883 = vadd.f32 %v1803, %v1851
        %v1884 = vadd.f32 %v1804, %v1852
        %v1885 = vadd.f32 %v1805, %v1853
        %v1886 = vadd.f32 %v1806, %v1854
        %v1887 = vadd.f32 %v1807, %v1855
        %v1888 = vadd.f32 %v1808, %v1856
        %1889 = vset.pattern.permute.xlu0 13
        %1890 = vperm.xlu0 %1889, %v247
        %v1891 = vpop.permute.xlu0 %1890
        %1893 = vset.pattern.permute.xlu0 13
        %1894 = vperm.xlu0 %1893, %v248
        %v1895 = vpop.permute.xlu0 %1894
        %1897 = vset.pattern.permute.xlu0 13
        %1898 = vperm.xlu0 %1897, %v249
        %v1899 = vpop.permute.xlu0 %1898
        %1901 = vset.pattern.permute.xlu0 13
        %1902 = vperm.xlu0 %1901, %v250
        %v1903 = vpop.permute.xlu0 %1902
        %v1905 = vmul.f32 %v1136, %v1891
        %v1906 = vmul.f32 %v1137, %v1891
        %v1907 = vmul.f32 %v1138, %v1891
        %v1908 = vmul.f32 %v1139, %v1891
        %v1909 = vmul.f32 %v1140, %v1891
        %v1910 = vmul.f32 %v1141, %v1891
        %v1911 = vmul.f32 %v1142, %v1891
        %v1912 = vmul.f32 %v1143, %v1891
        %v1913 = vmul.f32 %v1144, %v1895
        %v1914 = vmul.f32 %v1145, %v1895
        %v1915 = vmul.f32 %v1146, %v1895
        %v1916 = vmul.f32 %v1147, %v1895
        %v1917 = vmul.f32 %v1148, %v1895
        %v1918 = vmul.f32 %v1149, %v1895
        %v1919 = vmul.f32 %v1150, %v1895
        %v1920 = vmul.f32 %v1151, %v1895
        %v1921 = vmul.f32 %v1152, %v1899
        %v1922 = vmul.f32 %v1153, %v1899
        %v1923 = vmul.f32 %v1154, %v1899
        %v1924 = vmul.f32 %v1155, %v1899
        %v1925 = vmul.f32 %v1156, %v1899
        %v1926 = vmul.f32 %v1157, %v1899
        %v1927 = vmul.f32 %v1158, %v1899
        %v1928 = vmul.f32 %v1159, %v1899
        %v1929 = vmul.f32 %v1160, %v1903
        %v1930 = vmul.f32 %v1161, %v1903
        %v1931 = vmul.f32 %v1162, %v1903
        %v1932 = vmul.f32 %v1163, %v1903
        %v1933 = vmul.f32 %v1164, %v1903
        %v1934 = vmul.f32 %v1165, %v1903
        %v1935 = vmul.f32 %v1166, %v1903
        %v1936 = vmul.f32 %v1167, %v1903
        %v1937 = vadd.f32 %v1857, %v1905
        %v1938 = vadd.f32 %v1858, %v1906
        %v1939 = vadd.f32 %v1859, %v1907
        %v1940 = vadd.f32 %v1860, %v1908
        %v1941 = vadd.f32 %v1861, %v1909
        %v1942 = vadd.f32 %v1862, %v1910
        %v1943 = vadd.f32 %v1863, %v1911
        %v1944 = vadd.f32 %v1864, %v1912
        %v1945 = vadd.f32 %v1865, %v1913
        %v1946 = vadd.f32 %v1866, %v1914
        %v1947 = vadd.f32 %v1867, %v1915
        %v1948 = vadd.f32 %v1868, %v1916
        %v1949 = vadd.f32 %v1869, %v1917
        %v1950 = vadd.f32 %v1870, %v1918
        %v1951 = vadd.f32 %v1871, %v1919
        %v1952 = vadd.f32 %v1872, %v1920
        %v1953 = vadd.f32 %v1873, %v1921
        %v1954 = vadd.f32 %v1874, %v1922
        %v1955 = vadd.f32 %v1875, %v1923
        %v1956 = vadd.f32 %v1876, %v1924
        %v1957 = vadd.f32 %v1877, %v1925
        %v1958 = vadd.f32 %v1878, %v1926
        %v1959 = vadd.f32 %v1879, %v1927
        %v1960 = vadd.f32 %v1880, %v1928
        %v1961 = vadd.f32 %v1881, %v1929
        %v1962 = vadd.f32 %v1882, %v1930
        %v1963 = vadd.f32 %v1883, %v1931
        %v1964 = vadd.f32 %v1884, %v1932
        %v1965 = vadd.f32 %v1885, %v1933
        %v1966 = vadd.f32 %v1886, %v1934
        %v1967 = vadd.f32 %v1887, %v1935
        %v1968 = vadd.f32 %v1888, %v1936
        %1969 = vrot.lane.b32.xlu0 %v1937, 112
        %v1970 = vpop.permute.xlu0 %1969
        %1971 = vrot.lane.b32.xlu0 %v1945, 112
        %v1972 = vpop.permute.xlu0 %1971
        %1973 = vrot.lane.b32.xlu0 %v1953, 112
        %v1974 = vpop.permute.xlu0 %1973
        %1975 = vrot.lane.b32.xlu0 %v1961, 112
        %v1976 = vpop.permute.xlu0 %1975
        %1977 = vrot.lane.b32.xlu0 %v1938, 112
        %v1978 = vpop.permute.xlu0 %1977
        %1979 = vrot.lane.b32.xlu0 %v1946, 112
        %v1980 = vpop.permute.xlu0 %1979
        %1981 = vrot.lane.b32.xlu0 %v1954, 112
        %v1982 = vpop.permute.xlu0 %1981
        %1983 = vrot.lane.b32.xlu0 %v1962, 112
        %v1984 = vpop.permute.xlu0 %1983
        %1985 = vrot.lane.b32.xlu0 %v1939, 112
        %v1986 = vpop.permute.xlu0 %1985
        %1987 = vrot.lane.b32.xlu0 %v1947, 112
        %v1988 = vpop.permute.xlu0 %1987
        %1989 = vrot.lane.b32.xlu0 %v1955, 112
        %v1990 = vpop.permute.xlu0 %1989
        %1991 = vrot.lane.b32.xlu0 %v1963, 112
        %v1992 = vpop.permute.xlu0 %1991
        %1993 = vrot.lane.b32.xlu0 %v1940, 112
        %v1994 = vpop.permute.xlu0 %1993
        %1995 = vrot.lane.b32.xlu0 %v1948, 112
        %v1996 = vpop.permute.xlu0 %1995
        %1997 = vrot.lane.b32.xlu0 %v1956, 112
        %v1998 = vpop.permute.xlu0 %1997
        %1999 = vrot.lane.b32.xlu0 %v1964, 112
        %v2000 = vpop.permute.xlu0 %1999
        %2001 = vrot.lane.b32.xlu0 %v1941, 112
        %v2002 = vpop.permute.xlu0 %2001
        %2003 = vrot.lane.b32.xlu0 %v1949, 112
        %v2004 = vpop.permute.xlu0 %2003
        %2005 = vrot.lane.b32.xlu0 %v1957, 112
        %v2006 = vpop.permute.xlu0 %2005
        %2007 = vrot.lane.b32.xlu0 %v1965, 112
        %v2008 = vpop.permute.xlu0 %2007
        %2009 = vrot.lane.b32.xlu0 %v1942, 112
        %v2010 = vpop.permute.xlu0 %2009
        %2011 = vrot.lane.b32.xlu0 %v1950, 112
        %v2012 = vpop.permute.xlu0 %2011
        %2013 = vrot.lane.b32.xlu0 %v1958, 112
        %v2014 = vpop.permute.xlu0 %2013
        %2015 = vrot.lane.b32.xlu0 %v1966, 112
        %v2016 = vpop.permute.xlu0 %2015
        %2017 = vrot.lane.b32.xlu0 %v1943, 112
        %v2018 = vpop.permute.xlu0 %2017
        %2019 = vrot.lane.b32.xlu0 %v1951, 112
        %v2020 = vpop.permute.xlu0 %2019
        %2021 = vrot.lane.b32.xlu0 %v1959, 112
        %v2022 = vpop.permute.xlu0 %2021
        %2023 = vrot.lane.b32.xlu0 %v1967, 112
        %v2024 = vpop.permute.xlu0 %2023
        %2025 = vrot.lane.b32.xlu0 %v1944, 112
        %v2026 = vpop.permute.xlu0 %2025
        %2027 = vrot.lane.b32.xlu0 %v1952, 112
        %v2028 = vpop.permute.xlu0 %2027
        %2029 = vrot.lane.b32.xlu0 %v1960, 112
        %v2030 = vpop.permute.xlu0 %2029
        %2031 = vrot.lane.b32.xlu0 %v1968, 112
        %v2032 = vpop.permute.xlu0 %2031
        %vm2033 = vcmp.lt.s32.totalorder %v822, 112
        %v2034 = vsel %vm2033, %v2018, %v2026
        %v2035 = vsel %vm2033, %v2020, %v2028
        %v2036 = vsel %vm2033, %v2022, %v2030
        %v2037 = vsel %vm2033, %v2024, %v2032
        %v2038 = vsel %vm2033, %v2010, %v2018
        %v2039 = vsel %vm2033, %v2012, %v2020
        %v2040 = vsel %vm2033, %v2014, %v2022
        %v2041 = vsel %vm2033, %v2016, %v2024
        %v2042 = vsel %vm2033, %v2002, %v2010
        %v2043 = vsel %vm2033, %v2004, %v2012
        %v2044 = vsel %vm2033, %v2006, %v2014
        %v2045 = vsel %vm2033, %v2008, %v2016
        %v2046 = vsel %vm2033, %v1994, %v2002
        %v2047 = vsel %vm2033, %v1996, %v2004
        %v2048 = vsel %vm2033, %v1998, %v2006
        %v2049 = vsel %vm2033, %v2000, %v2008
        %v2050 = vsel %vm2033, %v1986, %v1994
        %v2051 = vsel %vm2033, %v1988, %v1996
        %v2052 = vsel %vm2033, %v1990, %v1998
        %v2053 = vsel %vm2033, %v1992, %v2000
        %v2054 = vsel %vm2033, %v1978, %v1986
        %v2055 = vsel %vm2033, %v1980, %v1988
        %v2056 = vsel %vm2033, %v1982, %v1990
        %v2057 = vsel %vm2033, %v1984, %v1992
        %v2058 = vsel %vm2033, %v1970, %v1978
        %v2059 = vsel %vm2033, %v1972, %v1980
        %v2060 = vsel %vm2033, %v1974, %v1982
        %v2061 = vsel %vm2033, %v1976, %v1984
        %v2062 = vsel %vm2033, %v2026, %v1970
        %v2063 = vsel %vm2033, %v2028, %v1972
        %v2064 = vsel %vm2033, %v2030, %v1974
        %v2065 = vsel %vm2033, %v2032, %v1976
        %v2066 = vsel %vm870, 1, 0
        %v2067 = vsel %vm871, 1, 0
        %v2068 = vsel %vm872, 1, 0
        %v2069 = vsel %vm873, 1, 0
        %v2070 = vsel %vm874, 1, 0
        %v2071 = vsel %vm875, 1, 0
        %v2072 = vsel %vm876, 1, 0
        %v2073 = vsel %vm877, 1, 0
        %vm2074 = vcmp.eq.s32.totalorder %v2066, 1
        %vm2075 = vcmp.eq.s32.totalorder %v2067, 1
        %vm2076 = vcmp.eq.s32.totalorder %v2068, 1
        %vm2077 = vcmp.eq.s32.totalorder %v2069, 1
        %vm2078 = vcmp.eq.s32.totalorder %v2070, 1
        %vm2079 = vcmp.eq.s32.totalorder %v2071, 1
        %vm2080 = vcmp.eq.s32.totalorder %v2072, 1
        %vm2081 = vcmp.eq.s32.totalorder %v2073, 1
        %v2082 = vsel %vm2074, %v2058, 0.0
        %v2083 = vsel %vm2075, %v2054, 0.0
        %v2084 = vsel %vm2076, %v2050, 0.0
        %v2085 = vsel %vm2077, %v2046, 0.0
        %v2086 = vsel %vm2078, %v2042, 0.0
        %v2087 = vsel %vm2079, %v2038, 0.0
        %v2088 = vsel %vm2080, %v2034, 0.0
        %v2089 = vsel %vm2081, %v2062, 0.0
        %v2090 = vsel %vm2074, %v2059, 0.0
        %v2091 = vsel %vm2075, %v2055, 0.0
        %v2092 = vsel %vm2076, %v2051, 0.0
        %v2093 = vsel %vm2077, %v2047, 0.0
        %v2094 = vsel %vm2078, %v2043, 0.0
        %v2095 = vsel %vm2079, %v2039, 0.0
        %v2096 = vsel %vm2080, %v2035, 0.0
        %v2097 = vsel %vm2081, %v2063, 0.0
        %v2098 = vsel %vm2074, %v2060, 0.0
        %v2099 = vsel %vm2075, %v2056, 0.0
        %v2100 = vsel %vm2076, %v2052, 0.0
        %v2101 = vsel %vm2077, %v2048, 0.0
        %v2102 = vsel %vm2078, %v2044, 0.0
        %v2103 = vsel %vm2079, %v2040, 0.0
        %v2104 = vsel %vm2080, %v2036, 0.0
        %v2105 = vsel %vm2081, %v2064, 0.0
        %v2106 = vsel %vm2074, %v2061, 0.0
        %v2107 = vsel %vm2075, %v2057, 0.0
        %v2108 = vsel %vm2076, %v2053, 0.0
        %v2109 = vsel %vm2077, %v2049, 0.0
        %v2110 = vsel %vm2078, %v2045, 0.0
        %v2111 = vsel %vm2079, %v2041, 0.0
        %v2112 = vsel %vm2080, %v2037, 0.0
        %v2113 = vsel %vm2081, %v2065, 0.0
        %v2114 = vadd.f32 %v1729, %v2082
        %v2115 = vadd.f32 %v1730, %v2083
        %v2116 = vadd.f32 %v1731, %v2084
        %v2117 = vadd.f32 %v1732, %v2085
        %v2118 = vadd.f32 %v1733, %v2086
        %v2119 = vadd.f32 %v1734, %v2087
        %v2120 = vadd.f32 %v1735, %v2088
        %v2121 = vadd.f32 %v1736, %v2089
        %v2122 = vadd.f32 %v1737, %v2090
        %v2123 = vadd.f32 %v1738, %v2091
        %v2124 = vadd.f32 %v1739, %v2092
        %v2125 = vadd.f32 %v1740, %v2093
        %v2126 = vadd.f32 %v1741, %v2094
        %v2127 = vadd.f32 %v1742, %v2095
        %v2128 = vadd.f32 %v1743, %v2096
        %v2129 = vadd.f32 %v1744, %v2097
        %v2130 = vadd.f32 %v1745, %v2098
        %v2131 = vadd.f32 %v1746, %v2099
        %v2132 = vadd.f32 %v1747, %v2100
        %v2133 = vadd.f32 %v1748, %v2101
        %v2134 = vadd.f32 %v1749, %v2102
        %v2135 = vadd.f32 %v1750, %v2103
        %v2136 = vadd.f32 %v1751, %v2104
        %v2137 = vadd.f32 %v1752, %v2105
        %v2138 = vadd.f32 %v1753, %v2106
        %v2139 = vadd.f32 %v1754, %v2107
        %v2140 = vadd.f32 %v1755, %v2108
        %v2141 = vadd.f32 %v1756, %v2109
        %v2142 = vadd.f32 %v1757, %v2110
        %v2143 = vadd.f32 %v1758, %v2111
        %v2144 = vadd.f32 %v1759, %v2112
        %v2145 = vadd.f32 %v1760, %v2113
        %2146 = vset.pattern.permute.xlu0 2
        %2147 = vperm.xlu0 %2146, %v247
        %v2148 = vpop.permute.xlu0 %2147
        %2150 = vset.pattern.permute.xlu0 2
        %2151 = vperm.xlu0 %2150, %v248
        %v2152 = vpop.permute.xlu0 %2151
        %2154 = vset.pattern.permute.xlu0 2
        %2155 = vperm.xlu0 %2154, %v249
        %v2156 = vpop.permute.xlu0 %2155
        %2158 = vset.pattern.permute.xlu0 2
        %2159 = vperm.xlu0 %2158, %v250
        %v2160 = vpop.permute.xlu0 %2159
        %v2162 = vmul.f32 %v2114, %v2148
        %v2163 = vmul.f32 %v2115, %v2148
        %v2164 = vmul.f32 %v2116, %v2148
        %v2165 = vmul.f32 %v2117, %v2148
        %v2166 = vmul.f32 %v2118, %v2148
        %v2167 = vmul.f32 %v2119, %v2148
        %v2168 = vmul.f32 %v2120, %v2148
        %v2169 = vmul.f32 %v2121, %v2148
        %v2170 = vmul.f32 %v2122, %v2152
        %v2171 = vmul.f32 %v2123, %v2152
        %v2172 = vmul.f32 %v2124, %v2152
        %v2173 = vmul.f32 %v2125, %v2152
        %v2174 = vmul.f32 %v2126, %v2152
        %v2175 = vmul.f32 %v2127, %v2152
        %v2176 = vmul.f32 %v2128, %v2152
        %v2177 = vmul.f32 %v2129, %v2152
        %v2178 = vmul.f32 %v2130, %v2156
        %v2179 = vmul.f32 %v2131, %v2156
        %v2180 = vmul.f32 %v2132, %v2156
        %v2181 = vmul.f32 %v2133, %v2156
        %v2182 = vmul.f32 %v2134, %v2156
        %v2183 = vmul.f32 %v2135, %v2156
        %v2184 = vmul.f32 %v2136, %v2156
        %v2185 = vmul.f32 %v2137, %v2156
        %v2186 = vmul.f32 %v2138, %v2160
        %v2187 = vmul.f32 %v2139, %v2160
        %v2188 = vmul.f32 %v2140, %v2160
        %v2189 = vmul.f32 %v2141, %v2160
        %v2190 = vmul.f32 %v2142, %v2160
        %v2191 = vmul.f32 %v2143, %v2160
        %v2192 = vmul.f32 %v2144, %v2160
        %v2193 = vmul.f32 %v2145, %v2160
        %2194 = vset.pattern.permute.xlu0 3
        %2195 = vperm.xlu0 %2194, %v247
        %v2196 = vpop.permute.xlu0 %2195
        %2198 = vset.pattern.permute.xlu0 3
        %2199 = vperm.xlu0 %2198, %v248
        %v2200 = vpop.permute.xlu0 %2199
        %2202 = vset.pattern.permute.xlu0 3
        %2203 = vperm.xlu0 %2202, %v249
        %v2204 = vpop.permute.xlu0 %2203
        %2206 = vset.pattern.permute.xlu0 3
        %2207 = vperm.xlu0 %2206, %v250
        %v2208 = vpop.permute.xlu0 %2207
        %v2210 = vadd.f32 %v2162, %v2196
        %v2211 = vadd.f32 %v2163, %v2196
        %v2212 = vadd.f32 %v2164, %v2196
        %v2213 = vadd.f32 %v2165, %v2196
        %v2214 = vadd.f32 %v2166, %v2196
        %v2215 = vadd.f32 %v2167, %v2196
        %v2216 = vadd.f32 %v2168, %v2196
        %v2217 = vadd.f32 %v2169, %v2196
        %v2218 = vadd.f32 %v2170, %v2200
        %v2219 = vadd.f32 %v2171, %v2200
        %v2220 = vadd.f32 %v2172, %v2200
        %v2221 = vadd.f32 %v2173, %v2200
        %v2222 = vadd.f32 %v2174, %v2200
        %v2223 = vadd.f32 %v2175, %v2200
        %v2224 = vadd.f32 %v2176, %v2200
        %v2225 = vadd.f32 %v2177, %v2200
        %v2226 = vadd.f32 %v2178, %v2204
        %v2227 = vadd.f32 %v2179, %v2204
        %v2228 = vadd.f32 %v2180, %v2204
        %v2229 = vadd.f32 %v2181, %v2204
        %v2230 = vadd.f32 %v2182, %v2204
        %v2231 = vadd.f32 %v2183, %v2204
        %v2232 = vadd.f32 %v2184, %v2204
        %v2233 = vadd.f32 %v2185, %v2204
        %v2234 = vadd.f32 %v2186, %v2208
        %v2235 = vadd.f32 %v2187, %v2208
        %v2236 = vadd.f32 %v2188, %v2208
        %v2237 = vadd.f32 %v2189, %v2208
        %v2238 = vadd.f32 %v2190, %v2208
        %v2239 = vadd.f32 %v2191, %v2208
        %v2240 = vadd.f32 %v2192, %v2208
        %v2241 = vadd.f32 %v2193, %v2208
        %v2242 = vsub.f32 0.0, %v2210
        %v2243 = vsub.f32 0.0, %v2211
        %v2244 = vsub.f32 0.0, %v2212
        %v2245 = vsub.f32 0.0, %v2213
        %v2246 = vsub.f32 0.0, %v2214
        %v2247 = vsub.f32 0.0, %v2215
        %v2248 = vsub.f32 0.0, %v2216
        %v2249 = vsub.f32 0.0, %v2217
        %v2250 = vsub.f32 0.0, %v2218
        %v2251 = vsub.f32 0.0, %v2219
        %v2252 = vsub.f32 0.0, %v2220
        %v2253 = vsub.f32 0.0, %v2221
        %v2254 = vsub.f32 0.0, %v2222
        %v2255 = vsub.f32 0.0, %v2223
        %v2256 = vsub.f32 0.0, %v2224
        %v2257 = vsub.f32 0.0, %v2225
        %v2258 = vsub.f32 0.0, %v2226
        %v2259 = vsub.f32 0.0, %v2227
        %v2260 = vsub.f32 0.0, %v2228
        %v2261 = vsub.f32 0.0, %v2229
        %v2262 = vsub.f32 0.0, %v2230
        %v2263 = vsub.f32 0.0, %v2231
        %v2264 = vsub.f32 0.0, %v2232
        %v2265 = vsub.f32 0.0, %v2233
        %v2266 = vsub.f32 0.0, %v2234
        %v2267 = vsub.f32 0.0, %v2235
        %v2268 = vsub.f32 0.0, %v2236
        %v2269 = vsub.f32 0.0, %v2237
        %v2270 = vsub.f32 0.0, %v2238
        %v2271 = vsub.f32 0.0, %v2239
        %v2272 = vsub.f32 0.0, %v2240
        %v2273 = vsub.f32 0.0, %v2241
        %v2274 = vmul.f32 %v2242, 1.442695
        %v2275 = vpow.pop %v2274
        %v2276 = vmul.f32 %v2243, 1.442695
        %v2277 = vpow.pop %v2276
        %v2278 = vmul.f32 %v2244, 1.442695
        %v2279 = vpow.pop %v2278
        %v2280 = vmul.f32 %v2245, 1.442695
        %v2281 = vpow.pop %v2280
        %v2282 = vmul.f32 %v2246, 1.442695
        %v2283 = vpow.pop %v2282
        %v2284 = vmul.f32 %v2247, 1.442695
        %v2285 = vpow.pop %v2284
        %v2286 = vmul.f32 %v2248, 1.442695
        %v2287 = vpow.pop %v2286
        %v2288 = vmul.f32 %v2249, 1.442695
        %v2289 = vpow.pop %v2288
        %v2290 = vmul.f32 %v2250, 1.442695
        %v2291 = vpow.pop %v2290
        %v2292 = vmul.f32 %v2251, 1.442695
        %v2293 = vpow.pop %v2292
        %v2294 = vmul.f32 %v2252, 1.442695
        %v2295 = vpow.pop %v2294
        %v2296 = vmul.f32 %v2253, 1.442695
        %v2297 = vpow.pop %v2296
        %v2298 = vmul.f32 %v2254, 1.442695
        %v2299 = vpow.pop %v2298
        %v2300 = vmul.f32 %v2255, 1.442695
        %v2301 = vpow.pop %v2300
        %v2302 = vmul.f32 %v2256, 1.442695
        %v2303 = vpow.pop %v2302
        %v2304 = vmul.f32 %v2257, 1.442695
        %v2305 = vpow.pop %v2304
        %v2306 = vmul.f32 %v2258, 1.442695
        %v2307 = vpow.pop %v2306
        %v2308 = vmul.f32 %v2259, 1.442695
        %v2309 = vpow.pop %v2308
        %v2310 = vmul.f32 %v2260, 1.442695
        %v2311 = vpow.pop %v2310
        %v2312 = vmul.f32 %v2261, 1.442695
        %v2313 = vpow.pop %v2312
        %v2314 = vmul.f32 %v2262, 1.442695
        %v2315 = vpow.pop %v2314
        %v2316 = vmul.f32 %v2263, 1.442695
        %v2317 = vpow.pop %v2316
        %v2318 = vmul.f32 %v2264, 1.442695
        %v2319 = vpow.pop %v2318
        %v2320 = vmul.f32 %v2265, 1.442695
        %v2321 = vpow.pop %v2320
        %v2322 = vmul.f32 %v2266, 1.442695
        %v2323 = vpow.pop %v2322
        %v2324 = vmul.f32 %v2267, 1.442695
        %v2325 = vpow.pop %v2324
        %v2326 = vmul.f32 %v2268, 1.442695
        %v2327 = vpow.pop %v2326
        %v2328 = vmul.f32 %v2269, 1.442695
        %v2329 = vpow.pop %v2328
        %v2330 = vmul.f32 %v2270, 1.442695
        %v2331 = vpow.pop %v2330
        %v2332 = vmul.f32 %v2271, 1.442695
        %v2333 = vpow.pop %v2332
        %v2334 = vmul.f32 %v2272, 1.442695
        %v2335 = vpow.pop %v2334
        %v2336 = vmul.f32 %v2273, 1.442695
        %v2337 = vpow.pop %v2336
        %v2338 = vadd.f32 %v2275, 1.0
        %v2339 = vadd.f32 %v2277, 1.0
        %v2340 = vadd.f32 %v2279, 1.0
        %v2341 = vadd.f32 %v2281, 1.0
        %v2342 = vadd.f32 %v2283, 1.0
        %v2343 = vadd.f32 %v2285, 1.0
        %v2344 = vadd.f32 %v2287, 1.0
        %v2345 = vadd.f32 %v2289, 1.0
        %v2346 = vadd.f32 %v2291, 1.0
        %v2347 = vadd.f32 %v2293, 1.0
        %v2348 = vadd.f32 %v2295, 1.0
        %v2349 = vadd.f32 %v2297, 1.0
        %v2350 = vadd.f32 %v2299, 1.0
        %v2351 = vadd.f32 %v2301, 1.0
        %v2352 = vadd.f32 %v2303, 1.0
        %v2353 = vadd.f32 %v2305, 1.0
        %v2354 = vadd.f32 %v2307, 1.0
        %v2355 = vadd.f32 %v2309, 1.0
        %v2356 = vadd.f32 %v2311, 1.0
        %v2357 = vadd.f32 %v2313, 1.0
        %v2358 = vadd.f32 %v2315, 1.0
        %v2359 = vadd.f32 %v2317, 1.0
        %v2360 = vadd.f32 %v2319, 1.0
        %v2361 = vadd.f32 %v2321, 1.0
        %v2362 = vadd.f32 %v2323, 1.0
        %v2363 = vadd.f32 %v2325, 1.0
        %v2364 = vadd.f32 %v2327, 1.0
        %v2365 = vadd.f32 %v2329, 1.0
        %v2366 = vadd.f32 %v2331, 1.0
        %v2367 = vadd.f32 %v2333, 1.0
        %v2368 = vadd.f32 %v2335, 1.0
        %v2369 = vadd.f32 %v2337, 1.0
        %v2370 = vrcp.pop %v2338
        %v2371 = vrcp.pop %v2339
        %v2372 = vrcp.pop %v2340
        %v2373 = vrcp.pop %v2341
        %v2374 = vrcp.pop %v2342
        %v2375 = vrcp.pop %v2343
        %v2376 = vrcp.pop %v2344
        %v2377 = vrcp.pop %v2345
        %v2378 = vrcp.pop %v2346
        %v2379 = vrcp.pop %v2347
        %v2380 = vrcp.pop %v2348
        %v2381 = vrcp.pop %v2349
        %v2382 = vrcp.pop %v2350
        %v2383 = vrcp.pop %v2351
        %v2384 = vrcp.pop %v2352
        %v2385 = vrcp.pop %v2353
        %v2386 = vrcp.pop %v2354
        %v2387 = vrcp.pop %v2355
        %v2388 = vrcp.pop %v2356
        %v2389 = vrcp.pop %v2357
        %v2390 = vrcp.pop %v2358
        %v2391 = vrcp.pop %v2359
        %v2392 = vrcp.pop %v2360
        %v2393 = vrcp.pop %v2361
        %v2394 = vrcp.pop %v2362
        %v2395 = vrcp.pop %v2363
        %v2396 = vrcp.pop %v2364
        %v2397 = vrcp.pop %v2365
        %v2398 = vrcp.pop %v2366
        %v2399 = vrcp.pop %v2367
        %v2400 = vrcp.pop %v2368
        %v2401 = vrcp.pop %v2369
        %v2402 = vmul.f32 %v2210, %v2370
        %v2403 = vmul.f32 %v2211, %v2371
        %v2404 = vmul.f32 %v2212, %v2372
        %v2405 = vmul.f32 %v2213, %v2373
        %v2406 = vmul.f32 %v2214, %v2374
        %v2407 = vmul.f32 %v2215, %v2375
        %v2408 = vmul.f32 %v2216, %v2376
        %v2409 = vmul.f32 %v2217, %v2377
        %v2410 = vmul.f32 %v2218, %v2378
        %v2411 = vmul.f32 %v2219, %v2379
        %v2412 = vmul.f32 %v2220, %v2380
        %v2413 = vmul.f32 %v2221, %v2381
        %v2414 = vmul.f32 %v2222, %v2382
        %v2415 = vmul.f32 %v2223, %v2383
        %v2416 = vmul.f32 %v2224, %v2384
        %v2417 = vmul.f32 %v2225, %v2385
        %v2418 = vmul.f32 %v2226, %v2386
        %v2419 = vmul.f32 %v2227, %v2387
        %v2420 = vmul.f32 %v2228, %v2388
        %v2421 = vmul.f32 %v2229, %v2389
        %v2422 = vmul.f32 %v2230, %v2390
        %v2423 = vmul.f32 %v2231, %v2391
        %v2424 = vmul.f32 %v2232, %v2392
        %v2425 = vmul.f32 %v2233, %v2393
        %v2426 = vmul.f32 %v2234, %v2394
        %v2427 = vmul.f32 %v2235, %v2395
        %v2428 = vmul.f32 %v2236, %v2396
        %v2429 = vmul.f32 %v2237, %v2397
        %v2430 = vmul.f32 %v2238, %v2398
        %v2431 = vmul.f32 %v2239, %v2399
        %v2432 = vmul.f32 %v2240, %v2400
        %v2433 = vmul.f32 %v2241, %v2401
        %v2434 = vadd.f32 %v2402, %v2403
        %2435 = vadd.xlane.f32.xlu0 %v2434
        %v2436 = vpop.xlane.xlu0 %2435
        %v2437 = vadd.f32 %v2410, %v2411
        %2438 = vadd.xlane.f32.xlu0 %v2437
        %v2439 = vpop.xlane.xlu0 %2438
        %v2440 = vadd.f32 %v2418, %v2419
        %2441 = vadd.xlane.f32.xlu0 %v2440
        %v2442 = vpop.xlane.xlu0 %2441
        %v2443 = vadd.f32 %v2426, %v2427
        %2444 = vadd.xlane.f32.xlu0 %v2443
        %v2445 = vpop.xlane.xlu0 %2444
        %v2446 = vrcp.pop 256.0
        %v2447 = vmul.f32 %v2436, %v2446
        %v2448 = vmul.f32 %v2439, %v2446
        %v2449 = vmul.f32 %v2442, %v2446
        %v2450 = vmul.f32 %v2445, %v2446
        %v2451 = vmul.f32 %v247, %v2447
        %v2452 = vmul.f32 %v248, %v2448
        %v2453 = vmul.f32 %v249, %v2449
        %v2454 = vmul.f32 %v250, %v2450
        %vm2455 = vcmask 121968
        %v2456 = vsel %vm2455, %v2451, 0.0
        %v2457 = vsel %vm2455, %v2452, 0.0
        %v2458 = vadd.f32 %v2456, %v2457
        %v2459 = vsel %vm2455, %v2453, 0.0
        %v2460 = vadd.f32 %v2458, %v2459
        %v2461 = vsel %vm2455, %v2454, 0.0
        %v2462 = vadd.f32 %v2460, %v2461
        %v2463 = vrot.slane %v2462, 4
        %v2464 = vadd.f32 %v2462, %v2463
        %v2465 = vrot.slane %v2464, 2
        %v2466 = vadd.f32 %v2464, %v2465
        %v2467 = vrot.slane %v2466, 1
        %v2468 = vadd.f32 %v2466, %v2467
        %2469 = vrot.lane.b32.xlu0 %v247, 124
        %v2470 = vpop.permute.xlu0 %2469
        %v2472 = vadd.f32 %v2468, %v2470
        %v2473 = vsub.f32 0.0, %v2472
        %v2474 = vmul.f32 %v2473, 1.442695
        %v2475 = vpow.pop %v2474
        %v2476 = vadd.f32 %v2475, 1.0
        %v2477 = vrcp.pop %v2476
        %v2478 = vmul.f32 %v2472, %v2477
        %v2479 = vlaneseq
        %v2480 = vshrl.u32 %v2479, 7
        %v2481 = vsub.s32 0, %v2480
        %v2482 = vrot.slane %v2478, %v2481
        %2484 = vrot.lane.b32.xlu0 %v2482, 2
        %v2485 = vpop.permute.xlu0 %2484
        %v2487 = vmul.f32 %v247, %v2485
        %v2488 = vmul.f32 %v248, %v2485
        %v2489 = vmul.f32 %v249, %v2485
        %v2490 = vmul.f32 %v250, %v2485
        %2495 = vrot.lane.b32.xlu0 %v2487, 116
        %v2496 = vpop.permute.xlu0 %2495
        %2497 = vrot.lane.b32.xlu0 %v2488, 116
        %v2498 = vpop.permute.xlu0 %2497
        %2499 = vrot.lane.b32.xlu0 %v2489, 116
        %v2500 = vpop.permute.xlu0 %2499
        %2501 = vrot.lane.b32.xlu0 %v2490, 116
        %v2502 = vpop.permute.xlu0 %2501
        %v2507 = vadd.f32 %v247, %v2496
        %v2508 = vadd.f32 %v248, %v2498
        %v2509 = vadd.f32 %v249, %v2500
        %v2510 = vadd.f32 %v250, %v2502
        %vm2511 = vcmask 130168
        %v2512 = vsel %vm2511, %v2451, 0.0
        %v2513 = vsel %vm2511, %v2452, 0.0
        %v2514 = vadd.f32 %v2512, %v2513
        %v2515 = vsel %vm2511, %v2453, 0.0
        %v2516 = vadd.f32 %v2514, %v2515
        %v2517 = vsel %vm2511, %v2454, 0.0
        %v2518 = vadd.f32 %v2516, %v2517
        %v2519 = vrot.slane %v2518, 4
        %v2520 = vadd.f32 %v2518, %v2519
        %v2521 = vrot.slane %v2520, 2
        %v2522 = vadd.f32 %v2520, %v2521
        %v2523 = vrot.slane %v2522, 1
        %v2524 = vadd.f32 %v2522, %v2523
        %v2525 = vrot.slane %v247, 1
        %2526 = vrot.lane.b32.xlu0 %v2525, 125
        %v2527 = vpop.permute.xlu0 %2526
        %v2529 = vadd.f32 %v2524, %v2527
        %v2530 = vsub.f32 0.0, %v2529
        %v2531 = vmul.f32 %v2530, 1.442695
        %v2532 = vpow.pop %v2531
        %v2533 = vadd.f32 %v2532, 1.0
        %v2534 = vrcp.pop %v2533
        %v2535 = vmul.f32 %v2529, %v2534
        %v2536 = vlaneseq
        %v2537 = vshrl.u32 %v2536, 7
        %v2538 = vsub.s32 0, %v2537
        %v2539 = vrot.slane %v2535, %v2538
        %2541 = vrot.lane.b32.xlu0 %v2539, 2
        %v2542 = vpop.permute.xlu0 %2541
        %v2544 = vmul.f32 %v247, %v2542
        %v2545 = vmul.f32 %v248, %v2542
        %v2546 = vmul.f32 %v249, %v2542
        %v2547 = vmul.f32 %v250, %v2542
        %2552 = vrot.lane.b32.xlu0 %v2544, 115
        %v2553 = vpop.permute.xlu0 %2552
        %2554 = vrot.lane.b32.xlu0 %v2545, 115
        %v2555 = vpop.permute.xlu0 %2554
        %2556 = vrot.lane.b32.xlu0 %v2546, 115
        %v2557 = vpop.permute.xlu0 %2556
        %2558 = vrot.lane.b32.xlu0 %v2547, 115
        %v2559 = vpop.permute.xlu0 %2558
        %v2564 = vadd.f32 %v2507, %v2553
        %v2565 = vadd.f32 %v2508, %v2555
        %v2566 = vadd.f32 %v2509, %v2557
        %v2567 = vadd.f32 %v2510, %v2559
        %v2568 = vsub.f32 0.0, %v2564
        %v2569 = vsub.f32 0.0, %v2565
        %v2570 = vsub.f32 0.0, %v2566
        %v2571 = vsub.f32 0.0, %v2567
        %v2572 = vmul.f32 %v2568, 1.442695
        %v2573 = vpow.pop %v2572
        %v2574 = vmul.f32 %v2569, 1.442695
        %v2575 = vpow.pop %v2574
        %v2576 = vmul.f32 %v2570, 1.442695
        %v2577 = vpow.pop %v2576
        %v2578 = vmul.f32 %v2571, 1.442695
        %v2579 = vpow.pop %v2578
        %v2580 = vadd.f32 %v2573, 1.0
        %v2581 = vadd.f32 %v2575, 1.0
        %v2582 = vadd.f32 %v2577, 1.0
        %v2583 = vadd.f32 %v2579, 1.0
        %v2584 = vrcp.pop %v2580
        %v2585 = vrcp.pop %v2581
        %v2586 = vrcp.pop %v2582
        %v2587 = vrcp.pop %v2583
        %2589 = vset.pattern.permute.xlu0 4
        %2590 = vperm.xlu0 %2589, %v2584
        %v2591 = vpop.permute.xlu0 %2590
        %2594 = vset.pattern.permute.xlu0 4
        %2595 = vperm.xlu0 %2594, %v2585
        %v2596 = vpop.permute.xlu0 %2595
        %2599 = vset.pattern.permute.xlu0 4
        %2600 = vperm.xlu0 %2599, %v2586
        %v2601 = vpop.permute.xlu0 %2600
        %2604 = vset.pattern.permute.xlu0 4
        %2605 = vperm.xlu0 %2604, %v2587
        %v2606 = vpop.permute.xlu0 %2605
        %v2608 = vmul.f32 %v2402, %v2591
        %v2609 = vmul.f32 %v2403, %v2591
        %v2610 = vmul.f32 %v2410, %v2596
        %v2611 = vmul.f32 %v2411, %v2596
        %v2612 = vmul.f32 %v2418, %v2601
        %v2613 = vmul.f32 %v2419, %v2601
        %v2614 = vmul.f32 %v2426, %v2606
        %v2615 = vmul.f32 %v2427, %v2606
        %v2616 = vadd.f32 %v2404, %v2405
        %2617 = vadd.xlane.f32.xlu0 %v2616
        %v2618 = vpop.xlane.xlu0 %2617
        %v2619 = vadd.f32 %v2412, %v2413
        %2620 = vadd.xlane.f32.xlu0 %v2619
        %v2621 = vpop.xlane.xlu0 %2620
        %v2622 = vadd.f32 %v2420, %v2421
        %2623 = vadd.xlane.f32.xlu0 %v2622
        %v2624 = vpop.xlane.xlu0 %2623
        %v2625 = vadd.f32 %v2428, %v2429
        %2626 = vadd.xlane.f32.xlu0 %v2625
        %v2627 = vpop.xlane.xlu0 %2626
        %v2628 = vmul.f32 %v2618, %v2446
        %v2629 = vmul.f32 %v2621, %v2446
        %v2630 = vmul.f32 %v2624, %v2446
        %v2631 = vmul.f32 %v2627, %v2446
        %v2632 = vmul.f32 %v247, %v2628
        %v2633 = vmul.f32 %v248, %v2629
        %v2634 = vmul.f32 %v249, %v2630
        %v2635 = vmul.f32 %v250, %v2631
        %v2636 = vsel %vm2455, %v2632, 0.0
        %v2637 = vsel %vm2455, %v2633, 0.0
        %v2638 = vadd.f32 %v2636, %v2637
        %v2639 = vsel %vm2455, %v2634, 0.0
        %v2640 = vadd.f32 %v2638, %v2639
        %v2641 = vsel %vm2455, %v2635, 0.0
        %v2642 = vadd.f32 %v2640, %v2641
        %v2643 = vrot.slane %v2642, 4
        %v2644 = vadd.f32 %v2642, %v2643
        %v2645 = vrot.slane %v2644, 2
        %v2646 = vadd.f32 %v2644, %v2645
        %v2647 = vrot.slane %v2646, 1
        %v2648 = vadd.f32 %v2646, %v2647
        %v2649 = vadd.f32 %v2648, %v2470
        %v2650 = vsub.f32 0.0, %v2649
        %v2651 = vmul.f32 %v2650, 1.442695
        %v2652 = vpow.pop %v2651
        %v2653 = vadd.f32 %v2652, 1.0
        %v2654 = vrcp.pop %v2653
        %v2655 = vmul.f32 %v2649, %v2654
        %v2656 = vlaneseq
        %v2657 = vshrl.u32 %v2656, 7
        %v2658 = vsub.s32 0, %v2657
        %v2659 = vrot.slane %v2655, %v2658
        %2661 = vrot.lane.b32.xlu0 %v2659, 2
        %v2662 = vpop.permute.xlu0 %2661
        %v2664 = vmul.f32 %v247, %v2662
        %v2665 = vmul.f32 %v248, %v2662
        %v2666 = vmul.f32 %v249, %v2662
        %v2667 = vmul.f32 %v250, %v2662
        %2672 = vrot.lane.b32.xlu0 %v2664, 116
        %v2673 = vpop.permute.xlu0 %2672
        %2674 = vrot.lane.b32.xlu0 %v2665, 116
        %v2675 = vpop.permute.xlu0 %2674
        %2676 = vrot.lane.b32.xlu0 %v2666, 116
        %v2677 = vpop.permute.xlu0 %2676
        %2678 = vrot.lane.b32.xlu0 %v2667, 116
        %v2679 = vpop.permute.xlu0 %2678
        %v2684 = vadd.f32 %v247, %v2673
        %v2685 = vadd.f32 %v248, %v2675
        %v2686 = vadd.f32 %v249, %v2677
        %v2687 = vadd.f32 %v250, %v2679
        %v2688 = vsel %vm2511, %v2632, 0.0
        %v2689 = vsel %vm2511, %v2633, 0.0
        %v2690 = vadd.f32 %v2688, %v2689
        %v2691 = vsel %vm2511, %v2634, 0.0
        %v2692 = vadd.f32 %v2690, %v2691
        %v2693 = vsel %vm2511, %v2635, 0.0
        %v2694 = vadd.f32 %v2692, %v2693
        %v2695 = vrot.slane %v2694, 4
        %v2696 = vadd.f32 %v2694, %v2695
        %v2697 = vrot.slane %v2696, 2
        %v2698 = vadd.f32 %v2696, %v2697
        %v2699 = vrot.slane %v2698, 1
        %v2700 = vadd.f32 %v2698, %v2699
        %v2701 = vadd.f32 %v2700, %v2527
        %v2702 = vsub.f32 0.0, %v2701
        %v2703 = vmul.f32 %v2702, 1.442695
        %v2704 = vpow.pop %v2703
        %v2705 = vadd.f32 %v2704, 1.0
        %v2706 = vrcp.pop %v2705
        %v2707 = vmul.f32 %v2701, %v2706
        %v2708 = vlaneseq
        %v2709 = vshrl.u32 %v2708, 7
        %v2710 = vsub.s32 0, %v2709
        %v2711 = vrot.slane %v2707, %v2710
        %2713 = vrot.lane.b32.xlu0 %v2711, 2
        %v2714 = vpop.permute.xlu0 %2713
        %v2716 = vmul.f32 %v247, %v2714
        %v2717 = vmul.f32 %v248, %v2714
        %v2718 = vmul.f32 %v249, %v2714
        %v2719 = vmul.f32 %v250, %v2714
        %2724 = vrot.lane.b32.xlu0 %v2716, 115
        %v2725 = vpop.permute.xlu0 %2724
        %2726 = vrot.lane.b32.xlu0 %v2717, 115
        %v2727 = vpop.permute.xlu0 %2726
        %2728 = vrot.lane.b32.xlu0 %v2718, 115
        %v2729 = vpop.permute.xlu0 %2728
        %2730 = vrot.lane.b32.xlu0 %v2719, 115
        %v2731 = vpop.permute.xlu0 %2730
        %v2736 = vadd.f32 %v2684, %v2725
        %v2737 = vadd.f32 %v2685, %v2727
        %v2738 = vadd.f32 %v2686, %v2729
        %v2739 = vadd.f32 %v2687, %v2731
        %v2740 = vsub.f32 0.0, %v2736
        %v2741 = vsub.f32 0.0, %v2737
        %v2742 = vsub.f32 0.0, %v2738
        %v2743 = vsub.f32 0.0, %v2739
        %v2744 = vmul.f32 %v2740, 1.442695
        %v2745 = vpow.pop %v2744
        %v2746 = vmul.f32 %v2741, 1.442695
        %v2747 = vpow.pop %v2746
        %v2748 = vmul.f32 %v2742, 1.442695
        %v2749 = vpow.pop %v2748
        %v2750 = vmul.f32 %v2743, 1.442695
        %v2751 = vpow.pop %v2750
        %v2752 = vadd.f32 %v2745, 1.0
        %v2753 = vadd.f32 %v2747, 1.0
        %v2754 = vadd.f32 %v2749, 1.0
        %v2755 = vadd.f32 %v2751, 1.0
        %v2756 = vrcp.pop %v2752
        %v2757 = vrcp.pop %v2753
        %v2758 = vrcp.pop %v2754
        %v2759 = vrcp.pop %v2755
        %2761 = vset.pattern.permute.xlu0 4
        %2762 = vperm.xlu0 %2761, %v2756
        %v2763 = vpop.permute.xlu0 %2762
        %2766 = vset.pattern.permute.xlu0 4
        %2767 = vperm.xlu0 %2766, %v2757
        %v2768 = vpop.permute.xlu0 %2767
        %2771 = vset.pattern.permute.xlu0 4
        %2772 = vperm.xlu0 %2771, %v2758
        %v2773 = vpop.permute.xlu0 %2772
        %2776 = vset.pattern.permute.xlu0 4
        %2777 = vperm.xlu0 %2776, %v2759
        %v2778 = vpop.permute.xlu0 %2777
        %v2780 = vmul.f32 %v2404, %v2763
        %v2781 = vmul.f32 %v2405, %v2763
        %v2782 = vmul.f32 %v2412, %v2768
        %v2783 = vmul.f32 %v2413, %v2768
        %v2784 = vmul.f32 %v2420, %v2773
        %v2785 = vmul.f32 %v2421, %v2773
        %v2786 = vmul.f32 %v2428, %v2778
        %v2787 = vmul.f32 %v2429, %v2778
        %v2788 = vadd.f32 %v2406, %v2407
        %2789 = vadd.xlane.f32.xlu0 %v2788
        %v2790 = vpop.xlane.xlu0 %2789
        %v2791 = vadd.f32 %v2414, %v2415
        %2792 = vadd.xlane.f32.xlu0 %v2791
        %v2793 = vpop.xlane.xlu0 %2792
        %v2794 = vadd.f32 %v2422, %v2423
        %2795 = vadd.xlane.f32.xlu0 %v2794
        %v2796 = vpop.xlane.xlu0 %2795
        %v2797 = vadd.f32 %v2430, %v2431
        %2798 = vadd.xlane.f32.xlu0 %v2797
        %v2799 = vpop.xlane.xlu0 %2798
        %v2800 = vmul.f32 %v2790, %v2446
        %v2801 = vmul.f32 %v2793, %v2446
        %v2802 = vmul.f32 %v2796, %v2446
        %v2803 = vmul.f32 %v2799, %v2446
        %v2804 = vmul.f32 %v247, %v2800
        %v2805 = vmul.f32 %v248, %v2801
        %v2806 = vmul.f32 %v249, %v2802
        %v2807 = vmul.f32 %v250, %v2803
        %v2808 = vsel %vm2455, %v2804, 0.0
        %v2809 = vsel %vm2455, %v2805, 0.0
        %v2810 = vadd.f32 %v2808, %v2809
        %v2811 = vsel %vm2455, %v2806, 0.0
        %v2812 = vadd.f32 %v2810, %v2811
        %v2813 = vsel %vm2455, %v2807, 0.0
        %v2814 = vadd.f32 %v2812, %v2813
        %v2815 = vrot.slane %v2814, 4
        %v2816 = vadd.f32 %v2814, %v2815
        %v2817 = vrot.slane %v2816, 2
        %v2818 = vadd.f32 %v2816, %v2817
        %v2819 = vrot.slane %v2818, 1
        %v2820 = vadd.f32 %v2818, %v2819
        %v2821 = vadd.f32 %v2820, %v2470
        %v2822 = vsub.f32 0.0, %v2821
        %v2823 = vmul.f32 %v2822, 1.442695
        %v2824 = vpow.pop %v2823
        %v2825 = vadd.f32 %v2824, 1.0
        %v2826 = vrcp.pop %v2825
        %v2827 = vmul.f32 %v2821, %v2826
        %v2828 = vlaneseq
        %v2829 = vshrl.u32 %v2828, 7
        %v2830 = vsub.s32 0, %v2829
        %v2831 = vrot.slane %v2827, %v2830
        %2833 = vrot.lane.b32.xlu0 %v2831, 2
        %v2834 = vpop.permute.xlu0 %2833
        %v2836 = vmul.f32 %v247, %v2834
        %v2837 = vmul.f32 %v248, %v2834
        %v2838 = vmul.f32 %v249, %v2834
        %v2839 = vmul.f32 %v250, %v2834
        %2844 = vrot.lane.b32.xlu0 %v2836, 116
        %v2845 = vpop.permute.xlu0 %2844
        %2846 = vrot.lane.b32.xlu0 %v2837, 116
        %v2847 = vpop.permute.xlu0 %2846
        %2848 = vrot.lane.b32.xlu0 %v2838, 116
        %v2849 = vpop.permute.xlu0 %2848
        %2850 = vrot.lane.b32.xlu0 %v2839, 116
        %v2851 = vpop.permute.xlu0 %2850
        %v2856 = vadd.f32 %v247, %v2845
        %v2857 = vadd.f32 %v248, %v2847
        %v2858 = vadd.f32 %v249, %v2849
        %v2859 = vadd.f32 %v250, %v2851
        %v2860 = vsel %vm2511, %v2804, 0.0
        %v2861 = vsel %vm2511, %v2805, 0.0
        %v2862 = vadd.f32 %v2860, %v2861
        %v2863 = vsel %vm2511, %v2806, 0.0
        %v2864 = vadd.f32 %v2862, %v2863
        %v2865 = vsel %vm2511, %v2807, 0.0
        %v2866 = vadd.f32 %v2864, %v2865
        %v2867 = vrot.slane %v2866, 4
        %v2868 = vadd.f32 %v2866, %v2867
        %v2869 = vrot.slane %v2868, 2
        %v2870 = vadd.f32 %v2868, %v2869
        %v2871 = vrot.slane %v2870, 1
        %v2872 = vadd.f32 %v2870, %v2871
        %v2873 = vadd.f32 %v2872, %v2527
        %v2874 = vsub.f32 0.0, %v2873
        %v2875 = vmul.f32 %v2874, 1.442695
        %v2876 = vpow.pop %v2875
        %v2877 = vadd.f32 %v2876, 1.0
        %v2878 = vrcp.pop %v2877
        %v2879 = vmul.f32 %v2873, %v2878
        %v2880 = vlaneseq
        %v2881 = vshrl.u32 %v2880, 7
        %v2882 = vsub.s32 0, %v2881
        %v2883 = vrot.slane %v2879, %v2882
        %2885 = vrot.lane.b32.xlu0 %v2883, 2
        %v2886 = vpop.permute.xlu0 %2885
        %v2888 = vmul.f32 %v247, %v2886
        %v2889 = vmul.f32 %v248, %v2886
        %v2890 = vmul.f32 %v249, %v2886
        %v2891 = vmul.f32 %v250, %v2886
        %2896 = vrot.lane.b32.xlu0 %v2888, 115
        %v2897 = vpop.permute.xlu0 %2896
        %2898 = vrot.lane.b32.xlu0 %v2889, 115
        %v2899 = vpop.permute.xlu0 %2898
        %2900 = vrot.lane.b32.xlu0 %v2890, 115
        %v2901 = vpop.permute.xlu0 %2900
        %2902 = vrot.lane.b32.xlu0 %v2891, 115
        %v2903 = vpop.permute.xlu0 %2902
        %v2908 = vadd.f32 %v2856, %v2897
        %v2909 = vadd.f32 %v2857, %v2899
        %v2910 = vadd.f32 %v2858, %v2901
        %v2911 = vadd.f32 %v2859, %v2903
        %v2912 = vsub.f32 0.0, %v2908
        %v2913 = vsub.f32 0.0, %v2909
        %v2914 = vsub.f32 0.0, %v2910
        %v2915 = vsub.f32 0.0, %v2911
        %v2916 = vmul.f32 %v2912, 1.442695
        %v2917 = vpow.pop %v2916
        %v2918 = vmul.f32 %v2913, 1.442695
        %v2919 = vpow.pop %v2918
        %v2920 = vmul.f32 %v2914, 1.442695
        %v2921 = vpow.pop %v2920
        %v2922 = vmul.f32 %v2915, 1.442695
        %v2923 = vpow.pop %v2922
        %v2924 = vadd.f32 %v2917, 1.0
        %v2925 = vadd.f32 %v2919, 1.0
        %v2926 = vadd.f32 %v2921, 1.0
        %v2927 = vadd.f32 %v2923, 1.0
        %v2928 = vrcp.pop %v2924
        %v2929 = vrcp.pop %v2925
        %v2930 = vrcp.pop %v2926
        %v2931 = vrcp.pop %v2927
        %2933 = vset.pattern.permute.xlu0 4
        %2934 = vperm.xlu0 %2933, %v2928
        %v2935 = vpop.permute.xlu0 %2934
        %2938 = vset.pattern.permute.xlu0 4
        %2939 = vperm.xlu0 %2938, %v2929
        %v2940 = vpop.permute.xlu0 %2939
        %2943 = vset.pattern.permute.xlu0 4
        %2944 = vperm.xlu0 %2943, %v2930
        %v2945 = vpop.permute.xlu0 %2944
        %2948 = vset.pattern.permute.xlu0 4
        %2949 = vperm.xlu0 %2948, %v2931
        %v2950 = vpop.permute.xlu0 %2949
        %v2952 = vmul.f32 %v2406, %v2935
        %v2953 = vmul.f32 %v2407, %v2935
        %v2954 = vmul.f32 %v2414, %v2940
        %v2955 = vmul.f32 %v2415, %v2940
        %v2956 = vmul.f32 %v2422, %v2945
        %v2957 = vmul.f32 %v2423, %v2945
        %v2958 = vmul.f32 %v2430, %v2950
        %v2959 = vmul.f32 %v2431, %v2950
        %v2960 = vadd.f32 %v2408, %v2409
        %2961 = vadd.xlane.f32.xlu0 %v2960
        %v2962 = vpop.xlane.xlu0 %2961
        %v2963 = vadd.f32 %v2416, %v2417
        %2964 = vadd.xlane.f32.xlu0 %v2963
        %v2965 = vpop.xlane.xlu0 %2964
        %v2966 = vadd.f32 %v2424, %v2425
        %2967 = vadd.xlane.f32.xlu0 %v2966
        %v2968 = vpop.xlane.xlu0 %2967
        %v2969 = vadd.f32 %v2432, %v2433
        %2970 = vadd.xlane.f32.xlu0 %v2969
        %v2971 = vpop.xlane.xlu0 %2970
        %v2972 = vmul.f32 %v2962, %v2446
        %v2973 = vmul.f32 %v2965, %v2446
        %v2974 = vmul.f32 %v2968, %v2446
        %v2975 = vmul.f32 %v2971, %v2446
        %v2976 = vmul.f32 %v247, %v2972
        %v2977 = vmul.f32 %v248, %v2973
        %v2978 = vmul.f32 %v249, %v2974
        %v2979 = vmul.f32 %v250, %v2975
        %v2980 = vsel %vm2455, %v2976, 0.0
        %v2981 = vsel %vm2455, %v2977, 0.0
        %v2982 = vadd.f32 %v2980, %v2981
        %v2983 = vsel %vm2455, %v2978, 0.0
        %v2984 = vadd.f32 %v2982, %v2983
        %v2985 = vsel %vm2455, %v2979, 0.0
        %v2986 = vadd.f32 %v2984, %v2985
        %v2987 = vrot.slane %v2986, 4
        %v2988 = vadd.f32 %v2986, %v2987
        %v2989 = vrot.slane %v2988, 2
        %v2990 = vadd.f32 %v2988, %v2989
        %v2991 = vrot.slane %v2990, 1
        %v2992 = vadd.f32 %v2990, %v2991
        %v2993 = vadd.f32 %v2992, %v2470
        %v2994 = vsub.f32 0.0, %v2993
        %v2995 = vmul.f32 %v2994, 1.442695
        %v2996 = vpow.pop %v2995
        %v2997 = vadd.f32 %v2996, 1.0
        %v2998 = vrcp.pop %v2997
        %v2999 = vmul.f32 %v2993, %v2998
        %v3000 = vlaneseq
        %v3001 = vshrl.u32 %v3000, 7
        %v3002 = vsub.s32 0, %v3001
        %v3003 = vrot.slane %v2999, %v3002
        %3005 = vrot.lane.b32.xlu0 %v3003, 2
        %v3006 = vpop.permute.xlu0 %3005
        %v3008 = vmul.f32 %v247, %v3006
        %v3009 = vmul.f32 %v248, %v3006
        %v3010 = vmul.f32 %v249, %v3006
        %v3011 = vmul.f32 %v250, %v3006
        %3016 = vrot.lane.b32.xlu0 %v3008, 116
        %v3017 = vpop.permute.xlu0 %3016
        %3018 = vrot.lane.b32.xlu0 %v3009, 116
        %v3019 = vpop.permute.xlu0 %3018
        %3020 = vrot.lane.b32.xlu0 %v3010, 116
        %v3021 = vpop.permute.xlu0 %3020
        %3022 = vrot.lane.b32.xlu0 %v3011, 116
        %v3023 = vpop.permute.xlu0 %3022
        %v3028 = vadd.f32 %v247, %v3017
        %v3029 = vadd.f32 %v248, %v3019
        %v3030 = vadd.f32 %v249, %v3021
        %v3031 = vadd.f32 %v250, %v3023
        %v3032 = vsel %vm2511, %v2976, 0.0
        %v3033 = vsel %vm2511, %v2977, 0.0
        %v3034 = vadd.f32 %v3032, %v3033
        %v3035 = vsel %vm2511, %v2978, 0.0
        %v3036 = vadd.f32 %v3034, %v3035
        %v3037 = vsel %vm2511, %v2979, 0.0
        %v3038 = vadd.f32 %v3036, %v3037
        %v3039 = vrot.slane %v3038, 4
        %v3040 = vadd.f32 %v3038, %v3039
        %v3041 = vrot.slane %v3040, 2
        %v3042 = vadd.f32 %v3040, %v3041
        %v3043 = vrot.slane %v3042, 1
        %v3044 = vadd.f32 %v3042, %v3043
        %v3045 = vadd.f32 %v3044, %v2527
        %v3046 = vsub.f32 0.0, %v3045
        %v3047 = vmul.f32 %v3046, 1.442695
        %v3048 = vpow.pop %v3047
        %v3049 = vadd.f32 %v3048, 1.0
        %v3050 = vrcp.pop %v3049
        %v3051 = vmul.f32 %v3045, %v3050
        %v3052 = vlaneseq
        %v3053 = vshrl.u32 %v3052, 7
        %v3054 = vsub.s32 0, %v3053
        %v3055 = vrot.slane %v3051, %v3054
        %3057 = vrot.lane.b32.xlu0 %v3055, 2
        %v3058 = vpop.permute.xlu0 %3057
        %v3060 = vmul.f32 %v247, %v3058
        %v3061 = vmul.f32 %v248, %v3058
        %v3062 = vmul.f32 %v249, %v3058
        %v3063 = vmul.f32 %v250, %v3058
        %3068 = vrot.lane.b32.xlu0 %v3060, 115
        %v3069 = vpop.permute.xlu0 %3068
        %3070 = vrot.lane.b32.xlu0 %v3061, 115
        %v3071 = vpop.permute.xlu0 %3070
        %3072 = vrot.lane.b32.xlu0 %v3062, 115
        %v3073 = vpop.permute.xlu0 %3072
        %3074 = vrot.lane.b32.xlu0 %v3063, 115
        %v3075 = vpop.permute.xlu0 %3074
        %v3080 = vadd.f32 %v3028, %v3069
        %v3081 = vadd.f32 %v3029, %v3071
        %v3082 = vadd.f32 %v3030, %v3073
        %v3083 = vadd.f32 %v3031, %v3075
        %v3084 = vsub.f32 0.0, %v3080
        %v3085 = vsub.f32 0.0, %v3081
        %v3086 = vsub.f32 0.0, %v3082
        %v3087 = vsub.f32 0.0, %v3083
        %v3088 = vmul.f32 %v3084, 1.442695
        %v3089 = vpow.pop %v3088
        %v3090 = vmul.f32 %v3085, 1.442695
        %v3091 = vpow.pop %v3090
        %v3092 = vmul.f32 %v3086, 1.442695
        %v3093 = vpow.pop %v3092
        %v3094 = vmul.f32 %v3087, 1.442695
        %v3095 = vpow.pop %v3094
        %v3096 = vadd.f32 %v3089, 1.0
        %v3097 = vadd.f32 %v3091, 1.0
        %v3098 = vadd.f32 %v3093, 1.0
        %v3099 = vadd.f32 %v3095, 1.0
        %v3100 = vrcp.pop %v3096
        %v3101 = vrcp.pop %v3097
        %v3102 = vrcp.pop %v3098
        %v3103 = vrcp.pop %v3099
        %3105 = vset.pattern.permute.xlu0 4
        %3106 = vperm.xlu0 %3105, %v3100
        %v3107 = vpop.permute.xlu0 %3106
        %3110 = vset.pattern.permute.xlu0 4
        %3111 = vperm.xlu0 %3110, %v3101
        %v3112 = vpop.permute.xlu0 %3111
        %3115 = vset.pattern.permute.xlu0 4
        %3116 = vperm.xlu0 %3115, %v3102
        %v3117 = vpop.permute.xlu0 %3116
        %3120 = vset.pattern.permute.xlu0 4
        %3121 = vperm.xlu0 %3120, %v3103
        %v3122 = vpop.permute.xlu0 %3121
        %v3124 = vmul.f32 %v2408, %v3107
        %v3125 = vmul.f32 %v2409, %v3107
        %v3126 = vmul.f32 %v2416, %v3112
        %v3127 = vmul.f32 %v2417, %v3112
        %v3128 = vmul.f32 %v2424, %v3117
        %v3129 = vmul.f32 %v2425, %v3117
        %v3130 = vmul.f32 %v2432, %v3122
        %v3131 = vmul.f32 %v2433, %v3122
        %v3132 = vld [vmem:[%s3] sm:$0xf]
        %v3133 = vpack.c.bf16 %v2610, %v2608
        %v3134 = vpack.c.bf16 %v2611, %v2609
        %v3135 = vpack.c.bf16 %v2782, %v2780
        %v3136 = vpack.c.bf16 %v2783, %v2781
        %v3137 = vpack.c.bf16 %v2954, %v2952
        %v3138 = vpack.c.bf16 %v2955, %v2953
        %v3139 = vpack.c.bf16 %v3126, %v3124
        %v3140 = vpack.c.bf16 %v3127, %v3125
        %v3141 = vpack.c.bf16 %v2614, %v2612
        %v3142 = vpack.c.bf16 %v2615, %v2613
        %v3143 = vpack.c.bf16 %v2786, %v2784
        %v3144 = vpack.c.bf16 %v2787, %v2785
        %v3145 = vpack.c.bf16 %v2958, %v2956
        %v3146 = vpack.c.bf16 %v2959, %v2957
        %v3147 = vpack.c.bf16 %v3130, %v3128
        %v3148 = vpack.c.bf16 %v3131, %v3129
        %vm3149 = vcmask 261120
        %v3151 = vsel %vm3149, %v3132, 0
        %3153 = vmatprep.subr.bf16.mxu0 %v3134
        %3154 = vmatpush1.bf16.msra.mxu0 %v3133
        %3155 = vmatprep.subr.bf16.mxu0 %v3142
        %3156 = vmatpush1.bf16.msra.mxu0 %v3141
        %3157 = vmatprep.subr.bf16.mxu0 0
        %3158 = vmatpush1.bf16.msra.mxu0 0
        %3159 = vmatprep.subr.bf16.mxu0 0
        %3160 = vmatpush1.bf16.msra.mxu0 0
        %3161 = vmatprep.subr.bf16.mxu0 0
        %3162 = vmatpush1.bf16.msra.mxu0 0
        %3163 = vmatprep.subr.bf16.mxu0 0
        %3164 = vmatpush1.bf16.msra.mxu0 0
        %3165 = vmatprep.subr.bf16.mxu0 0
        %3166 = vmatpush1.bf16.msra.mxu0 0
        %3167 = vmatprep.subr.bf16.mxu0 0
        %3168 = vmatpush1.bf16.msra.mxu0 0
        %3169 = vmatprep.subr.bf16.mxu0 0
        %3170 = vmatpush1.bf16.msra.mxu0 0
        %3171 = vmatprep.subr.bf16.mxu0 0
        %3172 = vmatpush1.bf16.msra.mxu0 0
        %3173 = vmatprep.subr.bf16.mxu0 0
        %3174 = vmatpush1.bf16.msra.mxu0 0
        %3175 = vmatprep.subr.bf16.mxu0 0
        %3176 = vmatpush1.bf16.msra.mxu0 0
        %3177 = vmatprep.subr.bf16.mxu0 0
        %3178 = vmatpush1.bf16.msra.mxu0 0
        %3179 = vmatprep.subr.bf16.mxu0 0
        %3180 = vmatpush1.bf16.msra.mxu0 0
        %3181 = vmatprep.subr.bf16.mxu0 0
        %3182 = vmatpush1.bf16.msra.mxu0 0
        %3183 = vmatprep.subr.bf16.mxu0 0
        %3184 = vmatpush1.bf16.msra.mxu0 0
        %3185 = vmatprep.mubr.bf16.mxu0 0
        %3186 = vmatmul.mubr.bf16.gmra.mrb[0].mxu0 %v3151
        %v3187 = vpop.f32.mrb[0].mxu0
        %v3188 = vadd.f32 0.0, %v3187
        %v3189 = vpop.f32.mrb[0].mxu0
        %v3190 = vadd.f32 0.0, %v3189
        %v3191 = vpop.f32.mrb[0].mxu0
        %v3192 = vpop.f32.mrb[0].mxu0
        %3193 = vdwg.mxu0
        %3194 = vmatprep.subr.bf16.mxu0 %v3136
        %3195 = vmatpush1.bf16.msra.mxu0 %v3135
        %3196 = vmatprep.subr.bf16.mxu0 %v3144
        %3197 = vmatpush1.bf16.msra.mxu0 %v3143
        %3198 = vmatprep.subr.bf16.mxu0 0
        %3199 = vmatpush1.bf16.msra.mxu0 0
        %3200 = vmatprep.subr.bf16.mxu0 0
        %3201 = vmatpush1.bf16.msra.mxu0 0
        %3202 = vmatprep.subr.bf16.mxu0 0
        %3203 = vmatpush1.bf16.msra.mxu0 0
        %3204 = vmatprep.subr.bf16.mxu0 0
        %3205 = vmatpush1.bf16.msra.mxu0 0
        %3206 = vmatprep.subr.bf16.mxu0 0
        %3207 = vmatpush1.bf16.msra.mxu0 0
        %3208 = vmatprep.subr.bf16.mxu0 0
        %3209 = vmatpush1.bf16.msra.mxu0 0
        %3210 = vmatprep.subr.bf16.mxu0 0
        %3211 = vmatpush1.bf16.msra.mxu0 0
        %3212 = vmatprep.subr.bf16.mxu0 0
        %3213 = vmatpush1.bf16.msra.mxu0 0
        %3214 = vmatprep.subr.bf16.mxu0 0
        %3215 = vmatpush1.bf16.msra.mxu0 0
        %3216 = vmatprep.subr.bf16.mxu0 0
        %3217 = vmatpush1.bf16.msra.mxu0 0
        %3218 = vmatprep.subr.bf16.mxu0 0
        %3219 = vmatpush1.bf16.msra.mxu0 0
        %3220 = vmatprep.subr.bf16.mxu0 0
        %3221 = vmatpush1.bf16.msra.mxu0 0
        %3222 = vmatprep.subr.bf16.mxu0 0
        %3223 = vmatpush1.bf16.msra.mxu0 0
        %3224 = vmatprep.subr.bf16.mxu0 0
        %3225 = vmatpush1.bf16.msra.mxu0 0
        %3226 = vmatprep.mubr.bf16.mxu0 0
        %3227 = vmatmul.mubr.bf16.gmra.mrb[0].mxu0 %v3151
        %v3228 = vpop.f32.mrb[0].mxu0
        %v3229 = vadd.f32 0.0, %v3228
        %v3230 = vpop.f32.mrb[0].mxu0
        %v3231 = vadd.f32 0.0, %v3230
        %v3232 = vpop.f32.mrb[0].mxu0
        %v3233 = vpop.f32.mrb[0].mxu0
        %3234 = vdwg.mxu0
        %3235 = vmatprep.subr.bf16.mxu0 %v3138
        %3236 = vmatpush1.bf16.msra.mxu0 %v3137
        %3237 = vmatprep.subr.bf16.mxu0 %v3146
        %3238 = vmatpush1.bf16.msra.mxu0 %v3145
        %3239 = vmatprep.subr.bf16.mxu0 0
        %3240 = vmatpush1.bf16.msra.mxu0 0
        %3241 = vmatprep.subr.bf16.mxu0 0
        %3242 = vmatpush1.bf16.msra.mxu0 0
        %3243 = vmatprep.subr.bf16.mxu0 0
        %3244 = vmatpush1.bf16.msra.mxu0 0
        %3245 = vmatprep.subr.bf16.mxu0 0
        %3246 = vmatpush1.bf16.msra.mxu0 0
        %3247 = vmatprep.subr.bf16.mxu0 0
        %3248 = vmatpush1.bf16.msra.mxu0 0
        %3249 = vmatprep.subr.bf16.mxu0 0
        %3250 = vmatpush1.bf16.msra.mxu0 0
        %3251 = vmatprep.subr.bf16.mxu0 0
        %3252 = vmatpush1.bf16.msra.mxu0 0
        %3253 = vmatprep.subr.bf16.mxu0 0
        %3254 = vmatpush1.bf16.msra.mxu0 0
        %3255 = vmatprep.subr.bf16.mxu0 0
        %3256 = vmatpush1.bf16.msra.mxu0 0
        %3257 = vmatprep.subr.bf16.mxu0 0
        %3258 = vmatpush1.bf16.msra.mxu0 0
        %3259 = vmatprep.subr.bf16.mxu0 0
        %3260 = vmatpush1.bf16.msra.mxu0 0
        %3261 = vmatprep.subr.bf16.mxu0 0
        %3262 = vmatpush1.bf16.msra.mxu0 0
        %3263 = vmatprep.subr.bf16.mxu0 0
        %3264 = vmatpush1.bf16.msra.mxu0 0
        %3265 = vmatprep.subr.bf16.mxu0 0
        %3266 = vmatpush1.bf16.msra.mxu0 0
        %3267 = vmatprep.mubr.bf16.mxu0 0
        %3268 = vmatmul.mubr.bf16.gmra.mrb[0].mxu0 %v3151
        %v3269 = vpop.f32.mrb[0].mxu0
        %v3270 = vadd.f32 0.0, %v3269
        %v3271 = vpop.f32.mrb[0].mxu0
        %v3272 = vadd.f32 0.0, %v3271
        %v3273 = vpop.f32.mrb[0].mxu0
        %v3274 = vpop.f32.mrb[0].mxu0
        %3275 = vdwg.mxu0
        %3276 = vmatprep.subr.bf16.mxu0 %v3140
        %3277 = vmatpush1.bf16.msra.mxu0 %v3139
        %3278 = vmatprep.subr.bf16.mxu0 %v3148
        %3279 = vmatpush1.bf16.msra.mxu0 %v3147
        %3280 = vmatprep.subr.bf16.mxu0 0
        %3281 = vmatpush1.bf16.msra.mxu0 0
        %3282 = vmatprep.subr.bf16.mxu0 0
        %3283 = vmatpush1.bf16.msra.mxu0 0
        %3284 = vmatprep.subr.bf16.mxu0 0
        %3285 = vmatpush1.bf16.msra.mxu0 0
        %3286 = vmatprep.subr.bf16.mxu0 0
        %3287 = vmatpush1.bf16.msra.mxu0 0
        %3288 = vmatprep.subr.bf16.mxu0 0
        %3289 = vmatpush1.bf16.msra.mxu0 0
        %3290 = vmatprep.subr.bf16.mxu0 0
        %3291 = vmatpush1.bf16.msra.mxu0 0
        %3292 = vmatprep.subr.bf16.mxu0 0
        %3293 = vmatpush1.bf16.msra.mxu0 0
        %3294 = vmatprep.subr.bf16.mxu0 0
        %3295 = vmatpush1.bf16.msra.mxu0 0
        %3296 = vmatprep.subr.bf16.mxu0 0
        %3297 = vmatpush1.bf16.msra.mxu0 0
        %3298 = vmatprep.subr.bf16.mxu0 0
        %3299 = vmatpush1.bf16.msra.mxu0 0
        %3300 = vmatprep.subr.bf16.mxu0 0
        %3301 = vmatpush1.bf16.msra.mxu0 0
        %3302 = vmatprep.subr.bf16.mxu0 0
        %3303 = vmatpush1.bf16.msra.mxu0 0
        %3304 = vmatprep.subr.bf16.mxu0 0
        %3305 = vmatpush1.bf16.msra.mxu0 0
        %3306 = vmatprep.subr.bf16.mxu0 0
        %3307 = vmatpush1.bf16.msra.mxu0 0
        %3308 = vmatprep.mubr.bf16.mxu0 0
        %3309 = vmatmul.mubr.bf16.gmra.mrb[0].mxu0 %v3151
        %v3310 = vpop.f32.mrb[0].mxu0
        %v3311 = vadd.f32 0.0, %v3310
        %v3312 = vpop.f32.mrb[0].mxu0
        %v3313 = vadd.f32 0.0, %v3312
        %v3314 = vpop.f32.mrb[0].mxu0
        %v3315 = vpop.f32.mrb[0].mxu0
        %3316 = vdwg.mxu0
        %3318 = vset.pattern.permute.xlu0 0
        %3319 = vperm.xlu0 %3318, %v251
        %v3320 = vpop.permute.xlu0 %3319
        %v3322 = vmul.f32 %v3188, %v3320
        %v3323 = vmul.f32 %v3190, %v3320
        %v3324 = vmul.f32 %v3229, %v3320
        %v3325 = vmul.f32 %v3231, %v3320
        %v3326 = vmul.f32 %v3270, %v3320
        %v3327 = vmul.f32 %v3272, %v3320
        %v3328 = vmul.f32 %v3311, %v3320
        %v3329 = vmul.f32 %v3313, %v3320
        %3330 = vset.pattern.permute.xlu0 1
        %3331 = vperm.xlu0 %3330, %v251
        %v3332 = vpop.permute.xlu0 %3331
        %v3334 = vadd.f32 %v3322, %v3332
        %v3335 = vadd.f32 %v3323, %v3332
        %v3336 = vadd.f32 %v3324, %v3332
        %v3337 = vadd.f32 %v3325, %v3332
        %v3338 = vadd.f32 %v3326, %v3332
        %v3339 = vadd.f32 %v3327, %v3332
        %v3340 = vadd.f32 %v3328, %v3332
        %v3341 = vadd.f32 %v3329, %v3332
        %v3342 = vadd.f32 %v3334, %v252
        %v3343 = vadd.f32 %v3335, %v253
        %3344 = vst [vmem:[%s243] sm:$0xff] %v3342
        %3345 = vst [vmem:[%s243 + $0x8] sm:$0xff] %v3343
        %v3346 = vld [vmem:[%s254] sm:$0xff]
        %v3347 = vld [vmem:[%s254 + $0x8] sm:$0xff]
        %v3348 = vadd.f32 %v3336, %v3346
        %v3349 = vadd.f32 %v3337, %v3347
        %s3350 = scalar_lea.vmem %s243, 16 [#allocation5]
        %3351 = vst [vmem:[%s3350] sm:$0xff] %v3348
        %3352 = vst [vmem:[%s3350 + $0x8] sm:$0xff] %v3349
        %v3353 = vld [vmem:[%s257] sm:$0xff]
        %v3354 = vld [vmem:[%s257 + $0x8] sm:$0xff]
        %v3355 = vadd.f32 %v3338, %v3353
        %v3356 = vadd.f32 %v3339, %v3354
        %s3357 = scalar_lea.vmem %s243, 32 [#allocation5]
        %3358 = vst [vmem:[%s3357] sm:$0xff] %v3355
        %3359 = vst [vmem:[%s3357 + $0x8] sm:$0xff] %v3356
        %v3360 = vld [vmem:[%s260] sm:$0xff]
        %v3361 = vld [vmem:[%s260 + $0x8] sm:$0xff]
        %v3362 = vadd.f32 %v3340, %v3360
        %v3363 = vadd.f32 %v3341, %v3361
        %s3364 = scalar_lea.vmem %s243, 48 [#allocation5]
        %3365 = vst [vmem:[%s3364] sm:$0xff] %v3362
        %3366 = vst [vmem:[%s3364 + $0x8] sm:$0xff] %v3363
        %s3367 = sand.u32 %s140, 1
        %s3368 = scalar_lea.sflag [#allocation4], %s3367
        %s3369 = sand.u32 %s140, 1
        %s3370 = smul.addr %s3369, 64
        %s3371 = scalar_lea.vmem [#allocation5], %s3370
        // Predicated region
        $region45: #{tpu_custom_call.1} parent=39 // pred_check
          %p3372 = pneg %p150
        $region46: #{tpu_custom_call.1} parent=39 // pred_check_branch
          %3374 = sbr.rel (%p3372) target = $region48
        $region47: #{tpu_custom_call.1} parent=39 // pred_region
          %s3375 = smul.u32 4, %s22
          %s3377 = ssub.s32 1024, 1024
          %3378 = vsyncadd %s3368, %s3377
          %s3379 = smul.addr %s3375, 2
          %s3380 = smul.addr %s3379, 128
          %s3381 = scalar_lea.hbm %s5, %s3380
          %s3382 = sshll.u32 %s3371, 4
          %s3383 = int_to_ptr.vmem [resolvable:$true] %s3382
          %3388 = dma.vmem_to_hbm [thread:$0]  %s3383, 1024, %s3381, %s3368, 256, 256, 16
        $region48: #{tpu_custom_call.1} parent=39 // pred_fallthru
          _
      $region40: #{tpu_custom_call.1} parent=5 // pred_fallthru
        _
      %p3389 = scmp.le.s32.totalorder 2, %s17
      // Predicated region
      $region49: #{tpu_custom_call.1} parent=5 // pred_check
        %p3390 = pneg %p3389
      $region50: #{tpu_custom_call.1} parent=5 // pred_check_branch
        %3392 = sbr.rel (%p3390) target = $region52
      $region51: #{tpu_custom_call.1} parent=5 // pred_region
        %s3393 = ssub.s32 %s17, 2
        // Predicated region
        $region53: #{tpu_custom_call.1} parent=51 // pred_check
          %p3394 = pneg %p156
        $region54: #{tpu_custom_call.1} parent=51 // pred_check_branch
          %3396 = sbr.rel (%p3394) target = $region56
        $region55: #{tpu_custom_call.1} parent=51 // pred_region
          %s3397 = sand.u32 %s141, 1
          %s3398 = scalar_lea.sflag [#allocation4], %s3397
          %s3399 = sand.u32 %s141, 1
          %s3400 = smul.addr %s3399, 64
          %s3401 = scalar_lea.vmem [#allocation5], %s3400
          %3402 = dma.done %s3398, 1024
        $region56: #{tpu_custom_call.1} parent=51 // pred_fallthru
          _
      $region52: #{tpu_custom_call.1} parent=5 // pred_fallthru
        _
    $region6: #{tpu_custom_call.1} parent=1 // loop_footer
      %s21 = sadd.s32 1, %s17
    $region7: #{tpu_custom_call.1} parent=1 // loop_footer_branch
      %16 = sbr.rel target = $region3
    $region8: #{tpu_custom_call.1} parent=1 // loop_exit
      _
    %3403 = vsyncpa [#allocation3], 1
    %s3404 = scalar_lea.sflag [#allocation3], 1
    %3405 = vsyncpa %s3404, 1
    %3406 = vsyncpa [#allocation4], 1
    %s3407 = scalar_lea.sflag [#allocation4], 1
    %3408 = vsyncpa %s3407, 1

</llo_original>
